<compile_context>
chip_gen: v5e
topology: v5e:2x2
jax: 0.10.0
libtpu: 0.0.40
codegen_flags: <defaults>
</compile_context>

<pallas_src>
import functools

import jax
import jax.numpy as jnp
from jax.experimental import pallas as pl
from jax.experimental.pallas import tpu as pltpu


def _pick_tile(m, cap):
    """Largest row-tile dividing m: m itself if small, else a multiple of 128."""
    if m <= cap:
        return m
    t = (cap // 128) * 128
    while t >= 128:
        if m % t == 0:
            return t
        t -= 128
    return m  # fallback: single block


# ----------------------------------------------------------------------------
# Fused matmul kernel:  out = act(x @ w + b)   (bf16 MXU inputs, f32 accumulate)
# ----------------------------------------------------------------------------
def _matmul_bias_act_kernel(x_ref, w_ref, b_ref, o_ref, *, act):
    acc = jnp.dot(x_ref[...], w_ref[...], preferred_element_type=jnp.float32)
    acc = acc + b_ref[...].astype(jnp.float32)
    if act == "relu":
        acc = jnp.maximum(acc, 0.0)
    elif act == "tanh":
        acc = jnp.tanh(acc)
    o_ref[...] = acc.astype(o_ref.dtype)


def fused_matmul(xcol, wcol, bias, *, act, out_dtype, tile_m_cap=1024):
    """xcol: (P, M, K), wcol: (P, K, Co), bias: (1, Co) f32  ->  (P, M, Co)."""
    P, M, K = xcol.shape
    Co = wcol.shape[-1]
    tm = _pick_tile(M, tile_m_cap)
    return pl.pallas_call(
        functools.partial(_matmul_bias_act_kernel, act=act),
        grid=(P, M // tm),
        in_specs=[
            pl.BlockSpec((None, tm, K), lambda p, m: (p, m, 0)),
            pl.BlockSpec((None, K, Co), lambda p, m: (p, 0, 0)),
            pl.BlockSpec((1, Co), lambda p, m: (0, 0)),   # constant index -> fetched once
        ],
        out_specs=pl.BlockSpec((None, tm, Co), lambda p, m: (p, m, 0)),
        out_shape=jax.ShapeDtypeStruct((P, M, Co), out_dtype),
        compiler_params=pltpu.CompilerParams(
            dimension_semantics=("parallel", "parallel")),
    )(xcol, wcol, bias)


# ----------------------------------------------------------------------------
# BatchNorm2d (training mode, biased variance) as a tiled two-pass kernel pair.
# The preceding ReLU is already fused into the conv epilogue.
# ----------------------------------------------------------------------------
def _bn_stats_kernel(x_ref, s_ref):
    @pl.when(pl.program_id(0) == 0)
    def _():
        s_ref[...] = jnp.zeros_like(s_ref)
    xf = x_ref[...].astype(jnp.float32)
    s_ref[0:1, :] += jnp.sum(xf, axis=0, keepdims=True)
    s_ref[1:2, :] += jnp.sum(xf * xf, axis=0, keepdims=True)


def _bn_apply_kernel(x_ref, s_ref, g_ref, b_ref, o_ref, *, inv_m, eps):
    xf = x_ref[...].astype(jnp.float32)
    mean = s_ref[0:1, :] * inv_m
    var = s_ref[1:2, :] * inv_m - mean * mean
    inv = jax.lax.rsqrt(var + eps)
    o_ref[...] = ((xf - mean) * inv * g_ref[...] + b_ref[...]).astype(o_ref.dtype)


def batchnorm2d(x, gamma, beta, *, eps=1e-5, tile_m_cap=2048):
    N, H, W, C = x.shape
    M = N * H * W
    x2 = x.reshape(M, C)
    tm = _pick_tile(M, tile_m_cap)
    nm = M // tm

    stats = pl.pallas_call(
        _bn_stats_kernel,
        grid=(nm,),
        in_specs=[pl.BlockSpec((tm, C), lambda m: (m, 0))],
        out_specs=pl.BlockSpec((2, C), lambda m: (0, 0)),      # resident accumulator
        out_shape=jax.ShapeDtypeStruct((2, C), jnp.float32),
        compiler_params=pltpu.CompilerParams(dimension_semantics=("arbitrary",)),
    )(x2)

    out = pl.pallas_call(
        functools.partial(_bn_apply_kernel, inv_m=1.0 / M, eps=eps),
        grid=(nm,),
        in_specs=[
            pl.BlockSpec((tm, C), lambda m: (m, 0)),
            pl.BlockSpec((2, C), lambda m: (0, 0)),
            pl.BlockSpec((1, C), lambda m: (0, 0)),
            pl.BlockSpec((1, C), lambda m: (0, 0)),
        ],
        out_specs=pl.BlockSpec((tm, C), lambda m: (m, 0)),
        out_shape=jax.ShapeDtypeStruct((M, C), x2.dtype),
        compiler_params=pltpu.CompilerParams(dimension_semantics=("parallel",)),
    )(x2, stats, gamma.reshape(1, C).astype(jnp.float32),
      beta.reshape(1, C).astype(jnp.float32))
    return out.reshape(N, H, W, C)


# ----------------------------------------------------------------------------
# ConvTranspose2d wrappers
# ----------------------------------------------------------------------------
def first_convt(z, one_hot, w_img, b_img, w_lab, b_lab, *, compute_dtype):
    """Merged (z || one_hot) 1x1 -> 4x4 ConvTranspose2d (k=4, s=1, p=0) + ReLU."""
    N = z.shape[0]
    ci_z, co_half = w_img.shape[0], w_img.shape[1]   # 100, 16
    ci_l = w_lab.shape[0]                            # 10
    cin, cout = ci_z + ci_l, 2 * co_half             # 110, 32
    # Block-diagonal merged weight (Cin, Cout, 4, 4), merged bias.
    w = jnp.zeros((cin, cout, 4, 4), jnp.float32)
    w = w.at[:ci_z, :co_half].set(w_img).at[ci_z:, co_half:].set(w_lab)
    b = jnp.concatenate([b_img, b_lab])              # (32,)
    # out[n, kh, kw, co] = sum_ci x[n, ci] * w[ci, co, kh, kw] + b[co]
    wr = jnp.transpose(w, (0, 2, 3, 1)).reshape(cin, 16 * cout)   # (110, 512)
    br = jnp.tile(b, 16).reshape(1, -1).astype(jnp.float32)       # (1, 512), co fastest
    x = jnp.concatenate([z, one_hot], axis=1)                     # (N, 110)
    out = fused_matmul(x.astype(compute_dtype)[None],
                       wr.astype(compute_dtype)[None], br,
                       act="relu", out_dtype=compute_dtype)       # (1, N, 512)
    return out.reshape(N, 4, 4, cout)


# Sub-pixel phase decomposition of ConvTranspose2d(k=4, stride=2, padding=1):
#   out[2i+ph, 2j+pw] = sum_{a,b} xpad[i+off[ph][a], j+off[pw][b]] @ w[tap[ph][a], tap[pw][b]]
_PHASE_OFF = ((1, 0), (2, 1))   # window start offset into the 1-padded input
_PHASE_TAP = ((1, 3), (0, 2))   # matching kernel tap index


def conv_transpose2d_s2(x, w_ct, b, *, act, compute_dtype, out_dtype, cout_pad=0):
    """x: (N,H,W,Cin). w_ct: (Cin,Cout,4,4) PyTorch layout. -> (N,2H,2W,Cout)."""
    N, H, W, Cin = x.shape
    Cout = w_ct.shape[1]
    M = N * H * W
    xpad = jnp.pad(x, ((0, 0), (1, 1), (1, 1), (0, 0)))

    xcols, wcols = [], []
    for ph in range(2):
        for pw in range(2):
            wins = [xpad[:, _PHASE_OFF[ph][a]:_PHASE_OFF[ph][a] + H,
                           _PHASE_OFF[pw][c]:_PHASE_OFF[pw][c] + W, :]
                    for a in range(2) for c in range(2)]
            xcols.append(jnp.concatenate(wins, axis=-1).reshape(M, 4 * Cin))
            taps = [w_ct[:, :, _PHASE_TAP[ph][a], _PHASE_TAP[pw][c]]
                    for a in range(2) for c in range(2)]
            wcols.append(jnp.concatenate(taps, axis=0))            # (4*Cin, Cout)
    xcol = jnp.stack(xcols, axis=0).astype(compute_dtype)          # (4, M, 4*Cin)
    wcol = jnp.stack(wcols, axis=0).astype(compute_dtype)          # (4, 4*Cin, Cout)
    b2 = b.astype(jnp.float32)
    if cout_pad:                                                   # lane-pad narrow Cout
        wcol = jnp.pad(wcol, ((0, 0), (0, 0), (0, cout_pad)))
        b2 = jnp.pad(b2, (0, cout_pad))

    out = fused_matmul(xcol, wcol, b2.reshape(1, -1), act=act, out_dtype=out_dtype)
    out = out[..., :Cout]                                          # drop lane padding
    y = out.reshape(2, 2, N, H, W, Cout).transpose(2, 3, 0, 4, 1, 5)
    return y.reshape(N, 2 * H, 2 * W, Cout)


# ----------------------------------------------------------------------------
# Generator parameters + forward
# ----------------------------------------------------------------------------
def init_params(key):
    f = 32
    ks = jax.random.split(key, 10)

    def w(k, shape, scale=0.05):
        return scale * jax.random.normal(k, shape, jnp.float32)

    return {
        # ConvTranspose2d weights in PyTorch layout (Cin, Cout, K, K)
        "w_img": w(ks[0], (100, f // 2, 4, 4)), "b_img": w(ks[1], (f // 2,), 0.02),
        "w_lab": w(ks[2], (10, f // 2, 4, 4)),  "b_lab": w(ks[3], (f // 2,), 0.02),
        "bn1_g": jnp.ones((f,), jnp.float32),   "bn1_b": jnp.zeros((f,), jnp.float32),
        "w1": w(ks[4], (f, 2 * f, 4, 4)),       "b1": w(ks[5], (2 * f,), 0.02),
        "bn2_g": jnp.ones((2 * f,), jnp.float32), "bn2_b": jnp.zeros((2 * f,), jnp.float32),
        "w2": w(ks[6], (2 * f, 4 * f, 4, 4)),   "b2": w(ks[7], (4 * f,), 0.02),
        "bn3_g": jnp.ones((4 * f,), jnp.float32), "bn3_b": jnp.zeros((4 * f,), jnp.float32),
        "w3": w(ks[8], (4 * f, 1, 4, 4)),       "b3": w(ks[9], (1,), 0.02),
    }


def generator_forward(params, z, label, *, compute_dtype=jnp.bfloat16):
    """z: (N, 100), label: (N,) int32 in [0, 10).  Returns NCHW (N, 1, 32, 32) f32."""
    one_hot = jnp.eye(10, dtype=jnp.float32)[label]

    x = first_convt(z, one_hot, params["w_img"], params["b_img"],
                    params["w_lab"], params["b_lab"],
                    compute_dtype=compute_dtype)                                # (N,4,4,32) relu'd
    x = batchnorm2d(x, params["bn1_g"], params["bn1_b"])
    x = conv_transpose2d_s2(x, params["w1"], params["b1"], act="relu",
                            compute_dtype=compute_dtype, out_dtype=compute_dtype)  # (N,8,8,64)
    x = batchnorm2d(x, params["bn2_g"], params["bn2_b"])
    x = conv_transpose2d_s2(x, params["w2"], params["b2"], act="relu",
                            compute_dtype=compute_dtype, out_dtype=compute_dtype)  # (N,16,16,128)
    x = batchnorm2d(x, params["bn3_g"], params["bn3_b"])
    x = conv_transpose2d_s2(x, params["w3"], params["b3"], act="tanh",
                            compute_dtype=compute_dtype, out_dtype=jnp.float32,
                            cout_pad=7)                                             # (N,32,32,1)
    return jnp.transpose(x, (0, 3, 1, 2))                                           # (N,1,32,32)
    # TODO(synk): BatchNorm running_mean/running_var buffer updates (a training
    # side effect, not part of the forward output) are not replicated.


# ----------------------------------------------------------------------------
# Pure-JAX reference (PyTorch semantics) used only for the self-check in main.
# ----------------------------------------------------------------------------
def _ref_conv_transpose(x, w, b, stride, padding):
    N, H, W, Cin = x.shape
    _, Cout, K, _ = w.shape
    Ho = (H - 1) * stride - 2 * padding + K
    Wo = (W - 1) * stride - 2 * padding + K
    full = jnp.zeros((N, (H - 1) * stride + K, (W - 1) * stride + K, Cout), jnp.float32)
    for kh in range(K):
        for kw in range(K):
            contrib = jnp.einsum("nhwi,io->nhwo", x, w[:, :, kh, kw])
            full = full.at[:, kh:kh + (H - 1) * stride + 1:stride,
                           kw:kw + (W - 1) * stride + 1:stride, :].add(contrib)
    return full[:, padding:padding + Ho, padding:padding + Wo, :] + b


def _ref_relu_bn(x, g, b, eps=1e-5):
    x = jnp.maximum(x, 0.0)
    mean = jnp.mean(x, axis=(0, 1, 2), keepdims=True)
    var = jnp.mean((x - mean) ** 2, axis=(0, 1, 2), keepdims=True)
    return (x - mean) * jax.lax.rsqrt(var + eps) * g + b


def _ref_forward(params, z, label):
    one_hot = jnp.eye(10, dtype=jnp.float32)[label]
    xi = _ref_conv_transpose(z.reshape(-1, 1, 1, 100), params["w_img"], params["b_img"], 1, 0)
    xl = _ref_conv_transpose(one_hot.reshape(-1, 1, 1, 10), params["w_lab"], params["b_lab"], 1, 0)
    x = jnp.concatenate([xi, xl], axis=-1)
    x = _ref_relu_bn(x, params["bn1_g"], params["bn1_b"])
    x = _ref_conv_transpose(x, params["w1"], params["b1"], 2, 1)
    x = _ref_relu_bn(x, params["bn2_g"], params["bn2_b"])
    x = _ref_conv_transpose(x, params["w2"], params["b2"], 2, 1)
    x = _ref_relu_bn(x, params["bn3_g"], params["bn3_b"])
    x = jnp.tanh(_ref_conv_transpose(x, params["w3"], params["b3"], 2, 1))
    return jnp.transpose(x, (0, 3, 1, 2))


if __name__ == "__main__":
    key = jax.random.PRNGKey(0)
    kp, kz = jax.random.split(key)
    params = init_params(kp)

    z = jax.random.normal(kz, (2, 100), jnp.float32)   # torch: input.view(-1, 100, 1, 1)
    label = jnp.array([3, 7], dtype=jnp.int32)

    fwd = jax.jit(functools.partial(generator_forward, compute_dtype=jnp.bfloat16))
    out = jax.block_until_ready(fwd(params, z, label))
    assert out.shape == (2, 1, 32, 32), out.shape
    assert bool(jnp.all(jnp.isfinite(out)))
    assert bool(jnp.all(jnp.abs(out) <= 1.0 + 1e-6))   # tanh range

    # Self-check: f32 kernel path vs pure-JAX reference (tight), bf16 path (loose).
    fwd32 = jax.jit(functools.partial(generator_forward, compute_dtype=jnp.float32))
    out32 = jax.block_until_ready(fwd32(params, z, label))
    ref = jax.block_until_ready(jax.jit(_ref_forward)(params, z, label))
    err32 = float(jnp.max(jnp.abs(out32 - ref)))
    err16 = float(jnp.max(jnp.abs(out - ref)))
    assert err32 < 1e-2, f"f32 path mismatch: {err32}"
    assert err16 < 2e-1, f"bf16 path mismatch: {err16}"

    print("KERNEL_OK")
</pallas_src>

<mosaic_0001>
module attributes {stable_mosaic.version = 11 : i64} {
  func.func @_matmul_bias_act_kernel(%arg0: i32, %arg1: i32, %arg2: memref<1x2x110xbf16, #tpu.memory_space<vmem>>, %arg3: memref<1x110x512xbf16, #tpu.memory_space<vmem>>, %arg4: memref<1x512xf32, #tpu.memory_space<vmem>>, %arg5: memref<1x2x512xbf16, #tpu.memory_space<vmem>>) attributes {dimension_semantics = [#tpu.dimension_semantics<parallel>, #tpu.dimension_semantics<parallel>], iteration_bounds = array<i64: 1, 1>, scalar_prefetch = 0 : i64, scratch_operands = 0 : i64, tpu.core_type = #tpu.core_type<tc>, window_params = [{transform_indices = @transform_0, window_bounds = array<i64: 1, 2, 110>}, {transform_indices = @transform_1, window_bounds = array<i64: 1, 110, 512>}, {pipeline_mode = #tpu.pipeline_mode<synchronous>, transform_indices = @transform_2, window_bounds = array<i64: 1, 512>}, {transform_indices = @transform_3, window_bounds = array<i64: 1, 2, 512>}]} {
    %c0 = arith.constant 0 : index
    %c0_0 = arith.constant 0 : index
    %c0_1 = arith.constant 0 : index
    %0 = vector.load %arg2[%c0, %c0_0, %c0_1] : memref<1x2x110xbf16, #tpu.memory_space<vmem>>, vector<1x2x110xbf16>
    %1 = vector.shape_cast %0 : vector<1x2x110xbf16> to vector<2x110xbf16>
    %c0_2 = arith.constant 0 : index
    %c0_3 = arith.constant 0 : index
    %c0_4 = arith.constant 0 : index
    %2 = vector.load %arg3[%c0_2, %c0_3, %c0_4] : memref<1x110x512xbf16, #tpu.memory_space<vmem>>, vector<1x110x512xbf16>
    %3 = vector.shape_cast %2 : vector<1x110x512xbf16> to vector<110x512xbf16>
    %cst = arith.constant dense<0.000000e+00> : vector<2x512xf32>
    %4 = tpu.matmul %1, %3, %cst {dimension_numbers = #tpu.dot_dimension_numbers<[1], [0], [0], [1], [0, 0, 1, 1], [], []>} : vector<2x110xbf16>, vector<110x512xbf16>, vector<2x512xf32> -> vector<2x512xf32>
    %c0_5 = arith.constant 0 : index
    %c0_6 = arith.constant 0 : index
    %5 = vector.load %arg4[%c0_5, %c0_6] : memref<1x512xf32, #tpu.memory_space<vmem>>, vector<1x512xf32>
    %6 = vector.broadcast %5 : vector<1x512xf32> to vector<2x512xf32>
    %7 = arith.addf %4, %6 : vector<2x512xf32>
    %cst_7 = arith.constant 0.000000e+00 : f32
    %8 = vector.broadcast %cst_7 : f32 to vector<2x512xf32>
    %9 = arith.maximumf %7, %8 : vector<2x512xf32>
    %10 = arith.truncf %9 : vector<2x512xf32> to vector<2x512xbf16>
    %c0_8 = arith.constant 0 : index
    %c0_9 = arith.constant 0 : index
    %c0_10 = arith.constant 0 : index
    %11 = vector.load %arg5[%c0_8, %c0_9, %c0_10] : memref<1x2x512xbf16, #tpu.memory_space<vmem>>, vector<1x2x512xbf16>
    %12 = vector.shape_cast %11 : vector<1x2x512xbf16> to vector<2x512xbf16>
    %13 = vector.shape_cast %10 : vector<2x512xbf16> to vector<1x2x512xbf16>
    tpu.vector_store %arg5[%c0_8, %c0_9, %c0_10], %13 {strides = array<i32>} : memref<1x2x512xbf16, #tpu.memory_space<vmem>>, vector<1x2x512xbf16>,
    return
  }
  func.func @transform_0(%arg0: i32, %arg1: i32) -> (i32, i32, i32) {
    %c0_i32 = arith.constant 0 : i32
    %c0_i32_0 = arith.constant 0 : i32
    return %arg0, %arg1, %c0_i32 : i32, i32, i32
  }
  func.func @transform_1(%arg0: i32, %arg1: i32) -> (i32, i32, i32) {
    %c0_i32 = arith.constant 0 : i32
    %c0_i32_0 = arith.constant 0 : i32
    %c0_i32_1 = arith.constant 0 : i32
    return %arg0, %c0_i32, %c0_i32_0 : i32, i32, i32
  }
  func.func @transform_2(%arg0: i32, %arg1: i32) -> (i32, i32) {
    %c0_i32 = arith.constant 0 : i32
    %c0_i32_0 = arith.constant 0 : i32
    %c0_i32_1 = arith.constant 0 : i32
    return %c0_i32, %c0_i32_0 : i32, i32
  }
  func.func @transform_3(%arg0: i32, %arg1: i32) -> (i32, i32, i32) {
    %c0_i32 = arith.constant 0 : i32
    %c0_i32_0 = arith.constant 0 : i32
    return %arg0, %arg1, %c0_i32 : i32, i32, i32
  }
}

module attributes {stable_mosaic.version = 11 : i64} {
  func.func @_bn_stats_kernel(%arg0: i32, %arg1: memref<32x32xbf16, #tpu.memory_space<vmem>>, %arg2: memref<2x32xf32, #tpu.memory_space<vmem>>) attributes {dimension_semantics = [#tpu.dimension_semantics<arbitrary>], iteration_bounds = array<i64: 1>, scalar_prefetch = 0 : i64, scratch_operands = 0 : i64, tpu.core_type = #tpu.core_type<tc>, window_params = [{transform_indices = @transform_0, window_bounds = array<i64: 32, 32>}, {pipeline_mode = #tpu.pipeline_mode<synchronous>, transform_indices = @transform_1, window_bounds = array<i64: 2, 32>}]} {
    %c0_i32 = arith.constant 0 : i32
    %0 = arith.cmpi eq, %arg0, %c0_i32 : i32
    %1 = arith.extui %0 : i1 to i32
    %c0_i32_0 = arith.constant 0 : i32
    %2 = arith.cmpi ne, %1, %c0_i32_0 : i32
    scf.if %2 {
      %cst_10 = arith.constant 0.000000e+00 : f32
      %16 = vector.broadcast %cst_10 : f32 to vector<2x32xf32>
      %c0_11 = arith.constant 0 : index
      %c0_12 = arith.constant 0 : index
      %17 = vector.load %arg2[%c0_11, %c0_12] : memref<2x32xf32, #tpu.memory_space<vmem>>, vector<2x32xf32>
      tpu.vector_store %arg2[%c0_11, %c0_12], %16 {strides = array<i32>} : memref<2x32xf32, #tpu.memory_space<vmem>>, vector<2x32xf32>,
    } else {
    }
    %c0 = arith.constant 0 : index
    %c0_1 = arith.constant 0 : index
    %3 = vector.load %arg1[%c0, %c0_1] : memref<32x32xbf16, #tpu.memory_space<vmem>>, vector<32x32xbf16>
    %4 = arith.extf %3 : vector<32x32xbf16> to vector<32x32xf32>
    %c0_2 = arith.constant 0 : index
    %c0_3 = arith.constant 0 : index
    %5 = vector.load %arg2[%c0_2, %c0_3] : memref<2x32xf32, #tpu.memory_space<vmem>>, vector<1x32xf32>
    %cst = arith.constant dense<0.000000e+00> : vector<32xf32>
    %6 = vector.multi_reduction <add>, %4, %cst [0] : vector<32x32xf32> to vector<32xf32>
    %7 = vector.shape_cast %6 : vector<32xf32> to vector<1x32xf32>
    %8 = arith.addf %5, %7 : vector<1x32xf32>
    %c0_4 = arith.constant 0 : index
    %c0_5 = arith.constant 0 : index
    %9 = vector.load %arg2[%c0_4, %c0_5] : memref<2x32xf32, #tpu.memory_space<vmem>>, vector<1x32xf32>
    tpu.vector_store %arg2[%c0_4, %c0_5], %8 {strides = array<i32>} : memref<2x32xf32, #tpu.memory_space<vmem>>, vector<1x32xf32>,
    %c1 = arith.constant 1 : index
    %c0_6 = arith.constant 0 : index
    %10 = vector.load %arg2[%c1, %c0_6] : memref<2x32xf32, #tpu.memory_space<vmem>>, vector<1x32xf32>
    %11 = arith.mulf %4, %4 : vector<32x32xf32>
    %cst_7 = arith.constant dense<0.000000e+00> : vector<32xf32>
    %12 = vector.multi_reduction <add>, %11, %cst_7 [0] : vector<32x32xf32> to vector<32xf32>
    %13 = vector.shape_cast %12 : vector<32xf32> to vector<1x32xf32>
    %14 = arith.addf %10, %13 : vector<1x32xf32>
    %c1_8 = arith.constant 1 : index
    %c0_9 = arith.constant 0 : index
    %15 = vector.load %arg2[%c1_8, %c0_9] : memref<2x32xf32, #tpu.memory_space<vmem>>, vector<1x32xf32>
    tpu.vector_store %arg2[%c1_8, %c0_9], %14 {strides = array<i32>} : memref<2x32xf32, #tpu.memory_space<vmem>>, vector<1x32xf32>,
    return
  }
  func.func @transform_0(%arg0: i32) -> (i32, i32) {
    %c0_i32 = arith.constant 0 : i32
    %c0_i32_0 = arith.constant 0 : i32
    return %arg0, %c0_i32 : i32, i32
  }
  func.func @transform_1(%arg0: i32) -> (i32, i32) {
    %c0_i32 = arith.constant 0 : i32
    %c0_i32_0 = arith.constant 0 : i32
    %c0_i32_1 = arith.constant 0 : i32
    return %c0_i32, %c0_i32_0 : i32, i32
  }
}

module attributes {stable_mosaic.version = 11 : i64} {
  func.func @_bn_apply_kernel(%arg0: i32, %arg1: memref<32x32xbf16, #tpu.memory_space<vmem>>, %arg2: memref<2x32xf32, #tpu.memory_space<vmem>>, %arg3: memref<1x32xf32, #tpu.memory_space<vmem>>, %arg4: memref<1x32xf32, #tpu.memory_space<vmem>>, %arg5: memref<32x32xbf16, #tpu.memory_space<vmem>>) attributes {dimension_semantics = [#tpu.dimension_semantics<parallel>], iteration_bounds = array<i64: 1>, scalar_prefetch = 0 : i64, scratch_operands = 0 : i64, tpu.core_type = #tpu.core_type<tc>, window_params = [{transform_indices = @transform_0, window_bounds = array<i64: 32, 32>}, {pipeline_mode = #tpu.pipeline_mode<synchronous>, transform_indices = @transform_1, window_bounds = array<i64: 2, 32>}, {pipeline_mode = #tpu.pipeline_mode<synchronous>, transform_indices = @transform_2, window_bounds = array<i64: 1, 32>}, {pipeline_mode = #tpu.pipeline_mode<synchronous>, transform_indices = @transform_3, window_bounds = array<i64: 1, 32>}, {transform_indices = @transform_4, window_bounds = array<i64: 32, 32>}]} {
    %c0 = arith.constant 0 : index
    %c0_0 = arith.constant 0 : index
    %0 = vector.load %arg1[%c0, %c0_0] : memref<32x32xbf16, #tpu.memory_space<vmem>>, vector<32x32xbf16>
    %1 = arith.extf %0 : vector<32x32xbf16> to vector<32x32xf32>
    %c0_1 = arith.constant 0 : index
    %c0_2 = arith.constant 0 : index
    %2 = vector.load %arg2[%c0_1, %c0_2] : memref<2x32xf32, #tpu.memory_space<vmem>>, vector<1x32xf32>
    %cst = arith.constant 3.125000e-02 : f32
    %3 = vector.broadcast %cst : f32 to vector<1x32xf32>
    %4 = arith.mulf %2, %3 : vector<1x32xf32>
    %c1 = arith.constant 1 : index
    %c0_3 = arith.constant 0 : index
    %5 = vector.load %arg2[%c1, %c0_3] : memref<2x32xf32, #tpu.memory_space<vmem>>, vector<1x32xf32>
    %cst_4 = arith.constant 3.125000e-02 : f32
    %6 = vector.broadcast %cst_4 : f32 to vector<1x32xf32>
    %7 = arith.mulf %5, %6 : vector<1x32xf32>
    %8 = arith.mulf %4, %4 : vector<1x32xf32>
    %9 = arith.subf %7, %8 : vector<1x32xf32>
    %cst_5 = arith.constant 9.99999974E-6 : f32
    %10 = vector.broadcast %cst_5 : f32 to vector<1x32xf32>
    %11 = arith.addf %9, %10 : vector<1x32xf32>
    %12 = math.rsqrt %11 : vector<1x32xf32>
    %13 = vector.broadcast %4 : vector<1x32xf32> to vector<32x32xf32>
    %14 = arith.subf %1, %13 : vector<32x32xf32>
    %15 = vector.broadcast %12 : vector<1x32xf32> to vector<32x32xf32>
    %16 = arith.mulf %14, %15 : vector<32x32xf32>
    %c0_6 = arith.constant 0 : index
    %c0_7 = arith.constant 0 : index
    %17 = vector.load %arg3[%c0_6, %c0_7] : memref<1x32xf32, #tpu.memory_space<vmem>>, vector<1x32xf32>
    %18 = vector.broadcast %17 : vector<1x32xf32> to vector<32x32xf32>
    %19 = arith.mulf %16, %18 : vector<32x32xf32>
    %c0_8 = arith.constant 0 : index
    %c0_9 = arith.constant 0 : index
    %20 = vector.load %arg4[%c0_8, %c0_9] : memref<1x32xf32, #tpu.memory_space<vmem>>, vector<1x32xf32>
    %21 = vector.broadcast %20 : vector<1x32xf32> to vector<32x32xf32>
    %22 = arith.addf %19, %21 : vector<32x32xf32>
    %23 = arith.truncf %22 : vector<32x32xf32> to vector<32x32xbf16>
    %c0_10 = arith.constant 0 : index
    %c0_11 = arith.constant 0 : index
    %24 = vector.load %arg5[%c0_10, %c0_11] : memref<32x32xbf16, #tpu.memory_space<vmem>>, vector<32x32xbf16>
    tpu.vector_store %arg5[%c0_10, %c0_11], %23 {strides = array<i32>} : memref<32x32xbf16, #tpu.memory_space<vmem>>, vector<32x32xbf16>,
    return
  }
  func.func @transform_0(%arg0: i32) -> (i32, i32) {
    %c0_i32 = arith.constant 0 : i32
    %c0_i32_0 = arith.constant 0 : i32
    return %arg0, %c0_i32 : i32, i32
  }
  func.func @transform_1(%arg0: i32) -> (i32, i32) {
    %c0_i32 = arith.constant 0 : i32
    %c0_i32_0 = arith.constant 0 : i32
    %c0_i32_1 = arith.constant 0 : i32
    return %c0_i32, %c0_i32_0 : i32, i32
  }
  func.func @transform_2(%arg0: i32) -> (i32, i32) {
    %c0_i32 = arith.constant 0 : i32
    %c0_i32_0 = arith.constant 0 : i32
    %c0_i32_1 = arith.constant 0 : i32
    return %c0_i32, %c0_i32_0 : i32, i32
  }
  func.func @transform_3(%arg0: i32) -> (i32, i32) {
    %c0_i32 = arith.constant 0 : i32
    %c0_i32_0 = arith.constant 0 : i32
    %c0_i32_1 = arith.constant 0 : i32
    return %c0_i32, %c0_i32_0 : i32, i32
  }
  func.func @transform_4(%arg0: i32) -> (i32, i32) {
    %c0_i32 = arith.constant 0 : i32
    %c0_i32_0 = arith.constant 0 : i32
    return %arg0, %c0_i32 : i32, i32
  }
}

module attributes {stable_mosaic.version = 11 : i64} {
  func.func @_matmul_bias_act_kernel(%arg0: i32, %arg1: i32, %arg2: memref<1x32x128xbf16, #tpu.memory_space<vmem>>, %arg3: memref<1x128x64xbf16, #tpu.memory_space<vmem>>, %arg4: memref<1x64xf32, #tpu.memory_space<vmem>>, %arg5: memref<1x32x64xbf16, #tpu.memory_space<vmem>>) attributes {dimension_semantics = [#tpu.dimension_semantics<parallel>, #tpu.dimension_semantics<parallel>], iteration_bounds = array<i64: 4, 1>, scalar_prefetch = 0 : i64, scratch_operands = 0 : i64, tpu.core_type = #tpu.core_type<tc>, window_params = [{transform_indices = @transform_0, window_bounds = array<i64: 1, 32, 128>}, {transform_indices = @transform_1, window_bounds = array<i64: 1, 128, 64>}, {pipeline_mode = #tpu.pipeline_mode<synchronous>, transform_indices = @transform_2, window_bounds = array<i64: 1, 64>}, {transform_indices = @transform_3, window_bounds = array<i64: 1, 32, 64>}]} {
    %c0 = arith.constant 0 : index
    %c0_0 = arith.constant 0 : index
    %c0_1 = arith.constant 0 : index
    %0 = vector.load %arg2[%c0, %c0_0, %c0_1] : memref<1x32x128xbf16, #tpu.memory_space<vmem>>, vector<1x32x128xbf16>
    %1 = vector.shape_cast %0 : vector<1x32x128xbf16> to vector<32x128xbf16>
    %c0_2 = arith.constant 0 : index
    %c0_3 = arith.constant 0 : index
    %c0_4 = arith.constant 0 : index
    %2 = vector.load %arg3[%c0_2, %c0_3, %c0_4] : memref<1x128x64xbf16, #tpu.memory_space<vmem>>, vector<1x128x64xbf16>
    %3 = vector.shape_cast %2 : vector<1x128x64xbf16> to vector<128x64xbf16>
    %cst = arith.constant dense<0.000000e+00> : vector<32x64xf32>
    %4 = tpu.matmul %1, %3, %cst {dimension_numbers = #tpu.dot_dimension_numbers<[1], [0], [0], [1], [0, 0, 1, 1], [], []>} : vector<32x128xbf16>, vector<128x64xbf16>, vector<32x64xf32> -> vector<32x64xf32>
    %c0_5 = arith.constant 0 : index
    %c0_6 = arith.constant 0 : index
    %5 = vector.load %arg4[%c0_5, %c0_6] : memref<1x64xf32, #tpu.memory_space<vmem>>, vector<1x64xf32>
    %6 = vector.broadcast %5 : vector<1x64xf32> to vector<32x64xf32>
    %7 = arith.addf %4, %6 : vector<32x64xf32>
    %cst_7 = arith.constant 0.000000e+00 : f32
    %8 = vector.broadcast %cst_7 : f32 to vector<32x64xf32>
    %9 = arith.maximumf %7, %8 : vector<32x64xf32>
    %10 = arith.truncf %9 : vector<32x64xf32> to vector<32x64xbf16>
    %c0_8 = arith.constant 0 : index
    %c0_9 = arith.constant 0 : index
    %c0_10 = arith.constant 0 : index
    %11 = vector.load %arg5[%c0_8, %c0_9, %c0_10] : memref<1x32x64xbf16, #tpu.memory_space<vmem>>, vector<1x32x64xbf16>
    %12 = vector.shape_cast %11 : vector<1x32x64xbf16> to vector<32x64xbf16>
    %13 = vector.shape_cast %10 : vector<32x64xbf16> to vector<1x32x64xbf16>
    tpu.vector_store %arg5[%c0_8, %c0_9, %c0_10], %13 {strides = array<i32>} : memref<1x32x64xbf16, #tpu.memory_space<vmem>>, vector<1x32x64xbf16>,
    return
  }
  func.func @transform_0(%arg0: i32, %arg1: i32) -> (i32, i32, i32) {
    %c0_i32 = arith.constant 0 : i32
    %c0_i32_0 = arith.constant 0 : i32
    return %arg0, %arg1, %c0_i32 : i32, i32, i32
  }
  func.func @transform_1(%arg0: i32, %arg1: i32) -> (i32, i32, i32) {
    %c0_i32 = arith.constant 0 : i32
    %c0_i32_0 = arith.constant 0 : i32
    %c0_i32_1 = arith.constant 0 : i32
    return %arg0, %c0_i32, %c0_i32_0 : i32, i32, i32
  }
  func.func @transform_2(%arg0: i32, %arg1: i32) -> (i32, i32) {
    %c0_i32 = arith.constant 0 : i32
    %c0_i32_0 = arith.constant 0 : i32
    %c0_i32_1 = arith.constant 0 : i32
    return %c0_i32, %c0_i32_0 : i32, i32
  }
  func.func @transform_3(%arg0: i32, %arg1: i32) -> (i32, i32, i32) {
    %c0_i32 = arith.constant 0 : i32
    %c0_i32_0 = arith.constant 0 : i32
    return %arg0, %arg1, %c0_i32 : i32, i32, i32
  }
}

module attributes {stable_mosaic.version = 11 : i64} {
  func.func @_bn_stats_kernel(%arg0: i32, %arg1: memref<128x64xbf16, #tpu.memory_space<vmem>>, %arg2: memref<2x64xf32, #tpu.memory_space<vmem>>) attributes {dimension_semantics = [#tpu.dimension_semantics<arbitrary>], iteration_bounds = array<i64: 1>, scalar_prefetch = 0 : i64, scratch_operands = 0 : i64, tpu.core_type = #tpu.core_type<tc>, window_params = [{transform_indices = @transform_0, window_bounds = array<i64: 128, 64>}, {pipeline_mode = #tpu.pipeline_mode<synchronous>, transform_indices = @transform_1, window_bounds = array<i64: 2, 64>}]} {
    %c0_i32 = arith.constant 0 : i32
    %0 = arith.cmpi eq, %arg0, %c0_i32 : i32
    %1 = arith.extui %0 : i1 to i32
    %c0_i32_0 = arith.constant 0 : i32
    %2 = arith.cmpi ne, %1, %c0_i32_0 : i32
    scf.if %2 {
      %cst_10 = arith.constant 0.000000e+00 : f32
      %16 = vector.broadcast %cst_10 : f32 to vector<2x64xf32>
      %c0_11 = arith.constant 0 : index
      %c0_12 = arith.constant 0 : index
      %17 = vector.load %arg2[%c0_11, %c0_12] : memref<2x64xf32, #tpu.memory_space<vmem>>, vector<2x64xf32>
      tpu.vector_store %arg2[%c0_11, %c0_12], %16 {strides = array<i32>} : memref<2x64xf32, #tpu.memory_space<vmem>>, vector<2x64xf32>,
    } else {
    }
    %c0 = arith.constant 0 : index
    %c0_1 = arith.constant 0 : index
    %3 = vector.load %arg1[%c0, %c0_1] : memref<128x64xbf16, #tpu.memory_space<vmem>>, vector<128x64xbf16>
    %4 = arith.extf %3 : vector<128x64xbf16> to vector<128x64xf32>
    %c0_2 = arith.constant 0 : index
    %c0_3 = arith.constant 0 : index
    %5 = vector.load %arg2[%c0_2, %c0_3] : memref<2x64xf32, #tpu.memory_space<vmem>>, vector<1x64xf32>
    %cst = arith.constant dense<0.000000e+00> : vector<64xf32>
    %6 = vector.multi_reduction <add>, %4, %cst [0] : vector<128x64xf32> to vector<64xf32>
    %7 = vector.shape_cast %6 : vector<64xf32> to vector<1x64xf32>
    %8 = arith.addf %5, %7 : vector<1x64xf32>
    %c0_4 = arith.constant 0 : index
    %c0_5 = arith.constant 0 : index
    %9 = vector.load %arg2[%c0_4, %c0_5] : memref<2x64xf32, #tpu.memory_space<vmem>>, vector<1x64xf32>
    tpu.vector_store %arg2[%c0_4, %c0_5], %8 {strides = array<i32>} : memref<2x64xf32, #tpu.memory_space<vmem>>, vector<1x64xf32>,
    %c1 = arith.constant 1 : index
    %c0_6 = arith.constant 0 : index
    %10 = vector.load %arg2[%c1, %c0_6] : memref<2x64xf32, #tpu.memory_space<vmem>>, vector<1x64xf32>
    %11 = arith.mulf %4, %4 : vector<128x64xf32>
    %cst_7 = arith.constant dense<0.000000e+00> : vector<64xf32>
    %12 = vector.multi_reduction <add>, %11, %cst_7 [0] : vector<128x64xf32> to vector<64xf32>
    %13 = vector.shape_cast %12 : vector<64xf32> to vector<1x64xf32>
    %14 = arith.addf %10, %13 : vector<1x64xf32>
    %c1_8 = arith.constant 1 : index
    %c0_9 = arith.constant 0 : index
    %15 = vector.load %arg2[%c1_8, %c0_9] : memref<2x64xf32, #tpu.memory_space<vmem>>, vector<1x64xf32>
    tpu.vector_store %arg2[%c1_8, %c0_9], %14 {strides = array<i32>} : memref<2x64xf32, #tpu.memory_space<vmem>>, vector<1x64xf32>,
    return
  }
  func.func @transform_0(%arg0: i32) -> (i32, i32) {
    %c0_i32 = arith.constant 0 : i32
    %c0_i32_0 = arith.constant 0 : i32
    return %arg0, %c0_i32 : i32, i32
  }
  func.func @transform_1(%arg0: i32) -> (i32, i32) {
    %c0_i32 = arith.constant 0 : i32
    %c0_i32_0 = arith.constant 0 : i32
    %c0_i32_1 = arith.constant 0 : i32
    return %c0_i32, %c0_i32_0 : i32, i32
  }
}

module attributes {stable_mosaic.version = 11 : i64} {
  func.func @_bn_apply_kernel(%arg0: i32, %arg1: memref<128x64xbf16, #tpu.memory_space<vmem>>, %arg2: memref<2x64xf32, #tpu.memory_space<vmem>>, %arg3: memref<1x64xf32, #tpu.memory_space<vmem>>, %arg4: memref<1x64xf32, #tpu.memory_space<vmem>>, %arg5: memref<128x64xbf16, #tpu.memory_space<vmem>>) attributes {dimension_semantics = [#tpu.dimension_semantics<parallel>], iteration_bounds = array<i64: 1>, scalar_prefetch = 0 : i64, scratch_operands = 0 : i64, tpu.core_type = #tpu.core_type<tc>, window_params = [{transform_indices = @transform_0, window_bounds = array<i64: 128, 64>}, {pipeline_mode = #tpu.pipeline_mode<synchronous>, transform_indices = @transform_1, window_bounds = array<i64: 2, 64>}, {pipeline_mode = #tpu.pipeline_mode<synchronous>, transform_indices = @transform_2, window_bounds = array<i64: 1, 64>}, {pipeline_mode = #tpu.pipeline_mode<synchronous>, transform_indices = @transform_3, window_bounds = array<i64: 1, 64>}, {transform_indices = @transform_4, window_bounds = array<i64: 128, 64>}]} {
    %c0 = arith.constant 0 : index
    %c0_0 = arith.constant 0 : index
    %0 = vector.load %arg1[%c0, %c0_0] : memref<128x64xbf16, #tpu.memory_space<vmem>>, vector<128x64xbf16>
    %1 = arith.extf %0 : vector<128x64xbf16> to vector<128x64xf32>
    %c0_1 = arith.constant 0 : index
    %c0_2 = arith.constant 0 : index
    %2 = vector.load %arg2[%c0_1, %c0_2] : memref<2x64xf32, #tpu.memory_space<vmem>>, vector<1x64xf32>
    %cst = arith.constant 7.812500e-03 : f32
    %3 = vector.broadcast %cst : f32 to vector<1x64xf32>
    %4 = arith.mulf %2, %3 : vector<1x64xf32>
    %c1 = arith.constant 1 : index
    %c0_3 = arith.constant 0 : index
    %5 = vector.load %arg2[%c1, %c0_3] : memref<2x64xf32, #tpu.memory_space<vmem>>, vector<1x64xf32>
    %cst_4 = arith.constant 7.812500e-03 : f32
    %6 = vector.broadcast %cst_4 : f32 to vector<1x64xf32>
    %7 = arith.mulf %5, %6 : vector<1x64xf32>
    %8 = arith.mulf %4, %4 : vector<1x64xf32>
    %9 = arith.subf %7, %8 : vector<1x64xf32>
    %cst_5 = arith.constant 9.99999974E-6 : f32
    %10 = vector.broadcast %cst_5 : f32 to vector<1x64xf32>
    %11 = arith.addf %9, %10 : vector<1x64xf32>
    %12 = math.rsqrt %11 : vector<1x64xf32>
    %13 = vector.broadcast %4 : vector<1x64xf32> to vector<128x64xf32>
    %14 = arith.subf %1, %13 : vector<128x64xf32>
    %15 = vector.broadcast %12 : vector<1x64xf32> to vector<128x64xf32>
    %16 = arith.mulf %14, %15 : vector<128x64xf32>
    %c0_6 = arith.constant 0 : index
    %c0_7 = arith.constant 0 : index
    %17 = vector.load %arg3[%c0_6, %c0_7] : memref<1x64xf32, #tpu.memory_space<vmem>>, vector<1x64xf32>
    %18 = vector.broadcast %17 : vector<1x64xf32> to vector<128x64xf32>
    %19 = arith.mulf %16, %18 : vector<128x64xf32>
    %c0_8 = arith.constant 0 : index
    %c0_9 = arith.constant 0 : index
    %20 = vector.load %arg4[%c0_8, %c0_9] : memref<1x64xf32, #tpu.memory_space<vmem>>, vector<1x64xf32>
    %21 = vector.broadcast %20 : vector<1x64xf32> to vector<128x64xf32>
    %22 = arith.addf %19, %21 : vector<128x64xf32>
    %23 = arith.truncf %22 : vector<128x64xf32> to vector<128x64xbf16>
    %c0_10 = arith.constant 0 : index
    %c0_11 = arith.constant 0 : index
    %24 = vector.load %arg5[%c0_10, %c0_11] : memref<128x64xbf16, #tpu.memory_space<vmem>>, vector<128x64xbf16>
    tpu.vector_store %arg5[%c0_10, %c0_11], %23 {strides = array<i32>} : memref<128x64xbf16, #tpu.memory_space<vmem>>, vector<128x64xbf16>,
    return
  }
  func.func @transform_0(%arg0: i32) -> (i32, i32) {
    %c0_i32 = arith.constant 0 : i32
    %c0_i32_0 = arith.constant 0 : i32
    return %arg0, %c0_i32 : i32, i32
  }
  func.func @transform_1(%arg0: i32) -> (i32, i32) {
    %c0_i32 = arith.constant 0 : i32
    %c0_i32_0 = arith.constant 0 : i32
    %c0_i32_1 = arith.constant 0 : i32
    return %c0_i32, %c0_i32_0 : i32, i32
  }
  func.func @transform_2(%arg0: i32) -> (i32, i32) {
    %c0_i32 = arith.constant 0 : i32
    %c0_i32_0 = arith.constant 0 : i32
    %c0_i32_1 = arith.constant 0 : i32
    return %c0_i32, %c0_i32_0 : i32, i32
  }
  func.func @transform_3(%arg0: i32) -> (i32, i32) {
    %c0_i32 = arith.constant 0 : i32
    %c0_i32_0 = arith.constant 0 : i32
    %c0_i32_1 = arith.constant 0 : i32
    return %c0_i32, %c0_i32_0 : i32, i32
  }
  func.func @transform_4(%arg0: i32) -> (i32, i32) {
    %c0_i32 = arith.constant 0 : i32
    %c0_i32_0 = arith.constant 0 : i32
    return %arg0, %c0_i32 : i32, i32
  }
}

module attributes {stable_mosaic.version = 11 : i64} {
  func.func @_matmul_bias_act_kernel(%arg0: i32, %arg1: i32, %arg2: memref<1x128x256xbf16, #tpu.memory_space<vmem>>, %arg3: memref<1x256x128xbf16, #tpu.memory_space<vmem>>, %arg4: memref<1x128xf32, #tpu.memory_space<vmem>>, %arg5: memref<1x128x128xbf16, #tpu.memory_space<vmem>>) attributes {dimension_semantics = [#tpu.dimension_semantics<parallel>, #tpu.dimension_semantics<parallel>], iteration_bounds = array<i64: 4, 1>, scalar_prefetch = 0 : i64, scratch_operands = 0 : i64, tpu.core_type = #tpu.core_type<tc>, window_params = [{transform_indices = @transform_0, window_bounds = array<i64: 1, 128, 256>}, {transform_indices = @transform_1, window_bounds = array<i64: 1, 256, 128>}, {pipeline_mode = #tpu.pipeline_mode<synchronous>, transform_indices = @transform_2, window_bounds = array<i64: 1, 128>}, {transform_indices = @transform_3, window_bounds = array<i64: 1, 128, 128>}]} {
    %c0 = arith.constant 0 : index
    %c0_0 = arith.constant 0 : index
    %c0_1 = arith.constant 0 : index
    %0 = vector.load %arg2[%c0, %c0_0, %c0_1] : memref<1x128x256xbf16, #tpu.memory_space<vmem>>, vector<1x128x256xbf16>
    %1 = vector.shape_cast %0 : vector<1x128x256xbf16> to vector<128x256xbf16>
    %c0_2 = arith.constant 0 : index
    %c0_3 = arith.constant 0 : index
    %c0_4 = arith.constant 0 : index
    %2 = vector.load %arg3[%c0_2, %c0_3, %c0_4] : memref<1x256x128xbf16, #tpu.memory_space<vmem>>, vector<1x256x128xbf16>
    %3 = vector.shape_cast %2 : vector<1x256x128xbf16> to vector<256x128xbf16>
    %cst = arith.constant dense<0.000000e+00> : vector<128x128xf32>
    %4 = tpu.matmul %1, %3, %cst {dimension_numbers = #tpu.dot_dimension_numbers<[1], [0], [0], [1], [0, 0, 1, 1], [], []>} : vector<128x256xbf16>, vector<256x128xbf16>, vector<128x128xf32> -> vector<128x128xf32>
    %c0_5 = arith.constant 0 : index
    %c0_6 = arith.constant 0 : index
    %5 = vector.load %arg4[%c0_5, %c0_6] : memref<1x128xf32, #tpu.memory_space<vmem>>, vector<1x128xf32>
    %6 = vector.broadcast %5 : vector<1x128xf32> to vector<128x128xf32>
    %7 = arith.addf %4, %6 : vector<128x128xf32>
    %cst_7 = arith.constant 0.000000e+00 : f32
    %8 = vector.broadcast %cst_7 : f32 to vector<128x128xf32>
    %9 = arith.maximumf %7, %8 : vector<128x128xf32>
    %10 = arith.truncf %9 : vector<128x128xf32> to vector<128x128xbf16>
    %c0_8 = arith.constant 0 : index
    %c0_9 = arith.constant 0 : index
    %c0_10 = arith.constant 0 : index
    %11 = vector.load %arg5[%c0_8, %c0_9, %c0_10] : memref<1x128x128xbf16, #tpu.memory_space<vmem>>, vector<1x128x128xbf16>
    %12 = vector.shape_cast %11 : vector<1x128x128xbf16> to vector<128x128xbf16>
    %13 = vector.shape_cast %10 : vector<128x128xbf16> to vector<1x128x128xbf16>
    tpu.vector_store %arg5[%c0_8, %c0_9, %c0_10], %13 {strides = array<i32>} : memref<1x128x128xbf16, #tpu.memory_space<vmem>>, vector<1x128x128xbf16>,
    return
  }
  func.func @transform_0(%arg0: i32, %arg1: i32) -> (i32, i32, i32) {
    %c0_i32 = arith.constant 0 : i32
    %c0_i32_0 = arith.constant 0 : i32
    return %arg0, %arg1, %c0_i32 : i32, i32, i32
  }
  func.func @transform_1(%arg0: i32, %arg1: i32) -> (i32, i32, i32) {
    %c0_i32 = arith.constant 0 : i32
    %c0_i32_0 = arith.constant 0 : i32
    %c0_i32_1 = arith.constant 0 : i32
    return %arg0, %c0_i32, %c0_i32_0 : i32, i32, i32
  }
  func.func @transform_2(%arg0: i32, %arg1: i32) -> (i32, i32) {
    %c0_i32 = arith.constant 0 : i32
    %c0_i32_0 = arith.constant 0 : i32
    %c0_i32_1 = arith.constant 0 : i32
    return %c0_i32, %c0_i32_0 : i32, i32
  }
  func.func @transform_3(%arg0: i32, %arg1: i32) -> (i32, i32, i32) {
    %c0_i32 = arith.constant 0 : i32
    %c0_i32_0 = arith.constant 0 : i32
    return %arg0, %arg1, %c0_i32 : i32, i32, i32
  }
}

module attributes {stable_mosaic.version = 11 : i64} {
  func.func @_bn_stats_kernel(%arg0: i32, %arg1: memref<512x128xbf16, #tpu.memory_space<vmem>>, %arg2: memref<2x128xf32, #tpu.memory_space<vmem>>) attributes {dimension_semantics = [#tpu.dimension_semantics<arbitrary>], iteration_bounds = array<i64: 1>, scalar_prefetch = 0 : i64, scratch_operands = 0 : i64, tpu.core_type = #tpu.core_type<tc>, window_params = [{transform_indices = @transform_0, window_bounds = array<i64: 512, 128>}, {pipeline_mode = #tpu.pipeline_mode<synchronous>, transform_indices = @transform_1, window_bounds = array<i64: 2, 128>}]} {
    %c0_i32 = arith.constant 0 : i32
    %0 = arith.cmpi eq, %arg0, %c0_i32 : i32
    %1 = arith.extui %0 : i1 to i32
    %c0_i32_0 = arith.constant 0 : i32
    %2 = arith.cmpi ne, %1, %c0_i32_0 : i32
    scf.if %2 {
      %cst_10 = arith.constant 0.000000e+00 : f32
      %16 = vector.broadcast %cst_10 : f32 to vector<2x128xf32>
      %c0_11 = arith.constant 0 : index
      %c0_12 = arith.constant 0 : index
      %17 = vector.load %arg2[%c0_11, %c0_12] : memref<2x128xf32, #tpu.memory_space<vmem>>, vector<2x128xf32>
      tpu.vector_store %arg2[%c0_11, %c0_12], %16 {strides = array<i32>} : memref<2x128xf32, #tpu.memory_space<vmem>>, vector<2x128xf32>,
    } else {
    }
    %c0 = arith.constant 0 : index
    %c0_1 = arith.constant 0 : index
    %3 = vector.load %arg1[%c0, %c0_1] : memref<512x128xbf16, #tpu.memory_space<vmem>>, vector<512x128xbf16>
    %4 = arith.extf %3 : vector<512x128xbf16> to vector<512x128xf32>
    %c0_2 = arith.constant 0 : index
    %c0_3 = arith.constant 0 : index
    %5 = vector.load %arg2[%c0_2, %c0_3] : memref<2x128xf32, #tpu.memory_space<vmem>>, vector<1x128xf32>
    %cst = arith.constant dense<0.000000e+00> : vector<128xf32>
    %6 = vector.multi_reduction <add>, %4, %cst [0] : vector<512x128xf32> to vector<128xf32>
    %7 = vector.shape_cast %6 : vector<128xf32> to vector<1x128xf32>
    %8 = arith.addf %5, %7 : vector<1x128xf32>
    %c0_4 = arith.constant 0 : index
    %c0_5 = arith.constant 0 : index
    %9 = vector.load %arg2[%c0_4, %c0_5] : memref<2x128xf32, #tpu.memory_space<vmem>>, vector<1x128xf32>
    tpu.vector_store %arg2[%c0_4, %c0_5], %8 {strides = array<i32>} : memref<2x128xf32, #tpu.memory_space<vmem>>, vector<1x128xf32>,
    %c1 = arith.constant 1 : index
    %c0_6 = arith.constant 0 : index
    %10 = vector.load %arg2[%c1, %c0_6] : memref<2x128xf32, #tpu.memory_space<vmem>>, vector<1x128xf32>
    %11 = arith.mulf %4, %4 : vector<512x128xf32>
    %cst_7 = arith.constant dense<0.000000e+00> : vector<128xf32>
    %12 = vector.multi_reduction <add>, %11, %cst_7 [0] : vector<512x128xf32> to vector<128xf32>
    %13 = vector.shape_cast %12 : vector<128xf32> to vector<1x128xf32>
    %14 = arith.addf %10, %13 : vector<1x128xf32>
    %c1_8 = arith.constant 1 : index
    %c0_9 = arith.constant 0 : index
    %15 = vector.load %arg2[%c1_8, %c0_9] : memref<2x128xf32, #tpu.memory_space<vmem>>, vector<1x128xf32>
    tpu.vector_store %arg2[%c1_8, %c0_9], %14 {strides = array<i32>} : memref<2x128xf32, #tpu.memory_space<vmem>>, vector<1x128xf32>,
    return
  }
  func.func @transform_0(%arg0: i32) -> (i32, i32) {
    %c0_i32 = arith.constant 0 : i32
    %c0_i32_0 = arith.constant 0 : i32
    return %arg0, %c0_i32 : i32, i32
  }
  func.func @transform_1(%arg0: i32) -> (i32, i32) {
    %c0_i32 = arith.constant 0 : i32
    %c0_i32_0 = arith.constant 0 : i32
    %c0_i32_1 = arith.constant 0 : i32
    return %c0_i32, %c0_i32_0 : i32, i32
  }
}

module attributes {stable_mosaic.version = 11 : i64} {
  func.func @_bn_apply_kernel(%arg0: i32, %arg1: memref<512x128xbf16, #tpu.memory_space<vmem>>, %arg2: memref<2x128xf32, #tpu.memory_space<vmem>>, %arg3: memref<1x128xf32, #tpu.memory_space<vmem>>, %arg4: memref<1x128xf32, #tpu.memory_space<vmem>>, %arg5: memref<512x128xbf16, #tpu.memory_space<vmem>>) attributes {dimension_semantics = [#tpu.dimension_semantics<parallel>], iteration_bounds = array<i64: 1>, scalar_prefetch = 0 : i64, scratch_operands = 0 : i64, tpu.core_type = #tpu.core_type<tc>, window_params = [{transform_indices = @transform_0, window_bounds = array<i64: 512, 128>}, {pipeline_mode = #tpu.pipeline_mode<synchronous>, transform_indices = @transform_1, window_bounds = array<i64: 2, 128>}, {pipeline_mode = #tpu.pipeline_mode<synchronous>, transform_indices = @transform_2, window_bounds = array<i64: 1, 128>}, {pipeline_mode = #tpu.pipeline_mode<synchronous>, transform_indices = @transform_3, window_bounds = array<i64: 1, 128>}, {transform_indices = @transform_4, window_bounds = array<i64: 512, 128>}]} {
    %c0 = arith.constant 0 : index
    %c0_0 = arith.constant 0 : index
    %0 = vector.load %arg1[%c0, %c0_0] : memref<512x128xbf16, #tpu.memory_space<vmem>>, vector<512x128xbf16>
    %1 = arith.extf %0 : vector<512x128xbf16> to vector<512x128xf32>
    %c0_1 = arith.constant 0 : index
    %c0_2 = arith.constant 0 : index
    %2 = vector.load %arg2[%c0_1, %c0_2] : memref<2x128xf32, #tpu.memory_space<vmem>>, vector<1x128xf32>
    %cst = arith.constant 0.001953125 : f32
    %3 = vector.broadcast %cst : f32 to vector<1x128xf32>
    %4 = arith.mulf %2, %3 : vector<1x128xf32>
    %c1 = arith.constant 1 : index
    %c0_3 = arith.constant 0 : index
    %5 = vector.load %arg2[%c1, %c0_3] : memref<2x128xf32, #tpu.memory_space<vmem>>, vector<1x128xf32>
    %cst_4 = arith.constant 0.001953125 : f32
    %6 = vector.broadcast %cst_4 : f32 to vector<1x128xf32>
    %7 = arith.mulf %5, %6 : vector<1x128xf32>
    %8 = arith.mulf %4, %4 : vector<1x128xf32>
    %9 = arith.subf %7, %8 : vector<1x128xf32>
    %cst_5 = arith.constant 9.99999974E-6 : f32
    %10 = vector.broadcast %cst_5 : f32 to vector<1x128xf32>
    %11 = arith.addf %9, %10 : vector<1x128xf32>
    %12 = math.rsqrt %11 : vector<1x128xf32>
    %13 = vector.broadcast %4 : vector<1x128xf32> to vector<512x128xf32>
    %14 = arith.subf %1, %13 : vector<512x128xf32>
    %15 = vector.broadcast %12 : vector<1x128xf32> to vector<512x128xf32>
    %16 = arith.mulf %14, %15 : vector<512x128xf32>
    %c0_6 = arith.constant 0 : index
    %c0_7 = arith.constant 0 : index
    %17 = vector.load %arg3[%c0_6, %c0_7] : memref<1x128xf32, #tpu.memory_space<vmem>>, vector<1x128xf32>
    %18 = vector.broadcast %17 : vector<1x128xf32> to vector<512x128xf32>
    %19 = arith.mulf %16, %18 : vector<512x128xf32>
    %c0_8 = arith.constant 0 : index
    %c0_9 = arith.constant 0 : index
    %20 = vector.load %arg4[%c0_8, %c0_9] : memref<1x128xf32, #tpu.memory_space<vmem>>, vector<1x128xf32>
    %21 = vector.broadcast %20 : vector<1x128xf32> to vector<512x128xf32>
    %22 = arith.addf %19, %21 : vector<512x128xf32>
    %23 = arith.truncf %22 : vector<512x128xf32> to vector<512x128xbf16>
    %c0_10 = arith.constant 0 : index
    %c0_11 = arith.constant 0 : index
    %24 = vector.load %arg5[%c0_10, %c0_11] : memref<512x128xbf16, #tpu.memory_space<vmem>>, vector<512x128xbf16>
    tpu.vector_store %arg5[%c0_10, %c0_11], %23 {strides = array<i32>} : memref<512x128xbf16, #tpu.memory_space<vmem>>, vector<512x128xbf16>,
    return
  }
  func.func @transform_0(%arg0: i32) -> (i32, i32) {
    %c0_i32 = arith.constant 0 : i32
    %c0_i32_0 = arith.constant 0 : i32
    return %arg0, %c0_i32 : i32, i32
  }
  func.func @transform_1(%arg0: i32) -> (i32, i32) {
    %c0_i32 = arith.constant 0 : i32
    %c0_i32_0 = arith.constant 0 : i32
    %c0_i32_1 = arith.constant 0 : i32
    return %c0_i32, %c0_i32_0 : i32, i32
  }
  func.func @transform_2(%arg0: i32) -> (i32, i32) {
    %c0_i32 = arith.constant 0 : i32
    %c0_i32_0 = arith.constant 0 : i32
    %c0_i32_1 = arith.constant 0 : i32
    return %c0_i32, %c0_i32_0 : i32, i32
  }
  func.func @transform_3(%arg0: i32) -> (i32, i32) {
    %c0_i32 = arith.constant 0 : i32
    %c0_i32_0 = arith.constant 0 : i32
    %c0_i32_1 = arith.constant 0 : i32
    return %c0_i32, %c0_i32_0 : i32, i32
  }
  func.func @transform_4(%arg0: i32) -> (i32, i32) {
    %c0_i32 = arith.constant 0 : i32
    %c0_i32_0 = arith.constant 0 : i32
    return %arg0, %c0_i32 : i32, i32
  }
}

module attributes {stable_mosaic.version = 11 : i64} {
  func.func @_matmul_bias_act_kernel(%arg0: i32, %arg1: i32, %arg2: memref<1x512x512xbf16, #tpu.memory_space<vmem>>, %arg3: memref<1x512x8xbf16, #tpu.memory_space<vmem>>, %arg4: memref<1x8xf32, #tpu.memory_space<vmem>>, %arg5: memref<1x512x8xf32, #tpu.memory_space<vmem>>) attributes {dimension_semantics = [#tpu.dimension_semantics<parallel>, #tpu.dimension_semantics<parallel>], iteration_bounds = array<i64: 4, 1>, scalar_prefetch = 0 : i64, scratch_operands = 0 : i64, tpu.core_type = #tpu.core_type<tc>, window_params = [{transform_indices = @transform_0, window_bounds = array<i64: 1, 512, 512>}, {transform_indices = @transform_1, window_bounds = array<i64: 1, 512, 8>}, {pipeline_mode = #tpu.pipeline_mode<synchronous>, transform_indices = @transform_2, window_bounds = array<i64: 1, 8>}, {transform_indices = @transform_3, window_bounds = array<i64: 1, 512, 8>}]} {
    %c0 = arith.constant 0 : index
    %c0_0 = arith.constant 0 : index
    %c0_1 = arith.constant 0 : index
    %0 = vector.load %arg2[%c0, %c0_0, %c0_1] : memref<1x512x512xbf16, #tpu.memory_space<vmem>>, vector<1x512x512xbf16>
    %1 = vector.shape_cast %0 : vector<1x512x512xbf16> to vector<512x512xbf16>
    %c0_2 = arith.constant 0 : index
    %c0_3 = arith.constant 0 : index
    %c0_4 = arith.constant 0 : index
    %2 = vector.load %arg3[%c0_2, %c0_3, %c0_4] : memref<1x512x8xbf16, #tpu.memory_space<vmem>>, vector<1x512x8xbf16>
    %3 = vector.shape_cast %2 : vector<1x512x8xbf16> to vector<512x8xbf16>
    %cst = arith.constant dense<0.000000e+00> : vector<512x8xf32>
    %4 = tpu.matmul %1, %3, %cst {dimension_numbers = #tpu.dot_dimension_numbers<[1], [0], [0], [1], [0, 0, 1, 1], [], []>} : vector<512x512xbf16>, vector<512x8xbf16>, vector<512x8xf32> -> vector<512x8xf32>
    %c0_5 = arith.constant 0 : index
    %c0_6 = arith.constant 0 : index
    %5 = vector.load %arg4[%c0_5, %c0_6] : memref<1x8xf32, #tpu.memory_space<vmem>>, vector<1x8xf32>
    %6 = vector.broadcast %5 : vector<1x8xf32> to vector<512x8xf32>
    %7 = arith.addf %4, %6 : vector<512x8xf32>
    %8 = math.tanh %7 : vector<512x8xf32>
    %c0_7 = arith.constant 0 : index
    %c0_8 = arith.constant 0 : index
    %c0_9 = arith.constant 0 : index
    %9 = vector.load %arg5[%c0_7, %c0_8, %c0_9] : memref<1x512x8xf32, #tpu.memory_space<vmem>>, vector<1x512x8xf32>
    %10 = vector.shape_cast %9 : vector<1x512x8xf32> to vector<512x8xf32>
    %11 = vector.shape_cast %8 : vector<512x8xf32> to vector<1x512x8xf32>
    tpu.vector_store %arg5[%c0_7, %c0_8, %c0_9], %11 {strides = array<i32>} : memref<1x512x8xf32, #tpu.memory_space<vmem>>, vector<1x512x8xf32>,
    return
  }
  func.func @transform_0(%arg0: i32, %arg1: i32) -> (i32, i32, i32) {
    %c0_i32 = arith.constant 0 : i32
    %c0_i32_0 = arith.constant 0 : i32
    return %arg0, %arg1, %c0_i32 : i32, i32, i32
  }
  func.func @transform_1(%arg0: i32, %arg1: i32) -> (i32, i32, i32) {
    %c0_i32 = arith.constant 0 : i32
    %c0_i32_0 = arith.constant 0 : i32
    %c0_i32_1 = arith.constant 0 : i32
    return %arg0, %c0_i32, %c0_i32_0 : i32, i32, i32
  }
  func.func @transform_2(%arg0: i32, %arg1: i32) -> (i32, i32) {
    %c0_i32 = arith.constant 0 : i32
    %c0_i32_0 = arith.constant 0 : i32
    %c0_i32_1 = arith.constant 0 : i32
    return %c0_i32, %c0_i32_0 : i32, i32
  }
  func.func @transform_3(%arg0: i32, %arg1: i32) -> (i32, i32, i32) {
    %c0_i32 = arith.constant 0 : i32
    %c0_i32_0 = arith.constant 0 : i32
    return %arg0, %arg1, %c0_i32 : i32, i32, i32
  }
}

</mosaic_0001>

<llo_original>
// kernel: tile.8
$region0: #{tile.8}
  #allocation0 [shape = 's32[1]{0}', space=sflag, size = 0x4, scoped, tag = 'scoped memory for tile.8']
  %s0 = inlined_call_operand.vmem [shape: f32[32], index: 0, kind: input, shape index: {}]
  %s1 = inlined_call_operand.vmem [shape: f32[16,32], index: 1, kind: output, shape index: {}]
  // Predicated region
  $region2: #{tile.8} parent=0 // pred_check
    _
  $region3: #{tile.8} parent=0 // pred_check_branch
    %3 = sbr.rel (0) target = $region5
  $region4: #{tile.8} parent=0 // pred_region
    _
  $region5: #{tile.8} parent=0 // pred_fallthru
    _
  %v4 = vld [vmem:[%s0] ss:$0 sm:$0xff]
  %5 = vst [vmem:[%s1] sm:$0xff] %v4
  %s6 = scalar_lea.vmem %s1, 8
  %7 = vst [vmem:[%s6] sm:$0xff] %v4

// kernel: tile.9
$region0: #{tile.9}
  %s0 = inlined_call_operand.vmem [shape: f32[16,32], index: 0, kind: input, shape index: {}]
  %s1 = inlined_call_operand.vmem [shape: f32[1,512], index: 1, kind: output, shape index: {}]
  $region1: #{tile.9} parent=0
    #allocation0 [shape = 'u8[16384]{0}', space=vmem, size = 0x4000, scoped, tag = 'scoped mem for output reshape']
    %v2 = vld [vmem:[%s0] ss:$4 sm:$0xf]
    %vm3 = vcmask 261120
    %4 = vst.msk [vmem:[#allocation0] ss:$8 sm:$0xf] %vm3, %v2
    %s5 = scalar_lea.vmem %s0, 3
    %v6 = vld [vmem:[%s5] ss:$4 sm:$0xf]
    %7 = vrot.lane.b32.xlu0 %v6, 96
    %v8 = vpop.permute.xlu0 %7
    %vm9 = vcmask 1048320
    %10 = vst.msk [vmem:[#allocation0] ss:$8 sm:$0xf] %vm9, %v8
    %s11 = scalar_lea.vmem %s0, 2
    %v12 = vld [vmem:[%s11] ss:$4 sm:$0xf]
    %13 = vrot.lane.b32.xlu0 %v12, 64
    %v14 = vpop.permute.xlu0 %13
    %vm15 = vcmask 785920
    %16 = vst.msk [vmem:[#allocation0] ss:$8 sm:$0xf] %vm15, %v14
    %s17 = scalar_lea.vmem %s0, 1
    %v18 = vld [vmem:[%s17] ss:$4 sm:$0xf]
    %19 = vrot.lane.b32.xlu0 %v18, 32
    %v20 = vpop.permute.xlu0 %19
    %vm21 = vcmask 523520
    %22 = vst.msk [vmem:[#allocation0] ss:$8 sm:$0xf] %vm21, %v20
    %s24 = ssub.s32 2, 1
    %v25 = vld [vmem:[#allocation0] sm:%s24]
    %s27 = ssub.s32 2, 1
    %28 = vst [vmem:[%s1] sm:%s27] %v25
    %s29 = scalar_lea.vmem [#allocation0], 8
    %v30 = vld [vmem:[%s29] sm:%s24]
    %s32 = ssub.s32 2, 1
    %s33 = scalar_lea.vmem %s1, 1
    %34 = vst [vmem:[%s33] sm:%s32] %v30
    %s35 = scalar_lea.vmem [#allocation0], 16
    %v36 = vld [vmem:[%s35] sm:%s24]
    %s38 = ssub.s32 2, 1
    %s39 = scalar_lea.vmem %s1, 2
    %40 = vst [vmem:[%s39] sm:%s38] %v36
    %s41 = scalar_lea.vmem [#allocation0], 24
    %v42 = vld [vmem:[%s41] sm:%s24]
    %s44 = ssub.s32 2, 1
    %s45 = scalar_lea.vmem %s1, 3
    %46 = vst [vmem:[%s45] sm:%s44] %v42

// kernel: generator_forward.12
$region0: #{generator_forward.12}
  #allocation0 [shape = 'u32[]', space=smem, size = 0x4, offset = 0x4, fixed_abs, tag = 'smem constant byte address 0x4 - core index']
  #allocation1 [shape = 'u32[72,128]{1,0:T(1,128)}', space=vmem, size = 0x9000, scoped, tag = 'internal scratch']
  %s0 = inlined_call_operand.vmem [shape: bf16[32,32], index: 0, kind: input, shape index: {}]
  %s1 = inlined_call_operand.vmem [shape: f32[2,32], index: 1, kind: input, shape index: {}]
  %s2 = inlined_call_operand.vmem [shape: f32[1,32], index: 2, kind: input, shape index: {}]
  %s3 = inlined_call_operand.vmem [shape: f32[1,32], index: 3, kind: input, shape index: {}]
  %s4 = inlined_call_operand.vmem [shape: bf16[32,32], index: 4, kind: output, shape index: {}]
  %s5 = sld [smem:[#allocation0]]
  $region26: #{generator_forward.12} parent=0
    _
  %s7 = ssub.s32 1, %s5
  %s8 = scalar_select 0, %s7, %s5
  // Predicated region
  $region2: #{generator_forward.12} parent=0 // pred_check
    _
  $region3: #{generator_forward.12} parent=0 // pred_check_branch
    %10 = sbr.rel (0) target = $region5
  $region4: #{generator_forward.12} parent=0 // pred_region
    _
  $region5: #{generator_forward.12} parent=0 // pred_fallthru
    _
  // Predicated region
  $region6: #{generator_forward.12} parent=0 // pred_check
    _
  $region7: #{generator_forward.12} parent=0 // pred_check_branch
    %12 = sbr.rel (0) target = $region9
  $region8: #{generator_forward.12} parent=0 // pred_region
    _
  $region9: #{generator_forward.12} parent=0 // pred_fallthru
    _
  // Predicated region
  $region10: #{generator_forward.12} parent=0 // pred_check
    _
  $region11: #{generator_forward.12} parent=0 // pred_check_branch
    %14 = sbr.rel (0) target = $region13
  $region12: #{generator_forward.12} parent=0 // pred_region
    _
  $region13: #{generator_forward.12} parent=0 // pred_fallthru
    _
  // Predicated region
  $region14: #{generator_forward.12} parent=0 // pred_check
    _
  $region15: #{generator_forward.12} parent=0 // pred_check_branch
    %16 = sbr.rel (0) target = $region17
  $region16: #{generator_forward.12} parent=0 // pred_region
    _
  $region17: #{generator_forward.12} parent=0 // pred_fallthru
    _
  %v17 = vld [vmem:[%s0] sm:$0xf]
  %v18 = vld [vmem:[%s0 + $0x4] sm:$0xf]
  %v19 = vld [vmem:[%s0 + $0x8] sm:$0xf]
  %v20 = vld [vmem:[%s0 + $0xc] sm:$0xf]
  %v21 = vunpack.c.l.bf16 %v17
  %v22 = vunpack.c.l.bf16 %v18
  %v23 = vunpack.c.l.bf16 %v19
  %v24 = vunpack.c.l.bf16 %v20
  %v25 = vld [vmem:[%s1] sm:$0x1]
  %v26 = vmul.f32 %v25, 0.03125
  %v27 = vld [vmem:[%s1 + $0x1] sm:$0x1]
  %v28 = vmul.f32 %v27, 0.03125
  %v29 = vmul.f32 %v26, %v26
  %v30 = vsub.f32 %v28, %v29
  %v31 = vadd.f32 %v30, 1e-05
  %v32 = vrsqrt.pop %v31
  %v33 = vmul.f32 %v32, %v31
  %v34 = vmul.f32 %v33, %v32
  %v35 = vmul.f32 0.5, %v34
  %v36 = vsub.f32 1.5, %v35
  %v37 = vmul.f32 %v32, %v36
  %vm38 = vweird.f32 %v31
  %vm39 = vweird.f32 %v32
  %vm40 = vmor %vm38, %vm39
  %v41 = vsel %vm40, %v32, %v37
  %v42 = vperm.slane %v26, 0
  %v43 = vsub.f32 %v21, %v42
  %v44 = vsub.f32 %v22, %v42
  %v45 = vsub.f32 %v23, %v42
  %v46 = vsub.f32 %v24, %v42
  %v47 = vperm.slane %v41, 0
  %v48 = vmul.f32 %v43, %v47
  %v49 = vmul.f32 %v44, %v47
  %v50 = vmul.f32 %v45, %v47
  %v51 = vmul.f32 %v46, %v47
  %v52 = vld [vmem:[%s2] sm:$0x1]
  %v54 = vperm.slane %v52, 0
  %v56 = vmul.f32 %v48, %v54
  %v57 = vmul.f32 %v49, %v54
  %v58 = vmul.f32 %v50, %v54
  %v59 = vmul.f32 %v51, %v54
  %v60 = vld [vmem:[%s3] sm:$0x1]
  %v62 = vperm.slane %v60, 0
  %v64 = vadd.f32 %v56, %v62
  %v65 = vadd.f32 %v57, %v62
  %v66 = vadd.f32 %v58, %v62
  %v67 = vadd.f32 %v59, %v62
  %v68 = vpack.c.bf16 %v64, %v64
  %v69 = vpack.c.bf16 %v65, %v65
  %v70 = vpack.c.bf16 %v66, %v66
  %v71 = vpack.c.bf16 %v67, %v67
  %vm72 = vcmask 257024
  %73 = vst.msk [vmem:[%s4] sm:$0xf] %vm72, %v68
  %74 = vst.msk [vmem:[%s4 + $0x4] sm:$0xf] %vm72, %v69
  %75 = vst.msk [vmem:[%s4 + $0x8] sm:$0xf] %vm72, %v70
  %76 = vst.msk [vmem:[%s4 + $0xc] sm:$0xf] %vm72, %v71
  // Predicated region
  $region18: #{generator_forward.12} parent=0 // pred_check
    _
  $region19: #{generator_forward.12} parent=0 // pred_check_branch
    %78 = sbr.rel (0) target = $region21
  $region20: #{generator_forward.12} parent=0 // pred_region
    _
  $region21: #{generator_forward.12} parent=0 // pred_fallthru
    _
  // Predicated region
  $region22: #{generator_forward.12} parent=0 // pred_check
    _
  $region23: #{generator_forward.12} parent=0 // pred_check_branch
    %80 = sbr.rel (0) target = $region25
  $region24: #{generator_forward.12} parent=0 // pred_region
    _
  $region25: #{generator_forward.12} parent=0 // pred_fallthru
    _

// kernel: generator_forward.11
$region0: #{generator_forward.11}
  #allocation0 [shape = 'u32[]', space=smem, size = 0x4, offset = 0x4, fixed_abs, tag = 'smem constant byte address 0x4 - core index']
  #allocation1 [shape = 'u32[72,128]{1,0:T(1,128)}', space=vmem, size = 0x9000, scoped, tag = 'internal scratch']
  %s0 = inlined_call_operand.vmem [shape: bf16[32,32], index: 0, kind: input, shape index: {}]
  %s1 = inlined_call_operand.vmem [shape: f32[2,32], index: 1, kind: output, shape index: {}]
  %s2 = sld [smem:[#allocation0]]
  $region18: #{generator_forward.11} parent=0
    _
  %s4 = ssub.s32 1, %s2
  %s5 = scalar_select 0, %s4, %s2
  // Predicated region
  $region2: #{generator_forward.11} parent=0 // pred_check
    _
  $region3: #{generator_forward.11} parent=0 // pred_check_branch
    %7 = sbr.rel (0) target = $region5
  $region4: #{generator_forward.11} parent=0 // pred_region
    _
  $region5: #{generator_forward.11} parent=0 // pred_fallthru
    _
  %p8 = scmp.eq.s32.totalorder 0, 0
  // Predicated region
  $region6: #{generator_forward.11} parent=0 // pred_check
    %p9 = pneg %p8
  $region7: #{generator_forward.11} parent=0 // pred_check_branch
    %11 = sbr.rel (%p9) target = $region9
  $region8: #{generator_forward.11} parent=0 // pred_region
    %vm12 = vcmask 254976
    %13 = vst.msk [vmem:[%s1] sm:$0x3] %vm12, 0.0
  $region9: #{generator_forward.11} parent=0 // pred_fallthru
    _
  %v14 = vld [vmem:[%s0] sm:$0xf]
  %v15 = vld [vmem:[%s0 + $0x4] sm:$0xf]
  %v16 = vld [vmem:[%s0 + $0x8] sm:$0xf]
  %v17 = vld [vmem:[%s0 + $0xc] sm:$0xf]
  %v18 = vunpack.c.l.bf16 %v14
  %v19 = vunpack.c.l.bf16 %v15
  %v20 = vunpack.c.l.bf16 %v16
  %v21 = vunpack.c.l.bf16 %v17
  %v22 = vld [vmem:[%s1] sm:$0x1]
  %vm23 = vcmask 261120
  %v24 = vsel %vm23, %v18, 0.0
  %v25 = vsel %vm23, %v19, 0.0
  %v26 = vadd.f32 %v24, %v25
  %v27 = vsel %vm23, %v20, 0.0
  %v28 = vadd.f32 %v26, %v27
  %v29 = vsel %vm23, %v21, 0.0
  %v30 = vadd.f32 %v28, %v29
  %v31 = vrot.slane %v30, 4
  %v32 = vadd.f32 %v30, %v31
  %v33 = vrot.slane %v32, 2
  %v34 = vadd.f32 %v32, %v33
  %v35 = vrot.slane %v34, 1
  %v36 = vadd.f32 %v34, %v35
  %v37 = vadd.f32 %v22, %v36
  %vm38 = vcmask 253952
  %39 = vst.msk [vmem:[%s1] sm:$0x1] %vm38, %v37
  %v40 = vld [vmem:[%s1 + $0x1] sm:$0x1]
  %v41 = vmul.f32 %v18, %v18
  %v42 = vmul.f32 %v19, %v19
  %v43 = vmul.f32 %v20, %v20
  %v44 = vmul.f32 %v21, %v21
  %v45 = vsel %vm23, %v41, 0.0
  %v46 = vsel %vm23, %v42, 0.0
  %v47 = vadd.f32 %v45, %v46
  %v48 = vsel %vm23, %v43, 0.0
  %v49 = vadd.f32 %v47, %v48
  %v50 = vsel %vm23, %v44, 0.0
  %v51 = vadd.f32 %v49, %v50
  %v52 = vrot.slane %v51, 4
  %v53 = vadd.f32 %v51, %v52
  %v54 = vrot.slane %v53, 2
  %v55 = vadd.f32 %v53, %v54
  %v56 = vrot.slane %v55, 1
  %v57 = vadd.f32 %v55, %v56
  %v58 = vadd.f32 %v40, %v57
  %59 = vst.msk [vmem:[%s1 + $0x1] sm:$0x1] %vm38, %v58
  // Predicated region
  $region10: #{generator_forward.11} parent=0 // pred_check
    _
  $region11: #{generator_forward.11} parent=0 // pred_check_branch
    %61 = sbr.rel (0) target = $region13
  $region12: #{generator_forward.11} parent=0 // pred_region
    _
  $region13: #{generator_forward.11} parent=0 // pred_fallthru
    _
  // Predicated region
  $region14: #{generator_forward.11} parent=0 // pred_check
    _
  $region15: #{generator_forward.11} parent=0 // pred_check_branch
    %63 = sbr.rel (0) target = $region17
  $region16: #{generator_forward.11} parent=0 // pred_region
    _
  $region17: #{generator_forward.11} parent=0 // pred_fallthru
    _

// kernel: generator_forward.10
$region0: #{generator_forward.10}
  #allocation0 [shape = 'u32[]', space=smem, size = 0x4, offset = 0x4, fixed_abs, tag = 'smem constant byte address 0x4 - core index']
  #allocation1 [shape = 'u32[72,128]{1,0:T(1,128)}', space=vmem, size = 0x9000, scoped, tag = 'internal scratch']
  %s0 = inlined_call_operand.vmem [shape: bf16[1,2,110], index: 0, kind: input, shape index: {}]
  %s1 = inlined_call_operand.vmem [shape: bf16[1,110,512], index: 1, kind: input, shape index: {}]
  %s2 = inlined_call_operand.vmem [shape: f32[1,512], index: 2, kind: input, shape index: {}]
  %s3 = inlined_call_operand.vmem [shape: bf16[1,2,512], index: 3, kind: output, shape index: {}]
  %s4 = sld [smem:[#allocation0]]
  $region22: #{generator_forward.10} parent=0
    _
  %s6 = ssub.s32 1, %s4
  %s7 = scalar_select 0, %s6, %s4
  // Predicated region
  $region2: #{generator_forward.10} parent=0 // pred_check
    _
  $region3: #{generator_forward.10} parent=0 // pred_check_branch
    %9 = sbr.rel (0) target = $region5
  $region4: #{generator_forward.10} parent=0 // pred_region
    _
  $region5: #{generator_forward.10} parent=0 // pred_fallthru
    _
  // Predicated region
  $region6: #{generator_forward.10} parent=0 // pred_check
    _
  $region7: #{generator_forward.10} parent=0 // pred_check_branch
    %11 = sbr.rel (0) target = $region9
  $region8: #{generator_forward.10} parent=0 // pred_region
    _
  $region9: #{generator_forward.10} parent=0 // pred_fallthru
    _
  // Predicated region
  $region10: #{generator_forward.10} parent=0 // pred_check
    _
  $region11: #{generator_forward.10} parent=0 // pred_check_branch
    %13 = sbr.rel (0) target = $region13
  $region12: #{generator_forward.10} parent=0 // pred_region
    _
  $region13: #{generator_forward.10} parent=0 // pred_fallthru
    _
  %v15 = vld [vmem:[%s0] sm:$0x1]
  %v16 = vld [vmem:[%s1] sm:$0xff]
  %v17 = vld [vmem:[%s1 + $0x8] sm:$0xff]
  %v18 = vld [vmem:[%s1 + $0x10] sm:$0xff]
  %v19 = vld [vmem:[%s1 + $0x18] sm:$0xff]
  %v20 = vld [vmem:[%s1 + $0x20] sm:$0xff]
  %v21 = vld [vmem:[%s1 + $0x28] sm:$0xff]
  %v22 = vld [vmem:[%s1 + $0x30] sm:$0xff]
  %v23 = vld [vmem:[%s1 + $0x38] sm:$0xff]
  %v24 = vld [vmem:[%s1 + $0x40] sm:$0xff]
  %v25 = vld [vmem:[%s1 + $0x48] sm:$0xff]
  %v26 = vld [vmem:[%s1 + $0x50] sm:$0xff]
  %v27 = vld [vmem:[%s1 + $0x58] sm:$0xff]
  %v28 = vld [vmem:[%s1 + $0x60] sm:$0xff]
  %v29 = vld [vmem:[%s1 + $0x68] sm:$0xff]
  %v30 = vld [vmem:[%s1 + $0x70] sm:$0xff]
  %v31 = vld [vmem:[%s1 + $0x78] sm:$0xff]
  %v32 = vld [vmem:[%s1 + $0x80] sm:$0xff]
  %v33 = vld [vmem:[%s1 + $0x88] sm:$0xff]
  %v34 = vld [vmem:[%s1 + $0x90] sm:$0xff]
  %v35 = vld [vmem:[%s1 + $0x98] sm:$0xff]
  %v36 = vld [vmem:[%s1 + $0xa0] sm:$0xff]
  %v37 = vld [vmem:[%s1 + $0xa8] sm:$0xff]
  %v38 = vld [vmem:[%s1 + $0xb0] sm:$0xff]
  %v39 = vld [vmem:[%s1 + $0xb8] sm:$0xff]
  %v40 = vld [vmem:[%s1 + $0xc0] sm:$0xff]
  %v41 = vld [vmem:[%s1 + $0xc8] sm:$0xff]
  %v42 = vld [vmem:[%s1 + $0xd0] sm:$0x77]
  %v43 = vld [vmem:[%s1 + $0xd8] sm:$0x77]
  %v44 = vld [vmem:[%s2] sm:$0xf]
  %v46 = vperm.slane %v44, 0
  %v47 = vperm.slane %v44, 1
  %v48 = vperm.slane %v44, 2
  %v49 = vperm.slane %v44, 3
  %v82 = vunpack.c.l.b16 %v16
  %v83 = vunpack.c.h.b16 %v16
  %v84 = vunpack.c.l.b16 %v17
  %v85 = vunpack.c.h.b16 %v17
  %v86 = vunpack.c.l.b16 %v18
  %v87 = vunpack.c.h.b16 %v18
  %v88 = vunpack.c.l.b16 %v19
  %v89 = vunpack.c.h.b16 %v19
  %v90 = vunpack.c.l.b16 %v20
  %v91 = vunpack.c.h.b16 %v20
  %v92 = vunpack.c.l.b16 %v21
  %v93 = vunpack.c.h.b16 %v21
  %v94 = vunpack.c.l.b16 %v22
  %v95 = vunpack.c.h.b16 %v22
  %v96 = vunpack.c.l.b16 %v23
  %v97 = vunpack.c.h.b16 %v23
  %v98 = vunpack.c.l.b16 %v24
  %v99 = vunpack.c.h.b16 %v24
  %v100 = vunpack.c.l.b16 %v25
  %v101 = vunpack.c.h.b16 %v25
  %v102 = vunpack.c.l.b16 %v26
  %v103 = vunpack.c.h.b16 %v26
  %v104 = vunpack.c.l.b16 %v27
  %v105 = vunpack.c.h.b16 %v27
  %v106 = vunpack.c.l.b16 %v28
  %v107 = vunpack.c.h.b16 %v28
  %v108 = vunpack.c.l.b16 %v29
  %v109 = vunpack.c.h.b16 %v29
  %v110 = vunpack.c.l.b16 %v30
  %v111 = vunpack.c.h.b16 %v30
  %v112 = vunpack.c.l.b16 %v31
  %v113 = vunpack.c.h.b16 %v31
  %v114 = vunpack.c.l.b16 %v32
  %v115 = vunpack.c.h.b16 %v32
  %v116 = vunpack.c.l.b16 %v33
  %v117 = vunpack.c.h.b16 %v33
  %v118 = vunpack.c.l.b16 %v34
  %v119 = vunpack.c.h.b16 %v34
  %v120 = vunpack.c.l.b16 %v35
  %v121 = vunpack.c.h.b16 %v35
  %v122 = vunpack.c.l.b16 %v36
  %v123 = vunpack.c.h.b16 %v36
  %v124 = vunpack.c.l.b16 %v37
  %v125 = vunpack.c.h.b16 %v37
  %v126 = vunpack.c.l.b16 %v38
  %v127 = vunpack.c.h.b16 %v38
  %v128 = vunpack.c.l.b16 %v39
  %v129 = vunpack.c.h.b16 %v39
  %v130 = vunpack.c.l.b16 %v40
  %v131 = vunpack.c.h.b16 %v40
  %v132 = vunpack.c.l.b16 %v41
  %v133 = vunpack.c.h.b16 %v41
  %v134 = vunpack.c.l.b16 %v42
  %v135 = vunpack.c.h.b16 %v42
  %v136 = vunpack.c.l.b16 %v43
  %v137 = vunpack.c.h.b16 %v43
  %v138 = vpack.c.b16 %v86, %v82
  %v139 = vpack.c.b16 %v87, %v83
  %v140 = vpack.c.b16 %v88, %v84
  %v141 = vpack.c.b16 %v89, %v85
  %v142 = vpack.c.b16 %v94, %v90
  %v143 = vpack.c.b16 %v95, %v91
  %v144 = vpack.c.b16 %v96, %v92
  %v145 = vpack.c.b16 %v97, %v93
  %v146 = vpack.c.b16 %v102, %v98
  %v147 = vpack.c.b16 %v103, %v99
  %v148 = vpack.c.b16 %v104, %v100
  %v149 = vpack.c.b16 %v105, %v101
  %v150 = vpack.c.b16 %v110, %v106
  %v151 = vpack.c.b16 %v111, %v107
  %v152 = vpack.c.b16 %v112, %v108
  %v153 = vpack.c.b16 %v113, %v109
  %v154 = vpack.c.b16 %v118, %v114
  %v155 = vpack.c.b16 %v119, %v115
  %v156 = vpack.c.b16 %v120, %v116
  %v157 = vpack.c.b16 %v121, %v117
  %v158 = vpack.c.b16 %v126, %v122
  %v159 = vpack.c.b16 %v127, %v123
  %v160 = vpack.c.b16 %v128, %v124
  %v161 = vpack.c.b16 %v129, %v125
  %v162 = vpack.c.b16 %v134, %v130
  %v163 = vpack.c.b16 %v135, %v131
  %v164 = vpack.c.b16 %v136, %v132
  %v165 = vpack.c.b16 %v137, %v133
  %vm190 = vcmask 900096
  %v192 = vsel %vm190, %v15, 0
  %vm194 = vcmask 1046528
  %v196 = vsel %vm194, %v162, 0
  %v199 = vsel %vm194, %v163, 0
  %v202 = vsel %vm194, %v164, 0
  %v205 = vsel %vm194, %v165, 0
  %207 = vmatpush.bf16.msra.mxu0 0
  %208 = vmatpush.bf16.msra.mxu0 %v196
  %209 = vmatpush.bf16.msra.mxu0 %v158
  %210 = vmatpush.bf16.msra.mxu0 %v154
  %211 = vmatpush.bf16.msra.mxu0 %v150
  %212 = vmatpush.bf16.msra.mxu0 %v146
  %213 = vmatpush.bf16.msra.mxu0 %v142
  %214 = vmatpush.bf16.msra.mxu0 %v138
  %215 = vmatmul.bf16.gmra.mxu0 %v192
  %v216 = vpop.f32.mrf.mxu0
  %v217 = vadd.f32 %v46, %v216
  %v218 = vpop.f32.mrf.mxu0
  %219 = vdwg.mxu0
  %220 = vmatpush.bf16.msra.mxu0 0
  %221 = vmatpush.bf16.msra.mxu0 %v199
  %222 = vmatpush.bf16.msra.mxu0 %v159
  %223 = vmatpush.bf16.msra.mxu0 %v155
  %224 = vmatpush.bf16.msra.mxu0 %v151
  %225 = vmatpush.bf16.msra.mxu0 %v147
  %226 = vmatpush.bf16.msra.mxu0 %v143
  %227 = vmatpush.bf16.msra.mxu0 %v139
  %228 = vmatmul.bf16.gmra.mxu0 %v192
  %v229 = vpop.f32.mrf.mxu0
  %v230 = vadd.f32 %v47, %v229
  %v231 = vpop.f32.mrf.mxu0
  %232 = vdwg.mxu0
  %233 = vmatpush.bf16.msra.mxu0 0
  %234 = vmatpush.bf16.msra.mxu0 %v202
  %235 = vmatpush.bf16.msra.mxu0 %v160
  %236 = vmatpush.bf16.msra.mxu0 %v156
  %237 = vmatpush.bf16.msra.mxu0 %v152
  %238 = vmatpush.bf16.msra.mxu0 %v148
  %239 = vmatpush.bf16.msra.mxu0 %v144
  %240 = vmatpush.bf16.msra.mxu0 %v140
  %241 = vmatmul.bf16.gmra.mxu0 %v192
  %v242 = vpop.f32.mrf.mxu0
  %v243 = vadd.f32 %v48, %v242
  %v244 = vpop.f32.mrf.mxu0
  %245 = vdwg.mxu0
  %246 = vmatpush.bf16.msra.mxu0 0
  %247 = vmatpush.bf16.msra.mxu0 %v205
  %248 = vmatpush.bf16.msra.mxu0 %v161
  %249 = vmatpush.bf16.msra.mxu0 %v157
  %250 = vmatpush.bf16.msra.mxu0 %v153
  %251 = vmatpush.bf16.msra.mxu0 %v149
  %252 = vmatpush.bf16.msra.mxu0 %v145
  %253 = vmatpush.bf16.msra.mxu0 %v141
  %254 = vmatmul.bf16.gmra.mxu0 %v192
  %v255 = vpop.f32.mrf.mxu0
  %v256 = vadd.f32 %v49, %v255
  %v257 = vpop.f32.mrf.mxu0
  %258 = vdwg.mxu0
  %v259 = vmax.f32 %v217, 0.0
  %v260 = vmax.f32 %v230, 0.0
  %v261 = vmax.f32 %v243, 0.0
  %v262 = vmax.f32 %v256, 0.0
  %v263 = vpack.c.bf16 %v260, %v259
  %v264 = vpack.c.bf16 %v262, %v261
  %v267 = vrot.slane %v263, 3
  %v268 = vrot.slane %v264, 6
  %v269 = vrot.slane %v264, 1
  %vm270 = vcmask 1040384
  %v273 = vsel %vm270, %v263, %v267
  %vm274 = vcmask 1042434
  %v277 = vsel %vm274, %v268, %v269
  %vm278 = vcmask 1041408
  %v279 = vsel %vm278, %v273, %v277
  %281 = vst [vmem:[%s3] sm:$0xf] %v279
  // Predicated region
  $region14: #{generator_forward.10} parent=0 // pred_check
    _
  $region15: #{generator_forward.10} parent=0 // pred_check_branch
    %283 = sbr.rel (0) target = $region17
  $region16: #{generator_forward.10} parent=0 // pred_region
    _
  $region17: #{generator_forward.10} parent=0 // pred_fallthru
    _
  // Predicated region
  $region18: #{generator_forward.10} parent=0 // pred_check
    _
  $region19: #{generator_forward.10} parent=0 // pred_check_branch
    %285 = sbr.rel (0) target = $region21
  $region20: #{generator_forward.10} parent=0 // pred_region
    _
  $region21: #{generator_forward.10} parent=0 // pred_fallthru
    _

// kernel: generator_forward.13
$region0: #{generator_forward.13}
  #allocation0 [shape = 'u32[]', space=smem, size = 0x4, offset = 0x4, fixed_abs, tag = 'smem constant byte address 0x4 - core index']
  #allocation1 [shape = 'u32[72,128]{1,0:T(1,128)}', space=vmem, size = 0x9000, scoped, tag = 'internal scratch']
  %s0 = inlined_call_operand.vmem [shape: bf16[4,32,128], index: 0, kind: input, shape index: {}]
  %s1 = inlined_call_operand.vmem [shape: bf16[4,128,64], index: 1, kind: input, shape index: {}]
  %s2 = inlined_call_operand.vmem [shape: f32[1,64], index: 2, kind: input, shape index: {}]
  %s3 = inlined_call_operand.vmem [shape: bf16[4,32,64], index: 3, kind: output, shape index: {}]
  %s4 = sld [smem:[#allocation0]]
  $region45: #{generator_forward.13} parent=0
    _
  %s6 = ssub.s32 1, %s4
  %s7 = scalar_select 0, %s6, %s4
  loop: start=0, step=1, limit=6
  $region2: #{generator_forward.13} parent=0 // loop_pre_header
    _
  $region3: #{generator_forward.13} parent=0 // loop_header
    %s9 = sphi 0, %s13
    %p10 = scmp.ge.s32.totalorder %s9, 6
    %s16 = sphi 0, %s28
    %s17 = sphi 0, %s24
    %s18 = sphi 0, %s16
    %s19 = sphi 0, %s17
    %s20 = sphi 0, %s18
    %s21 = sphi 0, %s19
    %s33 = sphi 0, %s35
    %s36 = sphi 0, %s33
    %s37 = sphi 0, %s36
    %s53 = sphi 0, %s37
    %s59 = sphi 0, %s61
    %s62 = sphi 0, %s59
    %s63 = sphi 0, %s62
    %s79 = sphi 0, %s63
    %s83 = sphi 0, %s83
    %s85 = sphi 0, %s83
    %s86 = sphi 0, %s85
    %s100 = sphi 0, %s86
    %s108 = sphi 0, %s110
    %s111 = sphi 0, %s108
    %s112 = sphi 0, %s111
    %s128 = sphi 0, %s112
  $region4: #{generator_forward.13} parent=0 // loop_header_branch
    %12 = sbr.rel (%p10) target = $region8
  $region5: #{generator_forward.13} parent=0 // loop_body
    %s14 = ssub.s32 %s9, 1
    %s15 = ssub.s32 %s9, 2
    %s22 = sadd.s32 1, %s17
    %p23 = scmp.ge.s32.totalorder %s22, 1
    %s24 = scalar_select %p23, 0, %s22
    %s25 = sadd.s32 1, %s16
    %s26 = scalar_select %p23, %s25, %s16
    %p27 = scmp.ge.s32.totalorder %s26, 4
    %s28 = scalar_select %p27, 0, %s26
    %s29 = ssub.s32 %s16, %s28
    %s30 = ssub.s32 %s17, %s24
    %s31 = sor.u32 %s29, %s30
    %p32 = scmp.eq.s32.totalorder %s31, 0
    %s34 = sadd.s32 %s33, 1
    %s35 = scalar_select %p32, %s33, %s34
    %p38 = pneg %p32
    %p39 = scmp.eq.s32.totalorder %s9, 3
    %p40 = por %p38, %p39
    %p41 = scmp.ne.s32.totalorder %s33, %s36
    %p42 = scmp.eq.s32.totalorder %s9, 0
    %p43 = por %p41, %p42
    %p44 = scmp.ne.s32.totalorder %s33, %s36
    %p45 = scmp.eq.s32.totalorder %s14, 3
    %p46 = por %p44, %p45
    %p47 = scmp.ne.s32.totalorder %s36, %s37
    %p48 = scmp.eq.s32.totalorder %s14, 0
    %p49 = por %p47, %p48
    %p50 = scmp.ne.s32.totalorder %s36, %s37
    %p51 = scmp.eq.s32.totalorder %s15, 3
    %p52 = por %p50, %p51
    %p54 = scmp.ne.s32.totalorder %s37, %s53
    %p55 = scmp.eq.s32.totalorder %s15, 0
    %p56 = por %p54, %p55
    %s57 = ssub.s32 %s16, %s28
    %p58 = scmp.eq.s32.totalorder %s57, 0
    %s60 = sadd.s32 %s59, 1
    %s61 = scalar_select %p58, %s59, %s60
    %p64 = pneg %p58
    %p65 = scmp.eq.s32.totalorder %s9, 3
    %p66 = por %p64, %p65
    %p67 = scmp.ne.s32.totalorder %s59, %s62
    %p68 = scmp.eq.s32.totalorder %s9, 0
    %p69 = por %p67, %p68
    %p70 = scmp.ne.s32.totalorder %s59, %s62
    %p71 = scmp.eq.s32.totalorder %s14, 3
    %p72 = por %p70, %p71
    %p73 = scmp.ne.s32.totalorder %s62, %s63
    %p74 = scmp.eq.s32.totalorder %s14, 0
    %p75 = por %p73, %p74
    %p76 = scmp.ne.s32.totalorder %s62, %s63
    %p77 = scmp.eq.s32.totalorder %s15, 3
    %p78 = por %p76, %p77
    %p80 = scmp.ne.s32.totalorder %s63, %s79
    %p81 = scmp.eq.s32.totalorder %s15, 0
    %p82 = por %p80, %p81
    %s84 = sadd.s32 %s83, 1
    %p87 = scmp.eq.s32.totalorder %s9, 3
    %p88 = scmp.ne.s32.totalorder %s83, %s85
    %p89 = scmp.eq.s32.totalorder %s9, 0
    %p90 = por %p88, %p89
    %p91 = scmp.ne.s32.totalorder %s83, %s85
    %p92 = scmp.eq.s32.totalorder %s14, 3
    %p93 = por %p91, %p92
    %p94 = scmp.ne.s32.totalorder %s85, %s86
    %p95 = scmp.eq.s32.totalorder %s14, 0
    %p96 = por %p94, %p95
    %p97 = scmp.ne.s32.totalorder %s85, %s86
    %p98 = scmp.eq.s32.totalorder %s15, 3
    %p99 = por %p97, %p98
    %p101 = scmp.ne.s32.totalorder %s86, %s100
    %p102 = scmp.eq.s32.totalorder %s15, 0
    %p103 = por %p101, %p102
    %s104 = ssub.s32 %s16, %s28
    %s105 = ssub.s32 %s17, %s24
    %s106 = sor.u32 %s104, %s105
    %p107 = scmp.eq.s32.totalorder %s106, 0
    %s109 = sadd.s32 %s108, 1
    %s110 = scalar_select %p107, %s108, %s109
    %p113 = pneg %p107
    %p114 = scmp.eq.s32.totalorder %s9, 3
    %p115 = por %p113, %p114
    %p116 = scmp.ne.s32.totalorder %s108, %s111
    %p117 = scmp.eq.s32.totalorder %s9, 0
    %p118 = por %p116, %p117
    %p119 = scmp.ne.s32.totalorder %s108, %s111
    %p120 = scmp.eq.s32.totalorder %s14, 3
    %p121 = por %p119, %p120
    %p122 = scmp.ne.s32.totalorder %s111, %s112
    %p123 = scmp.eq.s32.totalorder %s14, 0
    %p124 = por %p122, %p123
    %p125 = scmp.ne.s32.totalorder %s111, %s112
    %p126 = scmp.eq.s32.totalorder %s15, 3
    %p127 = por %p125, %p126
    %p129 = scmp.ne.s32.totalorder %s112, %s128
    %p130 = scmp.eq.s32.totalorder %s15, 0
    %p131 = por %p129, %p130
    %p132 = scmp.le.s32.totalorder 1, %s9
    %p133 = scmp.lt.s32.totalorder %s9, 5
    %p134 = pnand %p132, %p133
    %p135 = pneg %p134
    // Predicated region
    $region9: #{generator_forward.13} parent=5 // pred_check
      _
    $region10: #{generator_forward.13} parent=5 // pred_check_branch
      %137 = sbr.rel (%p134) target = $region12
    $region11: #{generator_forward.13} parent=5 // pred_region
      %s138 = ssub.s32 %s9, 1
      // Predicated region
      $region13: #{generator_forward.13} parent=11 // pred_check
        %p139 = pneg %p96
      $region14: #{generator_forward.13} parent=11 // pred_check_branch
        %141 = sbr.rel (%p139) target = $region16
      $region15: #{generator_forward.13} parent=11 // pred_region
        _
      $region16: #{generator_forward.13} parent=11 // pred_fallthru
        _
    $region12: #{generator_forward.13} parent=5 // pred_fallthru
      _
    %p142 = scmp.lt.s32.totalorder %s9, 4
    // Predicated region
    $region17: #{generator_forward.13} parent=5 // pred_check
      %p143 = pneg %p142
    $region18: #{generator_forward.13} parent=5 // pred_check_branch
      %145 = sbr.rel (%p143) target = $region20
    $region19: #{generator_forward.13} parent=5 // pred_region
      // Predicated region
      $region21: #{generator_forward.13} parent=19 // pred_check
        %p146 = pneg %p43
      $region22: #{generator_forward.13} parent=19 // pred_check_branch
        %148 = sbr.rel (%p146) target = $region24
      $region23: #{generator_forward.13} parent=19 // pred_region
        %s149 = smul.u32 4, %s17
        %p150 = scmp.lt.s32.totalorder %s16, 3
        %s151 = scalar_select %p150, %s16, 3
        %p152 = scmp.lt.s32.totalorder %s149, 3
        %s153 = scalar_select %p152, %s149, 3
        %s154 = smul.addr %s151, 4
        %s155 = sadd.s32 %s153, %s154
        %s156 = smul.addr %s155, 4
        %s157 = scalar_lea.vmem %s0, %s156
        %s158 = smul.u32 4, %s17
      $region24: #{generator_forward.13} parent=19 // pred_fallthru
        _
      // Predicated region
      $region25: #{generator_forward.13} parent=19 // pred_check
        %p159 = pneg %p69
      $region26: #{generator_forward.13} parent=19 // pred_check_branch
        %161 = sbr.rel (%p159) target = $region28
      $region27: #{generator_forward.13} parent=19 // pred_region
        %p162 = scmp.lt.s32.totalorder %s16, 3
        %s163 = scalar_select %p162, %s16, 3
        %s164 = smul.addr %s163, 16
        %s165 = smul.addr %s164, 4
        %s166 = scalar_lea.vmem %s1, %s165
      $region28: #{generator_forward.13} parent=19 // pred_fallthru
        _
    $region20: #{generator_forward.13} parent=5 // pred_fallthru
      _
    %p167 = scmp.le.s32.totalorder 1, %s9
    %p168 = scmp.lt.s32.totalorder %s9, 5
    %p169 = pnand %p167, %p168
    %p170 = pneg %p169
    // Predicated region
    $region29: #{generator_forward.13} parent=5 // pred_check
      _
    $region30: #{generator_forward.13} parent=5 // pred_check_branch
      %172 = sbr.rel (%p169) target = $region32
    $region31: #{generator_forward.13} parent=5 // pred_region
      %s173 = ssub.s32 %s9, 1
      %s174 = smul.u32 4, %s19
      %p175 = scmp.lt.s32.totalorder %s18, 3
      %s176 = scalar_select %p175, %s18, 3
      %p177 = scmp.lt.s32.totalorder %s174, 3
      %s178 = scalar_select %p177, %s174, 3
      %s179 = smul.addr %s176, 4
      %s180 = sadd.s32 %s178, %s179
      %s181 = smul.addr %s180, 4
      %s182 = scalar_lea.vmem %s0, %s181
      %p183 = pneg %p49
      %p184 = pneg %p46
      %p185 = scmp.lt.s32.totalorder %s18, 3
      %s186 = scalar_select %p185, %s18, 3
      %s187 = smul.addr %s186, 16
      %s188 = smul.addr %s187, 4
      %s189 = scalar_lea.vmem %s1, %s188
      %p190 = pneg %p75
      %p191 = pneg %p72
      %p192 = pneg %p96
      %p193 = pneg %p93
      %p194 = pneg %p124
      %p195 = pneg %p121
      %s196 = smul.u32 4, %s19
      %p197 = scmp.lt.s32.totalorder %s18, 3
      %s198 = scalar_select %p197, %s18, 3
      %p199 = scmp.lt.s32.totalorder %s196, 3
      %s200 = scalar_select %p199, %s196, 3
      %s201 = smul.addr %s198, 4
      %s202 = sadd.s32 %s200, %s201
      %s203 = smul.addr %s202, 4
      %s204 = scalar_lea.vmem %s3, %s203
      %s205 = smul.u32 4, %s19
      %p206 = scmp.lt.s32.totalorder %s18, 3
      %s207 = scalar_select %p206, %s18, 3
      %p208 = scmp.lt.s32.totalorder %s205, 3
      %s209 = scalar_select %p208, %s205, 3
      %s210 = smul.addr %s207, 4
      %s211 = sadd.s32 %s209, %s210
      %s212 = smul.addr %s211, 4
      %s213 = scalar_lea.vmem %s0, %s212
      %s214 = smul.u32 4, %s19
      %p215 = scmp.lt.s32.totalorder %s18, 3
      %s216 = scalar_select %p215, %s18, 3
      %s217 = smul.addr %s216, 16
      %s218 = smul.addr %s217, 4
      %s219 = scalar_lea.vmem %s1, %s218
      %s220 = smul.u32 4, %s19
      %p221 = scmp.lt.s32.totalorder %s18, 3
      %s222 = scalar_select %p221, %s18, 3
      %p223 = scmp.lt.s32.totalorder %s220, 3
      %s224 = scalar_select %p223, %s220, 3
      %s225 = smul.addr %s222, 4
      %s226 = sadd.s32 %s224, %s225
      %s227 = smul.addr %s226, 4
      %s228 = scalar_lea.vmem %s3, %s227
      %s229 = smul.u32 4, %s19
      %v230 = vld [vmem:[%s213] sm:$0xf]
      %v231 = vld [vmem:[%s213 + $0x4] sm:$0xf]
      %v232 = vld [vmem:[%s213 + $0x8] sm:$0xf]
      %v233 = vld [vmem:[%s213 + $0xc] sm:$0xf]
      %v234 = vld [vmem:[%s219] sm:$0xf]
      %v235 = vld [vmem:[%s219 + $0x4] sm:$0xf]
      %v236 = vld [vmem:[%s219 + $0x8] sm:$0xf]
      %v237 = vld [vmem:[%s219 + $0xc] sm:$0xf]
      %v238 = vld [vmem:[%s219 + $0x10] sm:$0xf]
      %v239 = vld [vmem:[%s219 + $0x14] sm:$0xf]
      %v240 = vld [vmem:[%s219 + $0x18] sm:$0xf]
      %v241 = vld [vmem:[%s219 + $0x1c] sm:$0xf]
      %v242 = vld [vmem:[%s219 + $0x20] sm:$0xf]
      %v243 = vld [vmem:[%s219 + $0x24] sm:$0xf]
      %v244 = vld [vmem:[%s219 + $0x28] sm:$0xf]
      %v245 = vld [vmem:[%s219 + $0x2c] sm:$0xf]
      %v246 = vld [vmem:[%s219 + $0x30] sm:$0xf]
      %v247 = vld [vmem:[%s219 + $0x34] sm:$0xf]
      %v248 = vld [vmem:[%s219 + $0x38] sm:$0xf]
      %v249 = vld [vmem:[%s219 + $0x3c] sm:$0xf]
      %v250 = vld [vmem:[%s2] sm:$0x1]
      %v252 = vperm.slane %v250, 0
      %v258 = vunpack.c.l.b16 %v230
      %v259 = vunpack.c.l.b16 %v231
      %v260 = vunpack.c.l.b16 %v232
      %v261 = vunpack.c.l.b16 %v233
      %v262 = vpack.c.b16 %v259, %v258
      %v263 = vpack.c.b16 %v261, %v260
      %v282 = vunpack.c.l.b16 %v234
      %v283 = vunpack.c.l.b16 %v235
      %v284 = vunpack.c.l.b16 %v236
      %v285 = vunpack.c.l.b16 %v237
      %v286 = vunpack.c.l.b16 %v238
      %v287 = vunpack.c.l.b16 %v239
      %v288 = vunpack.c.l.b16 %v240
      %v289 = vunpack.c.l.b16 %v241
      %v290 = vunpack.c.l.b16 %v242
      %v291 = vunpack.c.l.b16 %v243
      %v292 = vunpack.c.l.b16 %v244
      %v293 = vunpack.c.l.b16 %v245
      %v294 = vunpack.c.l.b16 %v246
      %v295 = vunpack.c.l.b16 %v247
      %v296 = vunpack.c.l.b16 %v248
      %v297 = vunpack.c.l.b16 %v249
      %v298 = vpack.c.b16 %v283, %v282
      %v299 = vpack.c.b16 %v285, %v284
      %v300 = vpack.c.b16 %v287, %v286
      %v301 = vpack.c.b16 %v289, %v288
      %v302 = vpack.c.b16 %v291, %v290
      %v303 = vpack.c.b16 %v293, %v292
      %v304 = vpack.c.b16 %v295, %v294
      %v305 = vpack.c.b16 %v297, %v296
      %314 = vmatpush.bf16.msra.mxu0 %v305
      %315 = vmatpush.bf16.msra.mxu0 %v304
      %316 = vmatpush.bf16.msra.mxu0 %v303
      %317 = vmatpush.bf16.msra.mxu0 %v302
      %318 = vmatpush.bf16.msra.mxu0 %v301
      %319 = vmatpush.bf16.msra.mxu0 %v300
      %320 = vmatpush.bf16.msra.mxu0 %v299
      %321 = vmatpush.bf16.msra.mxu0 %v298
      %322 = vmatmul.bf16.gmra.mxu0 %v262
      %v323 = vpop.f32.mrf.mxu0
      %v324 = vadd.f32 %v252, %v323
      %v325 = vpop.f32.mrf.mxu0
      %v326 = vadd.f32 %v252, %v325
      %327 = vmatmul.bf16.gmra.mxu0 %v263
      %v328 = vpop.f32.mrf.mxu0
      %v329 = vadd.f32 %v252, %v328
      %v330 = vpop.f32.mrf.mxu0
      %v331 = vadd.f32 %v252, %v330
      %332 = vdwg.mxu0
      %v333 = vmax.f32 %v324, 0.0
      %v334 = vmax.f32 %v326, 0.0
      %v335 = vmax.f32 %v329, 0.0
      %v336 = vmax.f32 %v331, 0.0
      %v337 = vpack.c.bf16 %v333, %v333
      %v338 = vpack.c.bf16 %v334, %v334
      %v339 = vpack.c.bf16 %v335, %v335
      %v340 = vpack.c.bf16 %v336, %v336
      %vm341 = vcmask 519168
      %342 = vst.msk [vmem:[%s228] sm:$0xf] %vm341, %v337
      %343 = vst.msk [vmem:[%s228 + $0x4] sm:$0xf] %vm341, %v338
      %344 = vst.msk [vmem:[%s228 + $0x8] sm:$0xf] %vm341, %v339
      %345 = vst.msk [vmem:[%s228 + $0xc] sm:$0xf] %vm341, %v340
      %s346 = smul.u32 4, %s19
      %p347 = scmp.lt.s32.totalorder %s18, 3
      %s348 = scalar_select %p347, %s18, 3
      %p349 = scmp.lt.s32.totalorder %s346, 3
      %s350 = scalar_select %p349, %s346, 3
      %s351 = smul.addr %s348, 4
      %s352 = sadd.s32 %s350, %s351
      %s353 = smul.addr %s352, 4
      %s354 = scalar_lea.vmem %s3, %s353
      // Predicated region
      $region33: #{generator_forward.13} parent=31 // pred_check
        %p355 = pneg %p121
      $region34: #{generator_forward.13} parent=31 // pred_check_branch
        %357 = sbr.rel (%p355) target = $region36
      $region35: #{generator_forward.13} parent=31 // pred_region
        %s358 = smul.u32 4, %s19
      $region36: #{generator_forward.13} parent=31 // pred_fallthru
        _
    $region32: #{generator_forward.13} parent=5 // pred_fallthru
      _
    %p359 = scmp.le.s32.totalorder 2, %s9
    // Predicated region
    $region37: #{generator_forward.13} parent=5 // pred_check
      %p360 = pneg %p359
    $region38: #{generator_forward.13} parent=5 // pred_check_branch
      %362 = sbr.rel (%p360) target = $region40
    $region39: #{generator_forward.13} parent=5 // pred_region
      %s363 = ssub.s32 %s9, 2
      // Predicated region
      $region41: #{generator_forward.13} parent=39 // pred_check
        %p364 = pneg %p127
      $region42: #{generator_forward.13} parent=39 // pred_check_branch
        %366 = sbr.rel (%p364) target = $region44
      $region43: #{generator_forward.13} parent=39 // pred_region
        %s367 = smul.u32 4, %s21
        %p368 = scmp.lt.s32.totalorder %s20, 3
        %s369 = scalar_select %p368, %s20, 3
        %p370 = scmp.lt.s32.totalorder %s367, 3
        %s371 = scalar_select %p370, %s367, 3
        %s372 = smul.addr %s369, 4
        %s373 = sadd.s32 %s371, %s372
        %s374 = smul.addr %s373, 4
        %s375 = scalar_lea.vmem %s3, %s374
      $region44: #{generator_forward.13} parent=39 // pred_fallthru
        _
    $region40: #{generator_forward.13} parent=5 // pred_fallthru
      _
  $region6: #{generator_forward.13} parent=0 // loop_footer
    %s13 = sadd.s32 1, %s9
  $region7: #{generator_forward.13} parent=0 // loop_footer_branch
    %8 = sbr.rel target = $region3
  $region8: #{generator_forward.13} parent=0 // loop_exit
    _

// kernel: generator_forward.14
$region0: #{generator_forward.14}
  #allocation0 [shape = 'u32[]', space=smem, size = 0x4, offset = 0x4, fixed_abs, tag = 'smem constant byte address 0x4 - core index']
  #allocation1 [shape = 'u32[72,128]{1,0:T(1,128)}', space=vmem, size = 0x9000, scoped, tag = 'internal scratch']
  %s0 = inlined_call_operand.vmem [shape: bf16[128,64], index: 0, kind: input, shape index: {}]
  %s1 = inlined_call_operand.vmem [shape: f32[2,64], index: 1, kind: output, shape index: {}]
  %s2 = sld [smem:[#allocation0]]
  $region18: #{generator_forward.14} parent=0
    _
  %s4 = ssub.s32 1, %s2
  %s5 = scalar_select 0, %s4, %s2
  // Predicated region
  $region2: #{generator_forward.14} parent=0 // pred_check
    _
  $region3: #{generator_forward.14} parent=0 // pred_check_branch
    %7 = sbr.rel (0) target = $region5
  $region4: #{generator_forward.14} parent=0 // pred_region
    _
  $region5: #{generator_forward.14} parent=0 // pred_fallthru
    _
  %p8 = scmp.eq.s32.totalorder 0, 0
  // Predicated region
  $region6: #{generator_forward.14} parent=0 // pred_check
    %p9 = pneg %p8
  $region7: #{generator_forward.14} parent=0 // pred_check_branch
    %11 = sbr.rel (%p9) target = $region9
  $region8: #{generator_forward.14} parent=0 // pred_region
    %vm12 = vcmask 517120
    %13 = vst.msk [vmem:[%s1] sm:$0x3] %vm12, 0.0
  $region9: #{generator_forward.14} parent=0 // pred_fallthru
    _
  %v14 = vld [vmem:[%s0] sm:$0xf]
  %v15 = vld [vmem:[%s0 + $0x4] sm:$0xf]
  %v16 = vld [vmem:[%s0 + $0x8] sm:$0xf]
  %v17 = vld [vmem:[%s0 + $0xc] sm:$0xf]
  %v18 = vld [vmem:[%s0 + $0x10] sm:$0xf]
  %v19 = vld [vmem:[%s0 + $0x14] sm:$0xf]
  %v20 = vld [vmem:[%s0 + $0x18] sm:$0xf]
  %v21 = vld [vmem:[%s0 + $0x1c] sm:$0xf]
  %v22 = vld [vmem:[%s0 + $0x20] sm:$0xf]
  %v23 = vld [vmem:[%s0 + $0x24] sm:$0xf]
  %v24 = vld [vmem:[%s0 + $0x28] sm:$0xf]
  %v25 = vld [vmem:[%s0 + $0x2c] sm:$0xf]
  %v26 = vld [vmem:[%s0 + $0x30] sm:$0xf]
  %v27 = vld [vmem:[%s0 + $0x34] sm:$0xf]
  %v28 = vld [vmem:[%s0 + $0x38] sm:$0xf]
  %v29 = vld [vmem:[%s0 + $0x3c] sm:$0xf]
  %v30 = vunpack.c.l.bf16 %v14
  %v31 = vunpack.c.l.bf16 %v15
  %v32 = vunpack.c.l.bf16 %v16
  %v33 = vunpack.c.l.bf16 %v17
  %v34 = vunpack.c.l.bf16 %v18
  %v35 = vunpack.c.l.bf16 %v19
  %v36 = vunpack.c.l.bf16 %v20
  %v37 = vunpack.c.l.bf16 %v21
  %v38 = vunpack.c.l.bf16 %v22
  %v39 = vunpack.c.l.bf16 %v23
  %v40 = vunpack.c.l.bf16 %v24
  %v41 = vunpack.c.l.bf16 %v25
  %v42 = vunpack.c.l.bf16 %v26
  %v43 = vunpack.c.l.bf16 %v27
  %v44 = vunpack.c.l.bf16 %v28
  %v45 = vunpack.c.l.bf16 %v29
  %v46 = vld [vmem:[%s1] sm:$0x1]
  %vm47 = vcmask 523264
  %v48 = vsel %vm47, %v30, 0.0
  %v49 = vsel %vm47, %v31, 0.0
  %v50 = vadd.f32 %v48, %v49
  %v51 = vsel %vm47, %v32, 0.0
  %v52 = vadd.f32 %v50, %v51
  %v53 = vsel %vm47, %v33, 0.0
  %v54 = vadd.f32 %v52, %v53
  %v55 = vsel %vm47, %v34, 0.0
  %v56 = vadd.f32 %v54, %v55
  %v57 = vsel %vm47, %v35, 0.0
  %v58 = vadd.f32 %v56, %v57
  %v59 = vsel %vm47, %v36, 0.0
  %v60 = vadd.f32 %v58, %v59
  %v61 = vsel %vm47, %v37, 0.0
  %v62 = vadd.f32 %v60, %v61
  %v63 = vsel %vm47, %v38, 0.0
  %v64 = vadd.f32 %v62, %v63
  %v65 = vsel %vm47, %v39, 0.0
  %v66 = vadd.f32 %v64, %v65
  %v67 = vsel %vm47, %v40, 0.0
  %v68 = vadd.f32 %v66, %v67
  %v69 = vsel %vm47, %v41, 0.0
  %v70 = vadd.f32 %v68, %v69
  %v71 = vsel %vm47, %v42, 0.0
  %v72 = vadd.f32 %v70, %v71
  %v73 = vsel %vm47, %v43, 0.0
  %v74 = vadd.f32 %v72, %v73
  %v75 = vsel %vm47, %v44, 0.0
  %v76 = vadd.f32 %v74, %v75
  %v77 = vsel %vm47, %v45, 0.0
  %v78 = vadd.f32 %v76, %v77
  %v79 = vrot.slane %v78, 4
  %v80 = vadd.f32 %v78, %v79
  %v81 = vrot.slane %v80, 2
  %v82 = vadd.f32 %v80, %v81
  %v83 = vrot.slane %v82, 1
  %v84 = vadd.f32 %v82, %v83
  %v85 = vadd.f32 %v46, %v84
  %vm86 = vcmask 516096
  %87 = vst.msk [vmem:[%s1] sm:$0x1] %vm86, %v85
  %v88 = vld [vmem:[%s1 + $0x1] sm:$0x1]
  %v89 = vmul.f32 %v30, %v30
  %v90 = vmul.f32 %v31, %v31
  %v91 = vmul.f32 %v32, %v32
  %v92 = vmul.f32 %v33, %v33
  %v93 = vmul.f32 %v34, %v34
  %v94 = vmul.f32 %v35, %v35
  %v95 = vmul.f32 %v36, %v36
  %v96 = vmul.f32 %v37, %v37
  %v97 = vmul.f32 %v38, %v38
  %v98 = vmul.f32 %v39, %v39
  %v99 = vmul.f32 %v40, %v40
  %v100 = vmul.f32 %v41, %v41
  %v101 = vmul.f32 %v42, %v42
  %v102 = vmul.f32 %v43, %v43
  %v103 = vmul.f32 %v44, %v44
  %v104 = vmul.f32 %v45, %v45
  %v105 = vsel %vm47, %v89, 0.0
  %v106 = vsel %vm47, %v90, 0.0
  %v107 = vadd.f32 %v105, %v106
  %v108 = vsel %vm47, %v91, 0.0
  %v109 = vadd.f32 %v107, %v108
  %v110 = vsel %vm47, %v92, 0.0
  %v111 = vadd.f32 %v109, %v110
  %v112 = vsel %vm47, %v93, 0.0
  %v113 = vadd.f32 %v111, %v112
  %v114 = vsel %vm47, %v94, 0.0
  %v115 = vadd.f32 %v113, %v114
  %v116 = vsel %vm47, %v95, 0.0
  %v117 = vadd.f32 %v115, %v116
  %v118 = vsel %vm47, %v96, 0.0
  %v119 = vadd.f32 %v117, %v118
  %v120 = vsel %vm47, %v97, 0.0
  %v121 = vadd.f32 %v119, %v120
  %v122 = vsel %vm47, %v98, 0.0
  %v123 = vadd.f32 %v121, %v122
  %v124 = vsel %vm47, %v99, 0.0
  %v125 = vadd.f32 %v123, %v124
  %v126 = vsel %vm47, %v100, 0.0
  %v127 = vadd.f32 %v125, %v126
  %v128 = vsel %vm47, %v101, 0.0
  %v129 = vadd.f32 %v127, %v128
  %v130 = vsel %vm47, %v102, 0.0
  %v131 = vadd.f32 %v129, %v130
  %v132 = vsel %vm47, %v103, 0.0
  %v133 = vadd.f32 %v131, %v132
  %v134 = vsel %vm47, %v104, 0.0
  %v135 = vadd.f32 %v133, %v134
  %v136 = vrot.slane %v135, 4
  %v137 = vadd.f32 %v135, %v136
  %v138 = vrot.slane %v137, 2
  %v139 = vadd.f32 %v137, %v138
  %v140 = vrot.slane %v139, 1
  %v141 = vadd.f32 %v139, %v140
  %v142 = vadd.f32 %v88, %v141
  %143 = vst.msk [vmem:[%s1 + $0x1] sm:$0x1] %vm86, %v142
  // Predicated region
  $region10: #{generator_forward.14} parent=0 // pred_check
    _
  $region11: #{generator_forward.14} parent=0 // pred_check_branch
    %145 = sbr.rel (0) target = $region13
  $region12: #{generator_forward.14} parent=0 // pred_region
    _
  $region13: #{generator_forward.14} parent=0 // pred_fallthru
    _
  // Predicated region
  $region14: #{generator_forward.14} parent=0 // pred_check
    _
  $region15: #{generator_forward.14} parent=0 // pred_check_branch
    %147 = sbr.rel (0) target = $region17
  $region16: #{generator_forward.14} parent=0 // pred_region
    _
  $region17: #{generator_forward.14} parent=0 // pred_fallthru
    _

// kernel: generator_forward.15
$region0: #{generator_forward.15}
  #allocation0 [shape = 'u32[]', space=smem, size = 0x4, offset = 0x4, fixed_abs, tag = 'smem constant byte address 0x4 - core index']
  #allocation1 [shape = 'u32[72,128]{1,0:T(1,128)}', space=vmem, size = 0x9000, scoped, tag = 'internal scratch']
  %s0 = inlined_call_operand.vmem [shape: bf16[128,64], index: 0, kind: input, shape index: {}]
  %s1 = inlined_call_operand.vmem [shape: f32[2,64], index: 1, kind: input, shape index: {}]
  %s2 = inlined_call_operand.vmem [shape: f32[1,64], index: 2, kind: input, shape index: {}]
  %s3 = inlined_call_operand.vmem [shape: f32[1,64], index: 3, kind: input, shape index: {}]
  %s4 = inlined_call_operand.vmem [shape: bf16[128,64], index: 4, kind: output, shape index: {}]
  %s5 = sld [smem:[#allocation0]]
  $region26: #{generator_forward.15} parent=0
    _
  %s7 = ssub.s32 1, %s5
  %s8 = scalar_select 0, %s7, %s5
  // Predicated region
  $region2: #{generator_forward.15} parent=0 // pred_check
    _
  $region3: #{generator_forward.15} parent=0 // pred_check_branch
    %10 = sbr.rel (0) target = $region5
  $region4: #{generator_forward.15} parent=0 // pred_region
    _
  $region5: #{generator_forward.15} parent=0 // pred_fallthru
    _
  // Predicated region
  $region6: #{generator_forward.15} parent=0 // pred_check
    _
  $region7: #{generator_forward.15} parent=0 // pred_check_branch
    %12 = sbr.rel (0) target = $region9
  $region8: #{generator_forward.15} parent=0 // pred_region
    _
  $region9: #{generator_forward.15} parent=0 // pred_fallthru
    _
  // Predicated region
  $region10: #{generator_forward.15} parent=0 // pred_check
    _
  $region11: #{generator_forward.15} parent=0 // pred_check_branch
    %14 = sbr.rel (0) target = $region13
  $region12: #{generator_forward.15} parent=0 // pred_region
    _
  $region13: #{generator_forward.15} parent=0 // pred_fallthru
    _
  // Predicated region
  $region14: #{generator_forward.15} parent=0 // pred_check
    _
  $region15: #{generator_forward.15} parent=0 // pred_check_branch
    %16 = sbr.rel (0) target = $region17
  $region16: #{generator_forward.15} parent=0 // pred_region
    _
  $region17: #{generator_forward.15} parent=0 // pred_fallthru
    _
  %v17 = vld [vmem:[%s0] sm:$0xf]
  %v18 = vld [vmem:[%s0 + $0x4] sm:$0xf]
  %v19 = vld [vmem:[%s0 + $0x8] sm:$0xf]
  %v20 = vld [vmem:[%s0 + $0xc] sm:$0xf]
  %v21 = vld [vmem:[%s0 + $0x10] sm:$0xf]
  %v22 = vld [vmem:[%s0 + $0x14] sm:$0xf]
  %v23 = vld [vmem:[%s0 + $0x18] sm:$0xf]
  %v24 = vld [vmem:[%s0 + $0x1c] sm:$0xf]
  %v25 = vld [vmem:[%s0 + $0x20] sm:$0xf]
  %v26 = vld [vmem:[%s0 + $0x24] sm:$0xf]
  %v27 = vld [vmem:[%s0 + $0x28] sm:$0xf]
  %v28 = vld [vmem:[%s0 + $0x2c] sm:$0xf]
  %v29 = vld [vmem:[%s0 + $0x30] sm:$0xf]
  %v30 = vld [vmem:[%s0 + $0x34] sm:$0xf]
  %v31 = vld [vmem:[%s0 + $0x38] sm:$0xf]
  %v32 = vld [vmem:[%s0 + $0x3c] sm:$0xf]
  %v33 = vunpack.c.l.bf16 %v17
  %v34 = vunpack.c.l.bf16 %v18
  %v35 = vunpack.c.l.bf16 %v19
  %v36 = vunpack.c.l.bf16 %v20
  %v37 = vunpack.c.l.bf16 %v21
  %v38 = vunpack.c.l.bf16 %v22
  %v39 = vunpack.c.l.bf16 %v23
  %v40 = vunpack.c.l.bf16 %v24
  %v41 = vunpack.c.l.bf16 %v25
  %v42 = vunpack.c.l.bf16 %v26
  %v43 = vunpack.c.l.bf16 %v27
  %v44 = vunpack.c.l.bf16 %v28
  %v45 = vunpack.c.l.bf16 %v29
  %v46 = vunpack.c.l.bf16 %v30
  %v47 = vunpack.c.l.bf16 %v31
  %v48 = vunpack.c.l.bf16 %v32
  %v49 = vld [vmem:[%s1] sm:$0x1]
  %v50 = vmul.f32 %v49, 0.0078125
  %v51 = vld [vmem:[%s1 + $0x1] sm:$0x1]
  %v52 = vmul.f32 %v51, 0.0078125
  %v53 = vmul.f32 %v50, %v50
  %v54 = vsub.f32 %v52, %v53
  %v55 = vadd.f32 %v54, 1e-05
  %v56 = vrsqrt.pop %v55
  %v57 = vmul.f32 %v56, %v55
  %v58 = vmul.f32 %v57, %v56
  %v59 = vmul.f32 0.5, %v58
  %v60 = vsub.f32 1.5, %v59
  %v61 = vmul.f32 %v56, %v60
  %vm62 = vweird.f32 %v55
  %vm63 = vweird.f32 %v56
  %vm64 = vmor %vm62, %vm63
  %v65 = vsel %vm64, %v56, %v61
  %v66 = vperm.slane %v50, 0
  %v67 = vsub.f32 %v33, %v66
  %v68 = vsub.f32 %v34, %v66
  %v69 = vsub.f32 %v35, %v66
  %v70 = vsub.f32 %v36, %v66
  %v71 = vsub.f32 %v37, %v66
  %v72 = vsub.f32 %v38, %v66
  %v73 = vsub.f32 %v39, %v66
  %v74 = vsub.f32 %v40, %v66
  %v75 = vsub.f32 %v41, %v66
  %v76 = vsub.f32 %v42, %v66
  %v77 = vsub.f32 %v43, %v66
  %v78 = vsub.f32 %v44, %v66
  %v79 = vsub.f32 %v45, %v66
  %v80 = vsub.f32 %v46, %v66
  %v81 = vsub.f32 %v47, %v66
  %v82 = vsub.f32 %v48, %v66
  %v83 = vperm.slane %v65, 0
  %v84 = vmul.f32 %v67, %v83
  %v85 = vmul.f32 %v68, %v83
  %v86 = vmul.f32 %v69, %v83
  %v87 = vmul.f32 %v70, %v83
  %v88 = vmul.f32 %v71, %v83
  %v89 = vmul.f32 %v72, %v83
  %v90 = vmul.f32 %v73, %v83
  %v91 = vmul.f32 %v74, %v83
  %v92 = vmul.f32 %v75, %v83
  %v93 = vmul.f32 %v76, %v83
  %v94 = vmul.f32 %v77, %v83
  %v95 = vmul.f32 %v78, %v83
  %v96 = vmul.f32 %v79, %v83
  %v97 = vmul.f32 %v80, %v83
  %v98 = vmul.f32 %v81, %v83
  %v99 = vmul.f32 %v82, %v83
  %v100 = vld [vmem:[%s2] sm:$0x1]
  %v102 = vperm.slane %v100, 0
  %v104 = vmul.f32 %v84, %v102
  %v105 = vmul.f32 %v85, %v102
  %v106 = vmul.f32 %v86, %v102
  %v107 = vmul.f32 %v87, %v102
  %v108 = vmul.f32 %v88, %v102
  %v109 = vmul.f32 %v89, %v102
  %v110 = vmul.f32 %v90, %v102
  %v111 = vmul.f32 %v91, %v102
  %v112 = vmul.f32 %v92, %v102
  %v113 = vmul.f32 %v93, %v102
  %v114 = vmul.f32 %v94, %v102
  %v115 = vmul.f32 %v95, %v102
  %v116 = vmul.f32 %v96, %v102
  %v117 = vmul.f32 %v97, %v102
  %v118 = vmul.f32 %v98, %v102
  %v119 = vmul.f32 %v99, %v102
  %v120 = vld [vmem:[%s3] sm:$0x1]
  %v122 = vperm.slane %v120, 0
  %v124 = vadd.f32 %v104, %v122
  %v125 = vadd.f32 %v105, %v122
  %v126 = vadd.f32 %v106, %v122
  %v127 = vadd.f32 %v107, %v122
  %v128 = vadd.f32 %v108, %v122
  %v129 = vadd.f32 %v109, %v122
  %v130 = vadd.f32 %v110, %v122
  %v131 = vadd.f32 %v111, %v122
  %v132 = vadd.f32 %v112, %v122
  %v133 = vadd.f32 %v113, %v122
  %v134 = vadd.f32 %v114, %v122
  %v135 = vadd.f32 %v115, %v122
  %v136 = vadd.f32 %v116, %v122
  %v137 = vadd.f32 %v117, %v122
  %v138 = vadd.f32 %v118, %v122
  %v139 = vadd.f32 %v119, %v122
  %v140 = vpack.c.bf16 %v124, %v124
  %v141 = vpack.c.bf16 %v125, %v125
  %v142 = vpack.c.bf16 %v126, %v126
  %v143 = vpack.c.bf16 %v127, %v127
  %v144 = vpack.c.bf16 %v128, %v128
  %v145 = vpack.c.bf16 %v129, %v129
  %v146 = vpack.c.bf16 %v130, %v130
  %v147 = vpack.c.bf16 %v131, %v131
  %v148 = vpack.c.bf16 %v132, %v132
  %v149 = vpack.c.bf16 %v133, %v133
  %v150 = vpack.c.bf16 %v134, %v134
  %v151 = vpack.c.bf16 %v135, %v135
  %v152 = vpack.c.bf16 %v136, %v136
  %v153 = vpack.c.bf16 %v137, %v137
  %v154 = vpack.c.bf16 %v138, %v138
  %v155 = vpack.c.bf16 %v139, %v139
  %vm156 = vcmask 519168
  %157 = vst.msk [vmem:[%s4] sm:$0xf] %vm156, %v140
  %158 = vst.msk [vmem:[%s4 + $0x4] sm:$0xf] %vm156, %v141
  %159 = vst.msk [vmem:[%s4 + $0x8] sm:$0xf] %vm156, %v142
  %160 = vst.msk [vmem:[%s4 + $0xc] sm:$0xf] %vm156, %v143
  %161 = vst.msk [vmem:[%s4 + $0x10] sm:$0xf] %vm156, %v144
  %162 = vst.msk [vmem:[%s4 + $0x14] sm:$0xf] %vm156, %v145
  %163 = vst.msk [vmem:[%s4 + $0x18] sm:$0xf] %vm156, %v146
  %164 = vst.msk [vmem:[%s4 + $0x1c] sm:$0xf] %vm156, %v147
  %165 = vst.msk [vmem:[%s4 + $0x20] sm:$0xf] %vm156, %v148
  %166 = vst.msk [vmem:[%s4 + $0x24] sm:$0xf] %vm156, %v149
  %167 = vst.msk [vmem:[%s4 + $0x28] sm:$0xf] %vm156, %v150
  %168 = vst.msk [vmem:[%s4 + $0x2c] sm:$0xf] %vm156, %v151
  %169 = vst.msk [vmem:[%s4 + $0x30] sm:$0xf] %vm156, %v152
  %170 = vst.msk [vmem:[%s4 + $0x34] sm:$0xf] %vm156, %v153
  %171 = vst.msk [vmem:[%s4 + $0x38] sm:$0xf] %vm156, %v154
  %172 = vst.msk [vmem:[%s4 + $0x3c] sm:$0xf] %vm156, %v155
  // Predicated region
  $region18: #{generator_forward.15} parent=0 // pred_check
    _
  $region19: #{generator_forward.15} parent=0 // pred_check_branch
    %174 = sbr.rel (0) target = $region21
  $region20: #{generator_forward.15} parent=0 // pred_region
    _
  $region21: #{generator_forward.15} parent=0 // pred_fallthru
    _
  // Predicated region
  $region22: #{generator_forward.15} parent=0 // pred_check
    _
  $region23: #{generator_forward.15} parent=0 // pred_check_branch
    %176 = sbr.rel (0) target = $region25
  $region24: #{generator_forward.15} parent=0 // pred_region
    _
  $region25: #{generator_forward.15} parent=0 // pred_fallthru
    _

// kernel: generator_forward.16
$region0: #{generator_forward.16}
  #allocation0 [shape = 'u32[]', space=smem, size = 0x4, offset = 0x4, fixed_abs, tag = 'smem constant byte address 0x4 - core index']
  #allocation1 [shape = 'u32[72,128]{1,0:T(1,128)}', space=vmem, size = 0x9000, scoped, tag = 'internal scratch']
  %s0 = inlined_call_operand.vmem [shape: bf16[4,128,256], index: 0, kind: input, shape index: {}]
  %s1 = inlined_call_operand.vmem [shape: bf16[4,256,128], index: 1, kind: input, shape index: {}]
  %s2 = inlined_call_operand.vmem [shape: f32[1,128], index: 2, kind: input, shape index: {}]
  %s3 = inlined_call_operand.vmem [shape: bf16[4,128,128], index: 3, kind: output, shape index: {}]
  %s4 = sld [smem:[#allocation0]]
  $region45: #{generator_forward.16} parent=0
    _
  %s6 = ssub.s32 1, %s4
  %s7 = scalar_select 0, %s6, %s4
  loop: start=0, step=1, limit=6
  $region2: #{generator_forward.16} parent=0 // loop_pre_header
    _
  $region3: #{generator_forward.16} parent=0 // loop_header
    %s9 = sphi 0, %s13
    %p10 = scmp.ge.s32.totalorder %s9, 6
    %s16 = sphi 0, %s28
    %s17 = sphi 0, %s24
    %s18 = sphi 0, %s16
    %s19 = sphi 0, %s17
    %s20 = sphi 0, %s18
    %s21 = sphi 0, %s19
    %s33 = sphi 0, %s35
    %s36 = sphi 0, %s33
    %s37 = sphi 0, %s36
    %s53 = sphi 0, %s37
    %s59 = sphi 0, %s61
    %s62 = sphi 0, %s59
    %s63 = sphi 0, %s62
    %s79 = sphi 0, %s63
    %s83 = sphi 0, %s83
    %s85 = sphi 0, %s83
    %s86 = sphi 0, %s85
    %s100 = sphi 0, %s86
    %s108 = sphi 0, %s110
    %s111 = sphi 0, %s108
    %s112 = sphi 0, %s111
    %s128 = sphi 0, %s112
  $region4: #{generator_forward.16} parent=0 // loop_header_branch
    %12 = sbr.rel (%p10) target = $region8
  $region5: #{generator_forward.16} parent=0 // loop_body
    %s14 = ssub.s32 %s9, 1
    %s15 = ssub.s32 %s9, 2
    %s22 = sadd.s32 1, %s17
    %p23 = scmp.ge.s32.totalorder %s22, 1
    %s24 = scalar_select %p23, 0, %s22
    %s25 = sadd.s32 1, %s16
    %s26 = scalar_select %p23, %s25, %s16
    %p27 = scmp.ge.s32.totalorder %s26, 4
    %s28 = scalar_select %p27, 0, %s26
    %s29 = ssub.s32 %s16, %s28
    %s30 = ssub.s32 %s17, %s24
    %s31 = sor.u32 %s29, %s30
    %p32 = scmp.eq.s32.totalorder %s31, 0
    %s34 = sadd.s32 %s33, 1
    %s35 = scalar_select %p32, %s33, %s34
    %p38 = pneg %p32
    %p39 = scmp.eq.s32.totalorder %s9, 3
    %p40 = por %p38, %p39
    %p41 = scmp.ne.s32.totalorder %s33, %s36
    %p42 = scmp.eq.s32.totalorder %s9, 0
    %p43 = por %p41, %p42
    %p44 = scmp.ne.s32.totalorder %s33, %s36
    %p45 = scmp.eq.s32.totalorder %s14, 3
    %p46 = por %p44, %p45
    %p47 = scmp.ne.s32.totalorder %s36, %s37
    %p48 = scmp.eq.s32.totalorder %s14, 0
    %p49 = por %p47, %p48
    %p50 = scmp.ne.s32.totalorder %s36, %s37
    %p51 = scmp.eq.s32.totalorder %s15, 3
    %p52 = por %p50, %p51
    %p54 = scmp.ne.s32.totalorder %s37, %s53
    %p55 = scmp.eq.s32.totalorder %s15, 0
    %p56 = por %p54, %p55
    %s57 = ssub.s32 %s16, %s28
    %p58 = scmp.eq.s32.totalorder %s57, 0
    %s60 = sadd.s32 %s59, 1
    %s61 = scalar_select %p58, %s59, %s60
    %p64 = pneg %p58
    %p65 = scmp.eq.s32.totalorder %s9, 3
    %p66 = por %p64, %p65
    %p67 = scmp.ne.s32.totalorder %s59, %s62
    %p68 = scmp.eq.s32.totalorder %s9, 0
    %p69 = por %p67, %p68
    %p70 = scmp.ne.s32.totalorder %s59, %s62
    %p71 = scmp.eq.s32.totalorder %s14, 3
    %p72 = por %p70, %p71
    %p73 = scmp.ne.s32.totalorder %s62, %s63
    %p74 = scmp.eq.s32.totalorder %s14, 0
    %p75 = por %p73, %p74
    %p76 = scmp.ne.s32.totalorder %s62, %s63
    %p77 = scmp.eq.s32.totalorder %s15, 3
    %p78 = por %p76, %p77
    %p80 = scmp.ne.s32.totalorder %s63, %s79
    %p81 = scmp.eq.s32.totalorder %s15, 0
    %p82 = por %p80, %p81
    %s84 = sadd.s32 %s83, 1
    %p87 = scmp.eq.s32.totalorder %s9, 3
    %p88 = scmp.ne.s32.totalorder %s83, %s85
    %p89 = scmp.eq.s32.totalorder %s9, 0
    %p90 = por %p88, %p89
    %p91 = scmp.ne.s32.totalorder %s83, %s85
    %p92 = scmp.eq.s32.totalorder %s14, 3
    %p93 = por %p91, %p92
    %p94 = scmp.ne.s32.totalorder %s85, %s86
    %p95 = scmp.eq.s32.totalorder %s14, 0
    %p96 = por %p94, %p95
    %p97 = scmp.ne.s32.totalorder %s85, %s86
    %p98 = scmp.eq.s32.totalorder %s15, 3
    %p99 = por %p97, %p98
    %p101 = scmp.ne.s32.totalorder %s86, %s100
    %p102 = scmp.eq.s32.totalorder %s15, 0
    %p103 = por %p101, %p102
    %s104 = ssub.s32 %s16, %s28
    %s105 = ssub.s32 %s17, %s24
    %s106 = sor.u32 %s104, %s105
    %p107 = scmp.eq.s32.totalorder %s106, 0
    %s109 = sadd.s32 %s108, 1
    %s110 = scalar_select %p107, %s108, %s109
    %p113 = pneg %p107
    %p114 = scmp.eq.s32.totalorder %s9, 3
    %p115 = por %p113, %p114
    %p116 = scmp.ne.s32.totalorder %s108, %s111
    %p117 = scmp.eq.s32.totalorder %s9, 0
    %p118 = por %p116, %p117
    %p119 = scmp.ne.s32.totalorder %s108, %s111
    %p120 = scmp.eq.s32.totalorder %s14, 3
    %p121 = por %p119, %p120
    %p122 = scmp.ne.s32.totalorder %s111, %s112
    %p123 = scmp.eq.s32.totalorder %s14, 0
    %p124 = por %p122, %p123
    %p125 = scmp.ne.s32.totalorder %s111, %s112
    %p126 = scmp.eq.s32.totalorder %s15, 3
    %p127 = por %p125, %p126
    %p129 = scmp.ne.s32.totalorder %s112, %s128
    %p130 = scmp.eq.s32.totalorder %s15, 0
    %p131 = por %p129, %p130
    %p132 = scmp.le.s32.totalorder 1, %s9
    %p133 = scmp.lt.s32.totalorder %s9, 5
    %p134 = pnand %p132, %p133
    %p135 = pneg %p134
    // Predicated region
    $region9: #{generator_forward.16} parent=5 // pred_check
      _
    $region10: #{generator_forward.16} parent=5 // pred_check_branch
      %137 = sbr.rel (%p134) target = $region12
    $region11: #{generator_forward.16} parent=5 // pred_region
      %s138 = ssub.s32 %s9, 1
      // Predicated region
      $region13: #{generator_forward.16} parent=11 // pred_check
        %p139 = pneg %p96
      $region14: #{generator_forward.16} parent=11 // pred_check_branch
        %141 = sbr.rel (%p139) target = $region16
      $region15: #{generator_forward.16} parent=11 // pred_region
        _
      $region16: #{generator_forward.16} parent=11 // pred_fallthru
        _
    $region12: #{generator_forward.16} parent=5 // pred_fallthru
      _
    %p142 = scmp.lt.s32.totalorder %s9, 4
    // Predicated region
    $region17: #{generator_forward.16} parent=5 // pred_check
      %p143 = pneg %p142
    $region18: #{generator_forward.16} parent=5 // pred_check_branch
      %145 = sbr.rel (%p143) target = $region20
    $region19: #{generator_forward.16} parent=5 // pred_region
      // Predicated region
      $region21: #{generator_forward.16} parent=19 // pred_check
        %p146 = pneg %p43
      $region22: #{generator_forward.16} parent=19 // pred_check_branch
        %148 = sbr.rel (%p146) target = $region24
      $region23: #{generator_forward.16} parent=19 // pred_region
        %s149 = smul.u32 16, %s17
        %p150 = scmp.lt.s32.totalorder %s16, 3
        %s151 = scalar_select %p150, %s16, 3
        %p152 = scmp.lt.s32.totalorder %s149, 15
        %s153 = scalar_select %p152, %s149, 15
        %s154 = smul.addr %s153, 2
        %s155 = smul.addr %s151, 32
        %s156 = sadd.s32 %s154, %s155
        %s157 = smul.addr %s156, 4
        %s158 = scalar_lea.vmem %s0, %s157
        %s159 = smul.u32 16, %s17
      $region24: #{generator_forward.16} parent=19 // pred_fallthru
        _
      // Predicated region
      $region25: #{generator_forward.16} parent=19 // pred_check
        %p160 = pneg %p69
      $region26: #{generator_forward.16} parent=19 // pred_check_branch
        %162 = sbr.rel (%p160) target = $region28
      $region27: #{generator_forward.16} parent=19 // pred_region
        %p163 = scmp.lt.s32.totalorder %s16, 3
        %s164 = scalar_select %p163, %s16, 3
        %s165 = smul.addr %s164, 32
        %s166 = smul.addr %s165, 4
        %s167 = scalar_lea.vmem %s1, %s166
      $region28: #{generator_forward.16} parent=19 // pred_fallthru
        _
    $region20: #{generator_forward.16} parent=5 // pred_fallthru
      _
    %p168 = scmp.le.s32.totalorder 1, %s9
    %p169 = scmp.lt.s32.totalorder %s9, 5
    %p170 = pnand %p168, %p169
    %p171 = pneg %p170
    // Predicated region
    $region29: #{generator_forward.16} parent=5 // pred_check
      _
    $region30: #{generator_forward.16} parent=5 // pred_check_branch
      %173 = sbr.rel (%p170) target = $region32
    $region31: #{generator_forward.16} parent=5 // pred_region
      %s174 = ssub.s32 %s9, 1
      %s175 = smul.u32 16, %s19
      %p176 = scmp.lt.s32.totalorder %s18, 3
      %s177 = scalar_select %p176, %s18, 3
      %p178 = scmp.lt.s32.totalorder %s175, 15
      %s179 = scalar_select %p178, %s175, 15
      %s180 = smul.addr %s179, 2
      %s181 = smul.addr %s177, 32
      %s182 = sadd.s32 %s180, %s181
      %s183 = smul.addr %s182, 4
      %s184 = scalar_lea.vmem %s0, %s183
      %p185 = pneg %p49
      %p186 = pneg %p46
      %p187 = scmp.lt.s32.totalorder %s18, 3
      %s188 = scalar_select %p187, %s18, 3
      %s189 = smul.addr %s188, 32
      %s190 = smul.addr %s189, 4
      %s191 = scalar_lea.vmem %s1, %s190
      %p192 = pneg %p75
      %p193 = pneg %p72
      %p194 = pneg %p96
      %p195 = pneg %p93
      %p196 = pneg %p124
      %p197 = pneg %p121
      %s198 = smul.u32 16, %s19
      %p199 = scmp.lt.s32.totalorder %s18, 3
      %s200 = scalar_select %p199, %s18, 3
      %p201 = scmp.lt.s32.totalorder %s198, 15
      %s202 = scalar_select %p201, %s198, 15
      %s203 = smul.addr %s200, 16
      %s204 = sadd.s32 %s202, %s203
      %s205 = smul.addr %s204, 4
      %s206 = scalar_lea.vmem %s3, %s205
      %s207 = smul.u32 16, %s19
      %p208 = scmp.lt.s32.totalorder %s18, 3
      %s209 = scalar_select %p208, %s18, 3
      %p210 = scmp.lt.s32.totalorder %s207, 15
      %s211 = scalar_select %p210, %s207, 15
      %s212 = smul.addr %s211, 2
      %s213 = smul.addr %s209, 32
      %s214 = sadd.s32 %s212, %s213
      %s215 = smul.addr %s214, 4
      %s216 = scalar_lea.vmem %s0, %s215
      %s217 = smul.u32 16, %s19
      %p218 = scmp.lt.s32.totalorder %s18, 3
      %s219 = scalar_select %p218, %s18, 3
      %s220 = smul.addr %s219, 32
      %s221 = smul.addr %s220, 4
      %s222 = scalar_lea.vmem %s1, %s221
      %s223 = smul.u32 16, %s19
      %p224 = scmp.lt.s32.totalorder %s18, 3
      %s225 = scalar_select %p224, %s18, 3
      %p226 = scmp.lt.s32.totalorder %s223, 15
      %s227 = scalar_select %p226, %s223, 15
      %s228 = smul.addr %s225, 16
      %s229 = sadd.s32 %s227, %s228
      %s230 = smul.addr %s229, 4
      %s231 = scalar_lea.vmem %s3, %s230
      %s232 = smul.u32 16, %s19
      %v233 = vld [vmem:[%s216] sm:$0xff]
      %v234 = vld [vmem:[%s216 + $0x8] sm:$0xff]
      %v235 = vld [vmem:[%s216 + $0x10] sm:$0xff]
      %v236 = vld [vmem:[%s216 + $0x18] sm:$0xff]
      %v237 = vld [vmem:[%s216 + $0x20] sm:$0xff]
      %v238 = vld [vmem:[%s216 + $0x28] sm:$0xff]
      %v239 = vld [vmem:[%s216 + $0x30] sm:$0xff]
      %v240 = vld [vmem:[%s216 + $0x38] sm:$0xff]
      %v241 = vld [vmem:[%s216 + $0x40] sm:$0xff]
      %v242 = vld [vmem:[%s216 + $0x48] sm:$0xff]
      %v243 = vld [vmem:[%s216 + $0x50] sm:$0xff]
      %v244 = vld [vmem:[%s216 + $0x58] sm:$0xff]
      %v245 = vld [vmem:[%s216 + $0x60] sm:$0xff]
      %v246 = vld [vmem:[%s216 + $0x68] sm:$0xff]
      %v247 = vld [vmem:[%s216 + $0x70] sm:$0xff]
      %v248 = vld [vmem:[%s216 + $0x78] sm:$0xff]
      %v249 = vld [vmem:[%s222] sm:$0xf]
      %v250 = vld [vmem:[%s222 + $0x4] sm:$0xf]
      %v251 = vld [vmem:[%s222 + $0x8] sm:$0xf]
      %v252 = vld [vmem:[%s222 + $0xc] sm:$0xf]
      %v253 = vld [vmem:[%s222 + $0x10] sm:$0xf]
      %v254 = vld [vmem:[%s222 + $0x14] sm:$0xf]
      %v255 = vld [vmem:[%s222 + $0x18] sm:$0xf]
      %v256 = vld [vmem:[%s222 + $0x1c] sm:$0xf]
      %v257 = vld [vmem:[%s222 + $0x20] sm:$0xf]
      %v258 = vld [vmem:[%s222 + $0x24] sm:$0xf]
      %v259 = vld [vmem:[%s222 + $0x28] sm:$0xf]
      %v260 = vld [vmem:[%s222 + $0x2c] sm:$0xf]
      %v261 = vld [vmem:[%s222 + $0x30] sm:$0xf]
      %v262 = vld [vmem:[%s222 + $0x34] sm:$0xf]
      %v263 = vld [vmem:[%s222 + $0x38] sm:$0xf]
      %v264 = vld [vmem:[%s222 + $0x3c] sm:$0xf]
      %v265 = vld [vmem:[%s222 + $0x40] sm:$0xf]
      %v266 = vld [vmem:[%s222 + $0x44] sm:$0xf]
      %v267 = vld [vmem:[%s222 + $0x48] sm:$0xf]
      %v268 = vld [vmem:[%s222 + $0x4c] sm:$0xf]
      %v269 = vld [vmem:[%s222 + $0x50] sm:$0xf]
      %v270 = vld [vmem:[%s222 + $0x54] sm:$0xf]
      %v271 = vld [vmem:[%s222 + $0x58] sm:$0xf]
      %v272 = vld [vmem:[%s222 + $0x5c] sm:$0xf]
      %v273 = vld [vmem:[%s222 + $0x60] sm:$0xf]
      %v274 = vld [vmem:[%s222 + $0x64] sm:$0xf]
      %v275 = vld [vmem:[%s222 + $0x68] sm:$0xf]
      %v276 = vld [vmem:[%s222 + $0x6c] sm:$0xf]
      %v277 = vld [vmem:[%s222 + $0x70] sm:$0xf]
      %v278 = vld [vmem:[%s222 + $0x74] sm:$0xf]
      %v279 = vld [vmem:[%s222 + $0x78] sm:$0xf]
      %v280 = vld [vmem:[%s222 + $0x7c] sm:$0xf]
      %v281 = vld [vmem:[%s2] sm:$0x1]
      %v283 = vperm.slane %v281, 0
      %v301 = vunpack.c.l.b16 %v233
      %v302 = vunpack.c.h.b16 %v233
      %v303 = vunpack.c.l.b16 %v234
      %v304 = vunpack.c.h.b16 %v234
      %v305 = vunpack.c.l.b16 %v235
      %v306 = vunpack.c.h.b16 %v235
      %v307 = vunpack.c.l.b16 %v236
      %v308 = vunpack.c.h.b16 %v236
      %v309 = vunpack.c.l.b16 %v237
      %v310 = vunpack.c.h.b16 %v237
      %v311 = vunpack.c.l.b16 %v238
      %v312 = vunpack.c.h.b16 %v238
      %v313 = vunpack.c.l.b16 %v239
      %v314 = vunpack.c.h.b16 %v239
      %v315 = vunpack.c.l.b16 %v240
      %v316 = vunpack.c.h.b16 %v240
      %v317 = vunpack.c.l.b16 %v241
      %v318 = vunpack.c.h.b16 %v241
      %v319 = vunpack.c.l.b16 %v242
      %v320 = vunpack.c.h.b16 %v242
      %v321 = vunpack.c.l.b16 %v243
      %v322 = vunpack.c.h.b16 %v243
      %v323 = vunpack.c.l.b16 %v244
      %v324 = vunpack.c.h.b16 %v244
      %v325 = vunpack.c.l.b16 %v245
      %v326 = vunpack.c.h.b16 %v245
      %v327 = vunpack.c.l.b16 %v246
      %v328 = vunpack.c.h.b16 %v246
      %v329 = vunpack.c.l.b16 %v247
      %v330 = vunpack.c.h.b16 %v247
      %v331 = vunpack.c.l.b16 %v248
      %v332 = vunpack.c.h.b16 %v248
      %v333 = vpack.c.b16 %v303, %v301
      %v334 = vpack.c.b16 %v304, %v302
      %v335 = vpack.c.b16 %v307, %v305
      %v336 = vpack.c.b16 %v308, %v306
      %v337 = vpack.c.b16 %v311, %v309
      %v338 = vpack.c.b16 %v312, %v310
      %v339 = vpack.c.b16 %v315, %v313
      %v340 = vpack.c.b16 %v316, %v314
      %v341 = vpack.c.b16 %v319, %v317
      %v342 = vpack.c.b16 %v320, %v318
      %v343 = vpack.c.b16 %v323, %v321
      %v344 = vpack.c.b16 %v324, %v322
      %v345 = vpack.c.b16 %v327, %v325
      %v346 = vpack.c.b16 %v328, %v326
      %v347 = vpack.c.b16 %v331, %v329
      %v348 = vpack.c.b16 %v332, %v330
      %v397 = vunpack.c.l.b16 %v249
      %v398 = vunpack.c.l.b16 %v250
      %v399 = vunpack.c.l.b16 %v251
      %v400 = vunpack.c.l.b16 %v252
      %v401 = vunpack.c.l.b16 %v253
      %v402 = vunpack.c.l.b16 %v254
      %v403 = vunpack.c.l.b16 %v255
      %v404 = vunpack.c.l.b16 %v256
      %v405 = vunpack.c.l.b16 %v257
      %v406 = vunpack.c.l.b16 %v258
      %v407 = vunpack.c.l.b16 %v259
      %v408 = vunpack.c.l.b16 %v260
      %v409 = vunpack.c.l.b16 %v261
      %v410 = vunpack.c.l.b16 %v262
      %v411 = vunpack.c.l.b16 %v263
      %v412 = vunpack.c.l.b16 %v264
      %v413 = vunpack.c.l.b16 %v265
      %v414 = vunpack.c.l.b16 %v266
      %v415 = vunpack.c.l.b16 %v267
      %v416 = vunpack.c.l.b16 %v268
      %v417 = vunpack.c.l.b16 %v269
      %v418 = vunpack.c.l.b16 %v270
      %v419 = vunpack.c.l.b16 %v271
      %v420 = vunpack.c.l.b16 %v272
      %v421 = vunpack.c.l.b16 %v273
      %v422 = vunpack.c.l.b16 %v274
      %v423 = vunpack.c.l.b16 %v275
      %v424 = vunpack.c.l.b16 %v276
      %v425 = vunpack.c.l.b16 %v277
      %v426 = vunpack.c.l.b16 %v278
      %v427 = vunpack.c.l.b16 %v279
      %v428 = vunpack.c.l.b16 %v280
      %v429 = vpack.c.b16 %v398, %v397
      %v430 = vpack.c.b16 %v400, %v399
      %v431 = vpack.c.b16 %v402, %v401
      %v432 = vpack.c.b16 %v404, %v403
      %v433 = vpack.c.b16 %v406, %v405
      %v434 = vpack.c.b16 %v408, %v407
      %v435 = vpack.c.b16 %v410, %v409
      %v436 = vpack.c.b16 %v412, %v411
      %v437 = vpack.c.b16 %v414, %v413
      %v438 = vpack.c.b16 %v416, %v415
      %v439 = vpack.c.b16 %v418, %v417
      %v440 = vpack.c.b16 %v420, %v419
      %v441 = vpack.c.b16 %v422, %v421
      %v442 = vpack.c.b16 %v424, %v423
      %v443 = vpack.c.b16 %v426, %v425
      %v444 = vpack.c.b16 %v428, %v427
      %461 = vmatpush.bf16.msra.mxu0 %v436
      %462 = vmatpush.bf16.msra.mxu0 %v435
      %463 = vmatpush.bf16.msra.mxu0 %v434
      %464 = vmatpush.bf16.msra.mxu0 %v433
      %465 = vmatpush.bf16.msra.mxu0 %v432
      %466 = vmatpush.bf16.msra.mxu0 %v431
      %467 = vmatpush.bf16.msra.mxu0 %v430
      %468 = vmatpush.bf16.msra.mxu0 %v429
      %469 = vmatmul.bf16.gmra.mxu0 %v333
      %v470 = vpop.f32.mrf.mxu0
      %v471 = vadd.f32 %v283, %v470
      %v472 = vpop.f32.mrf.mxu0
      %v473 = vadd.f32 %v283, %v472
      %474 = vmatmul.bf16.gmra.mxu0 %v335
      %v475 = vpop.f32.mrf.mxu0
      %v476 = vadd.f32 %v283, %v475
      %v477 = vpop.f32.mrf.mxu0
      %v478 = vadd.f32 %v283, %v477
      %479 = vmatmul.bf16.gmra.mxu0 %v337
      %v480 = vpop.f32.mrf.mxu0
      %v481 = vadd.f32 %v283, %v480
      %v482 = vpop.f32.mrf.mxu0
      %v483 = vadd.f32 %v283, %v482
      %484 = vmatmul.bf16.gmra.mxu0 %v339
      %v485 = vpop.f32.mrf.mxu0
      %v486 = vadd.f32 %v283, %v485
      %v487 = vpop.f32.mrf.mxu0
      %v488 = vadd.f32 %v283, %v487
      %489 = vmatmul.bf16.gmra.mxu0 %v341
      %v490 = vpop.f32.mrf.mxu0
      %v491 = vadd.f32 %v283, %v490
      %v492 = vpop.f32.mrf.mxu0
      %v493 = vadd.f32 %v283, %v492
      %494 = vmatmul.bf16.gmra.mxu0 %v343
      %v495 = vpop.f32.mrf.mxu0
      %v496 = vadd.f32 %v283, %v495
      %v497 = vpop.f32.mrf.mxu0
      %v498 = vadd.f32 %v283, %v497
      %499 = vmatmul.bf16.gmra.mxu0 %v345
      %v500 = vpop.f32.mrf.mxu0
      %v501 = vadd.f32 %v283, %v500
      %v502 = vpop.f32.mrf.mxu0
      %v503 = vadd.f32 %v283, %v502
      %504 = vmatmul.bf16.gmra.mxu0 %v347
      %v505 = vpop.f32.mrf.mxu0
      %v506 = vadd.f32 %v283, %v505
      %v507 = vpop.f32.mrf.mxu0
      %v508 = vadd.f32 %v283, %v507
      %509 = vdwg.mxu0
      %510 = vmatpush.bf16.msra.mxu0 %v444
      %511 = vmatpush.bf16.msra.mxu0 %v443
      %512 = vmatpush.bf16.msra.mxu0 %v442
      %513 = vmatpush.bf16.msra.mxu0 %v441
      %514 = vmatpush.bf16.msra.mxu0 %v440
      %515 = vmatpush.bf16.msra.mxu0 %v439
      %516 = vmatpush.bf16.msra.mxu0 %v438
      %517 = vmatpush.bf16.msra.mxu0 %v437
      %518 = vmatmul.bf16.gmra.mxu0 %v334
      %v519 = vpop.f32.mrf.mxu0
      %v520 = vadd.f32 %v471, %v519
      %v521 = vpop.f32.mrf.mxu0
      %v522 = vadd.f32 %v473, %v521
      %523 = vmatmul.bf16.gmra.mxu0 %v336
      %v524 = vpop.f32.mrf.mxu0
      %v525 = vadd.f32 %v476, %v524
      %v526 = vpop.f32.mrf.mxu0
      %v527 = vadd.f32 %v478, %v526
      %528 = vmatmul.bf16.gmra.mxu0 %v338
      %v529 = vpop.f32.mrf.mxu0
      %v530 = vadd.f32 %v481, %v529
      %v531 = vpop.f32.mrf.mxu0
      %v532 = vadd.f32 %v483, %v531
      %533 = vmatmul.bf16.gmra.mxu0 %v340
      %v534 = vpop.f32.mrf.mxu0
      %v535 = vadd.f32 %v486, %v534
      %v536 = vpop.f32.mrf.mxu0
      %v537 = vadd.f32 %v488, %v536
      %538 = vmatmul.bf16.gmra.mxu0 %v342
      %v539 = vpop.f32.mrf.mxu0
      %v540 = vadd.f32 %v491, %v539
      %v541 = vpop.f32.mrf.mxu0
      %v542 = vadd.f32 %v493, %v541
      %543 = vmatmul.bf16.gmra.mxu0 %v344
      %v544 = vpop.f32.mrf.mxu0
      %v545 = vadd.f32 %v496, %v544
      %v546 = vpop.f32.mrf.mxu0
      %v547 = vadd.f32 %v498, %v546
      %548 = vmatmul.bf16.gmra.mxu0 %v346
      %v549 = vpop.f32.mrf.mxu0
      %v550 = vadd.f32 %v501, %v549
      %v551 = vpop.f32.mrf.mxu0
      %v552 = vadd.f32 %v503, %v551
      %553 = vmatmul.bf16.gmra.mxu0 %v348
      %v554 = vpop.f32.mrf.mxu0
      %v555 = vadd.f32 %v506, %v554
      %v556 = vpop.f32.mrf.mxu0
      %v557 = vadd.f32 %v508, %v556
      %558 = vdwg.mxu0
      %v559 = vmax.f32 %v520, 0.0
      %v560 = vmax.f32 %v522, 0.0
      %v561 = vmax.f32 %v525, 0.0
      %v562 = vmax.f32 %v527, 0.0
      %v563 = vmax.f32 %v530, 0.0
      %v564 = vmax.f32 %v532, 0.0
      %v565 = vmax.f32 %v535, 0.0
      %v566 = vmax.f32 %v537, 0.0
      %v567 = vmax.f32 %v540, 0.0
      %v568 = vmax.f32 %v542, 0.0
      %v569 = vmax.f32 %v545, 0.0
      %v570 = vmax.f32 %v547, 0.0
      %v571 = vmax.f32 %v550, 0.0
      %v572 = vmax.f32 %v552, 0.0
      %v573 = vmax.f32 %v555, 0.0
      %v574 = vmax.f32 %v557, 0.0
      %v575 = vpack.c.bf16 %v559, %v559
      %v576 = vpack.c.bf16 %v560, %v560
      %v577 = vpack.c.bf16 %v561, %v561
      %v578 = vpack.c.bf16 %v562, %v562
      %v579 = vpack.c.bf16 %v563, %v563
      %v580 = vpack.c.bf16 %v564, %v564
      %v581 = vpack.c.bf16 %v565, %v565
      %v582 = vpack.c.bf16 %v566, %v566
      %v583 = vpack.c.bf16 %v567, %v567
      %v584 = vpack.c.bf16 %v568, %v568
      %v585 = vpack.c.bf16 %v569, %v569
      %v586 = vpack.c.bf16 %v570, %v570
      %v587 = vpack.c.bf16 %v571, %v571
      %v588 = vpack.c.bf16 %v572, %v572
      %v589 = vpack.c.bf16 %v573, %v573
      %v590 = vpack.c.bf16 %v574, %v574
      %591 = vst [vmem:[%s231] sm:$0xf] %v575
      %592 = vst [vmem:[%s231 + $0x4] sm:$0xf] %v576
      %593 = vst [vmem:[%s231 + $0x8] sm:$0xf] %v577
      %594 = vst [vmem:[%s231 + $0xc] sm:$0xf] %v578
      %595 = vst [vmem:[%s231 + $0x10] sm:$0xf] %v579
      %596 = vst [vmem:[%s231 + $0x14] sm:$0xf] %v580
      %597 = vst [vmem:[%s231 + $0x18] sm:$0xf] %v581
      %598 = vst [vmem:[%s231 + $0x1c] sm:$0xf] %v582
      %599 = vst [vmem:[%s231 + $0x20] sm:$0xf] %v583
      %600 = vst [vmem:[%s231 + $0x24] sm:$0xf] %v584
      %601 = vst [vmem:[%s231 + $0x28] sm:$0xf] %v585
      %602 = vst [vmem:[%s231 + $0x2c] sm:$0xf] %v586
      %603 = vst [vmem:[%s231 + $0x30] sm:$0xf] %v587
      %604 = vst [vmem:[%s231 + $0x34] sm:$0xf] %v588
      %605 = vst [vmem:[%s231 + $0x38] sm:$0xf] %v589
      %606 = vst [vmem:[%s231 + $0x3c] sm:$0xf] %v590
      %s607 = smul.u32 16, %s19
      %p608 = scmp.lt.s32.totalorder %s18, 3
      %s609 = scalar_select %p608, %s18, 3
      %p610 = scmp.lt.s32.totalorder %s607, 15
      %s611 = scalar_select %p610, %s607, 15
      %s612 = smul.addr %s609, 16
      %s613 = sadd.s32 %s611, %s612
      %s614 = smul.addr %s613, 4
      %s615 = scalar_lea.vmem %s3, %s614
      // Predicated region
      $region33: #{generator_forward.16} parent=31 // pred_check
        %p616 = pneg %p121
      $region34: #{generator_forward.16} parent=31 // pred_check_branch
        %618 = sbr.rel (%p616) target = $region36
      $region35: #{generator_forward.16} parent=31 // pred_region
        %s619 = smul.u32 16, %s19
      $region36: #{generator_forward.16} parent=31 // pred_fallthru
        _
    $region32: #{generator_forward.16} parent=5 // pred_fallthru
      _
    %p620 = scmp.le.s32.totalorder 2, %s9
    // Predicated region
    $region37: #{generator_forward.16} parent=5 // pred_check
      %p621 = pneg %p620
    $region38: #{generator_forward.16} parent=5 // pred_check_branch
      %623 = sbr.rel (%p621) target = $region40
    $region39: #{generator_forward.16} parent=5 // pred_region
      %s624 = ssub.s32 %s9, 2
      // Predicated region
      $region41: #{generator_forward.16} parent=39 // pred_check
        %p625 = pneg %p127
      $region42: #{generator_forward.16} parent=39 // pred_check_branch
        %627 = sbr.rel (%p625) target = $region44
      $region43: #{generator_forward.16} parent=39 // pred_region
        %s628 = smul.u32 16, %s21
        %p629 = scmp.lt.s32.totalorder %s20, 3
        %s630 = scalar_select %p629, %s20, 3
        %p631 = scmp.lt.s32.totalorder %s628, 15
        %s632 = scalar_select %p631, %s628, 15
        %s633 = smul.addr %s630, 16
        %s634 = sadd.s32 %s632, %s633
        %s635 = smul.addr %s634, 4
        %s636 = scalar_lea.vmem %s3, %s635
      $region44: #{generator_forward.16} parent=39 // pred_fallthru
        _
    $region40: #{generator_forward.16} parent=5 // pred_fallthru
      _
  $region6: #{generator_forward.16} parent=0 // loop_footer
    %s13 = sadd.s32 1, %s9
  $region7: #{generator_forward.16} parent=0 // loop_footer_branch
    %8 = sbr.rel target = $region3
  $region8: #{generator_forward.16} parent=0 // loop_exit
    _

// kernel: generator_forward.17
$region0: #{generator_forward.17}
  #allocation0 [shape = 'u32[]', space=smem, size = 0x4, offset = 0x4, fixed_abs, tag = 'smem constant byte address 0x4 - core index']
  #allocation1 [shape = 'u32[72,128]{1,0:T(1,128)}', space=vmem, size = 0x9000, scoped, tag = 'internal scratch']
  %s0 = inlined_call_operand.vmem [shape: bf16[512,128], index: 0, kind: input, shape index: {}]
  %s1 = inlined_call_operand.vmem [shape: f32[2,128], index: 1, kind: output, shape index: {}]
  %s2 = sld [smem:[#allocation0]]
  $region18: #{generator_forward.17} parent=0
    _
  %s4 = ssub.s32 1, %s2
  %s5 = scalar_select 0, %s4, %s2
  // Predicated region
  $region2: #{generator_forward.17} parent=0 // pred_check
    _
  $region3: #{generator_forward.17} parent=0 // pred_check_branch
    %7 = sbr.rel (0) target = $region5
  $region4: #{generator_forward.17} parent=0 // pred_region
    _
  $region5: #{generator_forward.17} parent=0 // pred_fallthru
    _
  %p8 = scmp.eq.s32.totalorder 0, 0
  // Predicated region
  $region6: #{generator_forward.17} parent=0 // pred_check
    %p9 = pneg %p8
  $region7: #{generator_forward.17} parent=0 // pred_check_branch
    %11 = sbr.rel (%p9) target = $region9
  $region8: #{generator_forward.17} parent=0 // pred_region
    %12 = vst [vmem:[%s1] sm:$0x3] 0.0
  $region9: #{generator_forward.17} parent=0 // pred_fallthru
    _
  %v13 = vld [vmem:[%s0] sm:$0xf]
  %v14 = vld [vmem:[%s0 + $0x4] sm:$0xf]
  %v15 = vld [vmem:[%s0 + $0x8] sm:$0xf]
  %v16 = vld [vmem:[%s0 + $0xc] sm:$0xf]
  %v17 = vld [vmem:[%s0 + $0x10] sm:$0xf]
  %v18 = vld [vmem:[%s0 + $0x14] sm:$0xf]
  %v19 = vld [vmem:[%s0 + $0x18] sm:$0xf]
  %v20 = vld [vmem:[%s0 + $0x1c] sm:$0xf]
  %v21 = vld [vmem:[%s0 + $0x20] sm:$0xf]
  %v22 = vld [vmem:[%s0 + $0x24] sm:$0xf]
  %v23 = vld [vmem:[%s0 + $0x28] sm:$0xf]
  %v24 = vld [vmem:[%s0 + $0x2c] sm:$0xf]
  %v25 = vld [vmem:[%s0 + $0x30] sm:$0xf]
  %v26 = vld [vmem:[%s0 + $0x34] sm:$0xf]
  %v27 = vld [vmem:[%s0 + $0x38] sm:$0xf]
  %v28 = vld [vmem:[%s0 + $0x3c] sm:$0xf]
  %v29 = vld [vmem:[%s0 + $0x40] sm:$0xf]
  %v30 = vld [vmem:[%s0 + $0x44] sm:$0xf]
  %v31 = vld [vmem:[%s0 + $0x48] sm:$0xf]
  %v32 = vld [vmem:[%s0 + $0x4c] sm:$0xf]
  %v33 = vld [vmem:[%s0 + $0x50] sm:$0xf]
  %v34 = vld [vmem:[%s0 + $0x54] sm:$0xf]
  %v35 = vld [vmem:[%s0 + $0x58] sm:$0xf]
  %v36 = vld [vmem:[%s0 + $0x5c] sm:$0xf]
  %v37 = vld [vmem:[%s0 + $0x60] sm:$0xf]
  %v38 = vld [vmem:[%s0 + $0x64] sm:$0xf]
  %v39 = vld [vmem:[%s0 + $0x68] sm:$0xf]
  %v40 = vld [vmem:[%s0 + $0x6c] sm:$0xf]
  %v41 = vld [vmem:[%s0 + $0x70] sm:$0xf]
  %v42 = vld [vmem:[%s0 + $0x74] sm:$0xf]
  %v43 = vld [vmem:[%s0 + $0x78] sm:$0xf]
  %v44 = vld [vmem:[%s0 + $0x7c] sm:$0xf]
  %v45 = vld [vmem:[%s0 + $0x80] sm:$0xf]
  %v46 = vld [vmem:[%s0 + $0x84] sm:$0xf]
  %v47 = vld [vmem:[%s0 + $0x88] sm:$0xf]
  %v48 = vld [vmem:[%s0 + $0x8c] sm:$0xf]
  %v49 = vld [vmem:[%s0 + $0x90] sm:$0xf]
  %v50 = vld [vmem:[%s0 + $0x94] sm:$0xf]
  %v51 = vld [vmem:[%s0 + $0x98] sm:$0xf]
  %v52 = vld [vmem:[%s0 + $0x9c] sm:$0xf]
  %v53 = vld [vmem:[%s0 + $0xa0] sm:$0xf]
  %v54 = vld [vmem:[%s0 + $0xa4] sm:$0xf]
  %v55 = vld [vmem:[%s0 + $0xa8] sm:$0xf]
  %v56 = vld [vmem:[%s0 + $0xac] sm:$0xf]
  %v57 = vld [vmem:[%s0 + $0xb0] sm:$0xf]
  %v58 = vld [vmem:[%s0 + $0xb4] sm:$0xf]
  %v59 = vld [vmem:[%s0 + $0xb8] sm:$0xf]
  %v60 = vld [vmem:[%s0 + $0xbc] sm:$0xf]
  %v61 = vld [vmem:[%s0 + $0xc0] sm:$0xf]
  %v62 = vld [vmem:[%s0 + $0xc4] sm:$0xf]
  %v63 = vld [vmem:[%s0 + $0xc8] sm:$0xf]
  %v64 = vld [vmem:[%s0 + $0xcc] sm:$0xf]
  %v65 = vld [vmem:[%s0 + $0xd0] sm:$0xf]
  %v66 = vld [vmem:[%s0 + $0xd4] sm:$0xf]
  %v67 = vld [vmem:[%s0 + $0xd8] sm:$0xf]
  %v68 = vld [vmem:[%s0 + $0xdc] sm:$0xf]
  %v69 = vld [vmem:[%s0 + $0xe0] sm:$0xf]
  %v70 = vld [vmem:[%s0 + $0xe4] sm:$0xf]
  %v71 = vld [vmem:[%s0 + $0xe8] sm:$0xf]
  %v72 = vld [vmem:[%s0 + $0xec] sm:$0xf]
  %v73 = vld [vmem:[%s0 + $0xf0] sm:$0xf]
  %v74 = vld [vmem:[%s0 + $0xf4] sm:$0xf]
  %v75 = vld [vmem:[%s0 + $0xf8] sm:$0xf]
  %v76 = vld [vmem:[%s0 + $0xfc] sm:$0xf]
  %v77 = vunpack.c.l.bf16 %v13
  %v78 = vunpack.c.l.bf16 %v14
  %v79 = vunpack.c.l.bf16 %v15
  %v80 = vunpack.c.l.bf16 %v16
  %v81 = vunpack.c.l.bf16 %v17
  %v82 = vunpack.c.l.bf16 %v18
  %v83 = vunpack.c.l.bf16 %v19
  %v84 = vunpack.c.l.bf16 %v20
  %v85 = vunpack.c.l.bf16 %v21
  %v86 = vunpack.c.l.bf16 %v22
  %v87 = vunpack.c.l.bf16 %v23
  %v88 = vunpack.c.l.bf16 %v24
  %v89 = vunpack.c.l.bf16 %v25
  %v90 = vunpack.c.l.bf16 %v26
  %v91 = vunpack.c.l.bf16 %v27
  %v92 = vunpack.c.l.bf16 %v28
  %v93 = vunpack.c.l.bf16 %v29
  %v94 = vunpack.c.l.bf16 %v30
  %v95 = vunpack.c.l.bf16 %v31
  %v96 = vunpack.c.l.bf16 %v32
  %v97 = vunpack.c.l.bf16 %v33
  %v98 = vunpack.c.l.bf16 %v34
  %v99 = vunpack.c.l.bf16 %v35
  %v100 = vunpack.c.l.bf16 %v36
  %v101 = vunpack.c.l.bf16 %v37
  %v102 = vunpack.c.l.bf16 %v38
  %v103 = vunpack.c.l.bf16 %v39
  %v104 = vunpack.c.l.bf16 %v40
  %v105 = vunpack.c.l.bf16 %v41
  %v106 = vunpack.c.l.bf16 %v42
  %v107 = vunpack.c.l.bf16 %v43
  %v108 = vunpack.c.l.bf16 %v44
  %v109 = vunpack.c.l.bf16 %v45
  %v110 = vunpack.c.l.bf16 %v46
  %v111 = vunpack.c.l.bf16 %v47
  %v112 = vunpack.c.l.bf16 %v48
  %v113 = vunpack.c.l.bf16 %v49
  %v114 = vunpack.c.l.bf16 %v50
  %v115 = vunpack.c.l.bf16 %v51
  %v116 = vunpack.c.l.bf16 %v52
  %v117 = vunpack.c.l.bf16 %v53
  %v118 = vunpack.c.l.bf16 %v54
  %v119 = vunpack.c.l.bf16 %v55
  %v120 = vunpack.c.l.bf16 %v56
  %v121 = vunpack.c.l.bf16 %v57
  %v122 = vunpack.c.l.bf16 %v58
  %v123 = vunpack.c.l.bf16 %v59
  %v124 = vunpack.c.l.bf16 %v60
  %v125 = vunpack.c.l.bf16 %v61
  %v126 = vunpack.c.l.bf16 %v62
  %v127 = vunpack.c.l.bf16 %v63
  %v128 = vunpack.c.l.bf16 %v64
  %v129 = vunpack.c.l.bf16 %v65
  %v130 = vunpack.c.l.bf16 %v66
  %v131 = vunpack.c.l.bf16 %v67
  %v132 = vunpack.c.l.bf16 %v68
  %v133 = vunpack.c.l.bf16 %v69
  %v134 = vunpack.c.l.bf16 %v70
  %v135 = vunpack.c.l.bf16 %v71
  %v136 = vunpack.c.l.bf16 %v72
  %v137 = vunpack.c.l.bf16 %v73
  %v138 = vunpack.c.l.bf16 %v74
  %v139 = vunpack.c.l.bf16 %v75
  %v140 = vunpack.c.l.bf16 %v76
  %v141 = vld [vmem:[%s1] sm:$0x1]
  %v142 = vadd.f32 %v77, %v78
  %v143 = vadd.f32 %v142, %v79
  %v144 = vadd.f32 %v143, %v80
  %v145 = vadd.f32 %v144, %v81
  %v146 = vadd.f32 %v145, %v82
  %v147 = vadd.f32 %v146, %v83
  %v148 = vadd.f32 %v147, %v84
  %v149 = vadd.f32 %v148, %v85
  %v150 = vadd.f32 %v149, %v86
  %v151 = vadd.f32 %v150, %v87
  %v152 = vadd.f32 %v151, %v88
  %v153 = vadd.f32 %v152, %v89
  %v154 = vadd.f32 %v153, %v90
  %v155 = vadd.f32 %v154, %v91
  %v156 = vadd.f32 %v155, %v92
  %v157 = vadd.f32 %v156, %v93
  %v158 = vadd.f32 %v157, %v94
  %v159 = vadd.f32 %v158, %v95
  %v160 = vadd.f32 %v159, %v96
  %v161 = vadd.f32 %v160, %v97
  %v162 = vadd.f32 %v161, %v98
  %v163 = vadd.f32 %v162, %v99
  %v164 = vadd.f32 %v163, %v100
  %v165 = vadd.f32 %v164, %v101
  %v166 = vadd.f32 %v165, %v102
  %v167 = vadd.f32 %v166, %v103
  %v168 = vadd.f32 %v167, %v104
  %v169 = vadd.f32 %v168, %v105
  %v170 = vadd.f32 %v169, %v106
  %v171 = vadd.f32 %v170, %v107
  %v172 = vadd.f32 %v171, %v108
  %v173 = vadd.f32 %v172, %v109
  %v174 = vadd.f32 %v173, %v110
  %v175 = vadd.f32 %v174, %v111
  %v176 = vadd.f32 %v175, %v112
  %v177 = vadd.f32 %v176, %v113
  %v178 = vadd.f32 %v177, %v114
  %v179 = vadd.f32 %v178, %v115
  %v180 = vadd.f32 %v179, %v116
  %v181 = vadd.f32 %v180, %v117
  %v182 = vadd.f32 %v181, %v118
  %v183 = vadd.f32 %v182, %v119
  %v184 = vadd.f32 %v183, %v120
  %v185 = vadd.f32 %v184, %v121
  %v186 = vadd.f32 %v185, %v122
  %v187 = vadd.f32 %v186, %v123
  %v188 = vadd.f32 %v187, %v124
  %v189 = vadd.f32 %v188, %v125
  %v190 = vadd.f32 %v189, %v126
  %v191 = vadd.f32 %v190, %v127
  %v192 = vadd.f32 %v191, %v128
  %v193 = vadd.f32 %v192, %v129
  %v194 = vadd.f32 %v193, %v130
  %v195 = vadd.f32 %v194, %v131
  %v196 = vadd.f32 %v195, %v132
  %v197 = vadd.f32 %v196, %v133
  %v198 = vadd.f32 %v197, %v134
  %v199 = vadd.f32 %v198, %v135
  %v200 = vadd.f32 %v199, %v136
  %v201 = vadd.f32 %v200, %v137
  %v202 = vadd.f32 %v201, %v138
  %v203 = vadd.f32 %v202, %v139
  %v204 = vadd.f32 %v203, %v140
  %v205 = vrot.slane %v204, 4
  %v206 = vadd.f32 %v204, %v205
  %v207 = vrot.slane %v206, 2
  %v208 = vadd.f32 %v206, %v207
  %v209 = vrot.slane %v208, 1
  %v210 = vadd.f32 %v208, %v209
  %v211 = vadd.f32 %v141, %v210
  %212 = vst [vmem:[%s1] sm:$0x1] %v211
  %v213 = vld [vmem:[%s1 + $0x1] sm:$0x1]
  %v214 = vmul.f32 %v77, %v77
  %v215 = vmul.f32 %v78, %v78
  %v216 = vmul.f32 %v79, %v79
  %v217 = vmul.f32 %v80, %v80
  %v218 = vmul.f32 %v81, %v81
  %v219 = vmul.f32 %v82, %v82
  %v220 = vmul.f32 %v83, %v83
  %v221 = vmul.f32 %v84, %v84
  %v222 = vmul.f32 %v85, %v85
  %v223 = vmul.f32 %v86, %v86
  %v224 = vmul.f32 %v87, %v87
  %v225 = vmul.f32 %v88, %v88
  %v226 = vmul.f32 %v89, %v89
  %v227 = vmul.f32 %v90, %v90
  %v228 = vmul.f32 %v91, %v91
  %v229 = vmul.f32 %v92, %v92
  %v230 = vmul.f32 %v93, %v93
  %v231 = vmul.f32 %v94, %v94
  %v232 = vmul.f32 %v95, %v95
  %v233 = vmul.f32 %v96, %v96
  %v234 = vmul.f32 %v97, %v97
  %v235 = vmul.f32 %v98, %v98
  %v236 = vmul.f32 %v99, %v99
  %v237 = vmul.f32 %v100, %v100
  %v238 = vmul.f32 %v101, %v101
  %v239 = vmul.f32 %v102, %v102
  %v240 = vmul.f32 %v103, %v103
  %v241 = vmul.f32 %v104, %v104
  %v242 = vmul.f32 %v105, %v105
  %v243 = vmul.f32 %v106, %v106
  %v244 = vmul.f32 %v107, %v107
  %v245 = vmul.f32 %v108, %v108
  %v246 = vmul.f32 %v109, %v109
  %v247 = vmul.f32 %v110, %v110
  %v248 = vmul.f32 %v111, %v111
  %v249 = vmul.f32 %v112, %v112
  %v250 = vmul.f32 %v113, %v113
  %v251 = vmul.f32 %v114, %v114
  %v252 = vmul.f32 %v115, %v115
  %v253 = vmul.f32 %v116, %v116
  %v254 = vmul.f32 %v117, %v117
  %v255 = vmul.f32 %v118, %v118
  %v256 = vmul.f32 %v119, %v119
  %v257 = vmul.f32 %v120, %v120
  %v258 = vmul.f32 %v121, %v121
  %v259 = vmul.f32 %v122, %v122
  %v260 = vmul.f32 %v123, %v123
  %v261 = vmul.f32 %v124, %v124
  %v262 = vmul.f32 %v125, %v125
  %v263 = vmul.f32 %v126, %v126
  %v264 = vmul.f32 %v127, %v127
  %v265 = vmul.f32 %v128, %v128
  %v266 = vmul.f32 %v129, %v129
  %v267 = vmul.f32 %v130, %v130
  %v268 = vmul.f32 %v131, %v131
  %v269 = vmul.f32 %v132, %v132
  %v270 = vmul.f32 %v133, %v133
  %v271 = vmul.f32 %v134, %v134
  %v272 = vmul.f32 %v135, %v135
  %v273 = vmul.f32 %v136, %v136
  %v274 = vmul.f32 %v137, %v137
  %v275 = vmul.f32 %v138, %v138
  %v276 = vmul.f32 %v139, %v139
  %v277 = vmul.f32 %v140, %v140
  %v278 = vadd.f32 %v214, %v215
  %v279 = vadd.f32 %v278, %v216
  %v280 = vadd.f32 %v279, %v217
  %v281 = vadd.f32 %v280, %v218
  %v282 = vadd.f32 %v281, %v219
  %v283 = vadd.f32 %v282, %v220
  %v284 = vadd.f32 %v283, %v221
  %v285 = vadd.f32 %v284, %v222
  %v286 = vadd.f32 %v285, %v223
  %v287 = vadd.f32 %v286, %v224
  %v288 = vadd.f32 %v287, %v225
  %v289 = vadd.f32 %v288, %v226
  %v290 = vadd.f32 %v289, %v227
  %v291 = vadd.f32 %v290, %v228
  %v292 = vadd.f32 %v291, %v229
  %v293 = vadd.f32 %v292, %v230
  %v294 = vadd.f32 %v293, %v231
  %v295 = vadd.f32 %v294, %v232
  %v296 = vadd.f32 %v295, %v233
  %v297 = vadd.f32 %v296, %v234
  %v298 = vadd.f32 %v297, %v235
  %v299 = vadd.f32 %v298, %v236
  %v300 = vadd.f32 %v299, %v237
  %v301 = vadd.f32 %v300, %v238
  %v302 = vadd.f32 %v301, %v239
  %v303 = vadd.f32 %v302, %v240
  %v304 = vadd.f32 %v303, %v241
  %v305 = vadd.f32 %v304, %v242
  %v306 = vadd.f32 %v305, %v243
  %v307 = vadd.f32 %v306, %v244
  %v308 = vadd.f32 %v307, %v245
  %v309 = vadd.f32 %v308, %v246
  %v310 = vadd.f32 %v309, %v247
  %v311 = vadd.f32 %v310, %v248
  %v312 = vadd.f32 %v311, %v249
  %v313 = vadd.f32 %v312, %v250
  %v314 = vadd.f32 %v313, %v251
  %v315 = vadd.f32 %v314, %v252
  %v316 = vadd.f32 %v315, %v253
  %v317 = vadd.f32 %v316, %v254
  %v318 = vadd.f32 %v317, %v255
  %v319 = vadd.f32 %v318, %v256
  %v320 = vadd.f32 %v319, %v257
  %v321 = vadd.f32 %v320, %v258
  %v322 = vadd.f32 %v321, %v259
  %v323 = vadd.f32 %v322, %v260
  %v324 = vadd.f32 %v323, %v261
  %v325 = vadd.f32 %v324, %v262
  %v326 = vadd.f32 %v325, %v263
  %v327 = vadd.f32 %v326, %v264
  %v328 = vadd.f32 %v327, %v265
  %v329 = vadd.f32 %v328, %v266
  %v330 = vadd.f32 %v329, %v267
  %v331 = vadd.f32 %v330, %v268
  %v332 = vadd.f32 %v331, %v269
  %v333 = vadd.f32 %v332, %v270
  %v334 = vadd.f32 %v333, %v271
  %v335 = vadd.f32 %v334, %v272
  %v336 = vadd.f32 %v335, %v273
  %v337 = vadd.f32 %v336, %v274
  %v338 = vadd.f32 %v337, %v275
  %v339 = vadd.f32 %v338, %v276
  %v340 = vadd.f32 %v339, %v277
  %v341 = vrot.slane %v340, 4
  %v342 = vadd.f32 %v340, %v341
  %v343 = vrot.slane %v342, 2
  %v344 = vadd.f32 %v342, %v343
  %v345 = vrot.slane %v344, 1
  %v346 = vadd.f32 %v344, %v345
  %v347 = vadd.f32 %v213, %v346
  %348 = vst [vmem:[%s1 + $0x1] sm:$0x1] %v347
  // Predicated region
  $region10: #{generator_forward.17} parent=0 // pred_check
    _
  $region11: #{generator_forward.17} parent=0 // pred_check_branch
    %350 = sbr.rel (0) target = $region13
  $region12: #{generator_forward.17} parent=0 // pred_region
    _
  $region13: #{generator_forward.17} parent=0 // pred_fallthru
    _
  // Predicated region
  $region14: #{generator_forward.17} parent=0 // pred_check
    _
  $region15: #{generator_forward.17} parent=0 // pred_check_branch
    %352 = sbr.rel (0) target = $region17
  $region16: #{generator_forward.17} parent=0 // pred_region
    _
  $region17: #{generator_forward.17} parent=0 // pred_fallthru
    _

// kernel: generator_forward.18
$region0: #{generator_forward.18}
  #allocation0 [shape = 'u32[]', space=smem, size = 0x4, offset = 0x4, fixed_abs, tag = 'smem constant byte address 0x4 - core index']
  #allocation1 [shape = 'u32[72,128]{1,0:T(1,128)}', space=vmem, size = 0x9000, scoped, tag = 'internal scratch']
  %s0 = inlined_call_operand.vmem [shape: bf16[512,128], index: 0, kind: input, shape index: {}]
  %s1 = inlined_call_operand.vmem [shape: f32[2,128], index: 1, kind: input, shape index: {}]
  %s2 = inlined_call_operand.vmem [shape: f32[1,128], index: 2, kind: input, shape index: {}]
  %s3 = inlined_call_operand.vmem [shape: f32[1,128], index: 3, kind: input, shape index: {}]
  %s4 = inlined_call_operand.vmem [shape: bf16[512,128], index: 4, kind: output, shape index: {}]
  %s5 = sld [smem:[#allocation0]]
  $region26: #{generator_forward.18} parent=0
    _
  %s7 = ssub.s32 1, %s5
  %s8 = scalar_select 0, %s7, %s5
  // Predicated region
  $region2: #{generator_forward.18} parent=0 // pred_check
    _
  $region3: #{generator_forward.18} parent=0 // pred_check_branch
    %10 = sbr.rel (0) target = $region5
  $region4: #{generator_forward.18} parent=0 // pred_region
    _
  $region5: #{generator_forward.18} parent=0 // pred_fallthru
    _
  // Predicated region
  $region6: #{generator_forward.18} parent=0 // pred_check
    _
  $region7: #{generator_forward.18} parent=0 // pred_check_branch
    %12 = sbr.rel (0) target = $region9
  $region8: #{generator_forward.18} parent=0 // pred_region
    _
  $region9: #{generator_forward.18} parent=0 // pred_fallthru
    _
  // Predicated region
  $region10: #{generator_forward.18} parent=0 // pred_check
    _
  $region11: #{generator_forward.18} parent=0 // pred_check_branch
    %14 = sbr.rel (0) target = $region13
  $region12: #{generator_forward.18} parent=0 // pred_region
    _
  $region13: #{generator_forward.18} parent=0 // pred_fallthru
    _
  // Predicated region
  $region14: #{generator_forward.18} parent=0 // pred_check
    _
  $region15: #{generator_forward.18} parent=0 // pred_check_branch
    %16 = sbr.rel (0) target = $region17
  $region16: #{generator_forward.18} parent=0 // pred_region
    _
  $region17: #{generator_forward.18} parent=0 // pred_fallthru
    _
  %v17 = vld [vmem:[%s0] sm:$0xf]
  %v18 = vld [vmem:[%s0 + $0x4] sm:$0xf]
  %v19 = vld [vmem:[%s0 + $0x8] sm:$0xf]
  %v20 = vld [vmem:[%s0 + $0xc] sm:$0xf]
  %v21 = vld [vmem:[%s0 + $0x10] sm:$0xf]
  %v22 = vld [vmem:[%s0 + $0x14] sm:$0xf]
  %v23 = vld [vmem:[%s0 + $0x18] sm:$0xf]
  %v24 = vld [vmem:[%s0 + $0x1c] sm:$0xf]
  %v25 = vld [vmem:[%s0 + $0x20] sm:$0xf]
  %v26 = vld [vmem:[%s0 + $0x24] sm:$0xf]
  %v27 = vld [vmem:[%s0 + $0x28] sm:$0xf]
  %v28 = vld [vmem:[%s0 + $0x2c] sm:$0xf]
  %v29 = vld [vmem:[%s0 + $0x30] sm:$0xf]
  %v30 = vld [vmem:[%s0 + $0x34] sm:$0xf]
  %v31 = vld [vmem:[%s0 + $0x38] sm:$0xf]
  %v32 = vld [vmem:[%s0 + $0x3c] sm:$0xf]
  %v33 = vld [vmem:[%s0 + $0x40] sm:$0xf]
  %v34 = vld [vmem:[%s0 + $0x44] sm:$0xf]
  %v35 = vld [vmem:[%s0 + $0x48] sm:$0xf]
  %v36 = vld [vmem:[%s0 + $0x4c] sm:$0xf]
  %v37 = vld [vmem:[%s0 + $0x50] sm:$0xf]
  %v38 = vld [vmem:[%s0 + $0x54] sm:$0xf]
  %v39 = vld [vmem:[%s0 + $0x58] sm:$0xf]
  %v40 = vld [vmem:[%s0 + $0x5c] sm:$0xf]
  %v41 = vld [vmem:[%s0 + $0x60] sm:$0xf]
  %v42 = vld [vmem:[%s0 + $0x64] sm:$0xf]
  %v43 = vld [vmem:[%s0 + $0x68] sm:$0xf]
  %v44 = vld [vmem:[%s0 + $0x6c] sm:$0xf]
  %v45 = vld [vmem:[%s0 + $0x70] sm:$0xf]
  %v46 = vld [vmem:[%s0 + $0x74] sm:$0xf]
  %v47 = vld [vmem:[%s0 + $0x78] sm:$0xf]
  %v48 = vld [vmem:[%s0 + $0x7c] sm:$0xf]
  %v49 = vld [vmem:[%s0 + $0x80] sm:$0xf]
  %v50 = vld [vmem:[%s0 + $0x84] sm:$0xf]
  %v51 = vld [vmem:[%s0 + $0x88] sm:$0xf]
  %v52 = vld [vmem:[%s0 + $0x8c] sm:$0xf]
  %v53 = vld [vmem:[%s0 + $0x90] sm:$0xf]
  %v54 = vld [vmem:[%s0 + $0x94] sm:$0xf]
  %v55 = vld [vmem:[%s0 + $0x98] sm:$0xf]
  %v56 = vld [vmem:[%s0 + $0x9c] sm:$0xf]
  %v57 = vld [vmem:[%s0 + $0xa0] sm:$0xf]
  %v58 = vld [vmem:[%s0 + $0xa4] sm:$0xf]
  %v59 = vld [vmem:[%s0 + $0xa8] sm:$0xf]
  %v60 = vld [vmem:[%s0 + $0xac] sm:$0xf]
  %v61 = vld [vmem:[%s0 + $0xb0] sm:$0xf]
  %v62 = vld [vmem:[%s0 + $0xb4] sm:$0xf]
  %v63 = vld [vmem:[%s0 + $0xb8] sm:$0xf]
  %v64 = vld [vmem:[%s0 + $0xbc] sm:$0xf]
  %v65 = vld [vmem:[%s0 + $0xc0] sm:$0xf]
  %v66 = vld [vmem:[%s0 + $0xc4] sm:$0xf]
  %v67 = vld [vmem:[%s0 + $0xc8] sm:$0xf]
  %v68 = vld [vmem:[%s0 + $0xcc] sm:$0xf]
  %v69 = vld [vmem:[%s0 + $0xd0] sm:$0xf]
  %v70 = vld [vmem:[%s0 + $0xd4] sm:$0xf]
  %v71 = vld [vmem:[%s0 + $0xd8] sm:$0xf]
  %v72 = vld [vmem:[%s0 + $0xdc] sm:$0xf]
  %v73 = vld [vmem:[%s0 + $0xe0] sm:$0xf]
  %v74 = vld [vmem:[%s0 + $0xe4] sm:$0xf]
  %v75 = vld [vmem:[%s0 + $0xe8] sm:$0xf]
  %v76 = vld [vmem:[%s0 + $0xec] sm:$0xf]
  %v77 = vld [vmem:[%s0 + $0xf0] sm:$0xf]
  %v78 = vld [vmem:[%s0 + $0xf4] sm:$0xf]
  %v79 = vld [vmem:[%s0 + $0xf8] sm:$0xf]
  %v80 = vld [vmem:[%s0 + $0xfc] sm:$0xf]
  %v81 = vunpack.c.l.bf16 %v17
  %v82 = vunpack.c.l.bf16 %v18
  %v83 = vunpack.c.l.bf16 %v19
  %v84 = vunpack.c.l.bf16 %v20
  %v85 = vunpack.c.l.bf16 %v21
  %v86 = vunpack.c.l.bf16 %v22
  %v87 = vunpack.c.l.bf16 %v23
  %v88 = vunpack.c.l.bf16 %v24
  %v89 = vunpack.c.l.bf16 %v25
  %v90 = vunpack.c.l.bf16 %v26
  %v91 = vunpack.c.l.bf16 %v27
  %v92 = vunpack.c.l.bf16 %v28
  %v93 = vunpack.c.l.bf16 %v29
  %v94 = vunpack.c.l.bf16 %v30
  %v95 = vunpack.c.l.bf16 %v31
  %v96 = vunpack.c.l.bf16 %v32
  %v97 = vunpack.c.l.bf16 %v33
  %v98 = vunpack.c.l.bf16 %v34
  %v99 = vunpack.c.l.bf16 %v35
  %v100 = vunpack.c.l.bf16 %v36
  %v101 = vunpack.c.l.bf16 %v37
  %v102 = vunpack.c.l.bf16 %v38
  %v103 = vunpack.c.l.bf16 %v39
  %v104 = vunpack.c.l.bf16 %v40
  %v105 = vunpack.c.l.bf16 %v41
  %v106 = vunpack.c.l.bf16 %v42
  %v107 = vunpack.c.l.bf16 %v43
  %v108 = vunpack.c.l.bf16 %v44
  %v109 = vunpack.c.l.bf16 %v45
  %v110 = vunpack.c.l.bf16 %v46
  %v111 = vunpack.c.l.bf16 %v47
  %v112 = vunpack.c.l.bf16 %v48
  %v113 = vunpack.c.l.bf16 %v49
  %v114 = vunpack.c.l.bf16 %v50
  %v115 = vunpack.c.l.bf16 %v51
  %v116 = vunpack.c.l.bf16 %v52
  %v117 = vunpack.c.l.bf16 %v53
  %v118 = vunpack.c.l.bf16 %v54
  %v119 = vunpack.c.l.bf16 %v55
  %v120 = vunpack.c.l.bf16 %v56
  %v121 = vunpack.c.l.bf16 %v57
  %v122 = vunpack.c.l.bf16 %v58
  %v123 = vunpack.c.l.bf16 %v59
  %v124 = vunpack.c.l.bf16 %v60
  %v125 = vunpack.c.l.bf16 %v61
  %v126 = vunpack.c.l.bf16 %v62
  %v127 = vunpack.c.l.bf16 %v63
  %v128 = vunpack.c.l.bf16 %v64
  %v129 = vunpack.c.l.bf16 %v65
  %v130 = vunpack.c.l.bf16 %v66
  %v131 = vunpack.c.l.bf16 %v67
  %v132 = vunpack.c.l.bf16 %v68
  %v133 = vunpack.c.l.bf16 %v69
  %v134 = vunpack.c.l.bf16 %v70
  %v135 = vunpack.c.l.bf16 %v71
  %v136 = vunpack.c.l.bf16 %v72
  %v137 = vunpack.c.l.bf16 %v73
  %v138 = vunpack.c.l.bf16 %v74
  %v139 = vunpack.c.l.bf16 %v75
  %v140 = vunpack.c.l.bf16 %v76
  %v141 = vunpack.c.l.bf16 %v77
  %v142 = vunpack.c.l.bf16 %v78
  %v143 = vunpack.c.l.bf16 %v79
  %v144 = vunpack.c.l.bf16 %v80
  %v145 = vld [vmem:[%s1] sm:$0x1]
  %v146 = vmul.f32 %v145, 0.001953125
  %v147 = vld [vmem:[%s1 + $0x1] sm:$0x1]
  %v148 = vmul.f32 %v147, 0.001953125
  %v149 = vmul.f32 %v146, %v146
  %v150 = vsub.f32 %v148, %v149
  %v151 = vadd.f32 %v150, 1e-05
  %v152 = vrsqrt.pop %v151
  %v153 = vmul.f32 %v152, %v151
  %v154 = vmul.f32 %v153, %v152
  %v155 = vmul.f32 0.5, %v154
  %v156 = vsub.f32 1.5, %v155
  %v157 = vmul.f32 %v152, %v156
  %vm158 = vweird.f32 %v151
  %vm159 = vweird.f32 %v152
  %vm160 = vmor %vm158, %vm159
  %v161 = vsel %vm160, %v152, %v157
  %v162 = vperm.slane %v146, 0
  %v163 = vsub.f32 %v81, %v162
  %v164 = vsub.f32 %v82, %v162
  %v165 = vsub.f32 %v83, %v162
  %v166 = vsub.f32 %v84, %v162
  %v167 = vsub.f32 %v85, %v162
  %v168 = vsub.f32 %v86, %v162
  %v169 = vsub.f32 %v87, %v162
  %v170 = vsub.f32 %v88, %v162
  %v171 = vsub.f32 %v89, %v162
  %v172 = vsub.f32 %v90, %v162
  %v173 = vsub.f32 %v91, %v162
  %v174 = vsub.f32 %v92, %v162
  %v175 = vsub.f32 %v93, %v162
  %v176 = vsub.f32 %v94, %v162
  %v177 = vsub.f32 %v95, %v162
  %v178 = vsub.f32 %v96, %v162
  %v179 = vsub.f32 %v97, %v162
  %v180 = vsub.f32 %v98, %v162
  %v181 = vsub.f32 %v99, %v162
  %v182 = vsub.f32 %v100, %v162
  %v183 = vsub.f32 %v101, %v162
  %v184 = vsub.f32 %v102, %v162
  %v185 = vsub.f32 %v103, %v162
  %v186 = vsub.f32 %v104, %v162
  %v187 = vsub.f32 %v105, %v162
  %v188 = vsub.f32 %v106, %v162
  %v189 = vsub.f32 %v107, %v162
  %v190 = vsub.f32 %v108, %v162
  %v191 = vsub.f32 %v109, %v162
  %v192 = vsub.f32 %v110, %v162
  %v193 = vsub.f32 %v111, %v162
  %v194 = vsub.f32 %v112, %v162
  %v195 = vsub.f32 %v113, %v162
  %v196 = vsub.f32 %v114, %v162
  %v197 = vsub.f32 %v115, %v162
  %v198 = vsub.f32 %v116, %v162
  %v199 = vsub.f32 %v117, %v162
  %v200 = vsub.f32 %v118, %v162
  %v201 = vsub.f32 %v119, %v162
  %v202 = vsub.f32 %v120, %v162
  %v203 = vsub.f32 %v121, %v162
  %v204 = vsub.f32 %v122, %v162
  %v205 = vsub.f32 %v123, %v162
  %v206 = vsub.f32 %v124, %v162
  %v207 = vsub.f32 %v125, %v162
  %v208 = vsub.f32 %v126, %v162
  %v209 = vsub.f32 %v127, %v162
  %v210 = vsub.f32 %v128, %v162
  %v211 = vsub.f32 %v129, %v162
  %v212 = vsub.f32 %v130, %v162
  %v213 = vsub.f32 %v131, %v162
  %v214 = vsub.f32 %v132, %v162
  %v215 = vsub.f32 %v133, %v162
  %v216 = vsub.f32 %v134, %v162
  %v217 = vsub.f32 %v135, %v162
  %v218 = vsub.f32 %v136, %v162
  %v219 = vsub.f32 %v137, %v162
  %v220 = vsub.f32 %v138, %v162
  %v221 = vsub.f32 %v139, %v162
  %v222 = vsub.f32 %v140, %v162
  %v223 = vsub.f32 %v141, %v162
  %v224 = vsub.f32 %v142, %v162
  %v225 = vsub.f32 %v143, %v162
  %v226 = vsub.f32 %v144, %v162
  %v227 = vperm.slane %v161, 0
  %v228 = vmul.f32 %v163, %v227
  %v229 = vmul.f32 %v164, %v227
  %v230 = vmul.f32 %v165, %v227
  %v231 = vmul.f32 %v166, %v227
  %v232 = vmul.f32 %v167, %v227
  %v233 = vmul.f32 %v168, %v227
  %v234 = vmul.f32 %v169, %v227
  %v235 = vmul.f32 %v170, %v227
  %v236 = vmul.f32 %v171, %v227
  %v237 = vmul.f32 %v172, %v227
  %v238 = vmul.f32 %v173, %v227
  %v239 = vmul.f32 %v174, %v227
  %v240 = vmul.f32 %v175, %v227
  %v241 = vmul.f32 %v176, %v227
  %v242 = vmul.f32 %v177, %v227
  %v243 = vmul.f32 %v178, %v227
  %v244 = vmul.f32 %v179, %v227
  %v245 = vmul.f32 %v180, %v227
  %v246 = vmul.f32 %v181, %v227
  %v247 = vmul.f32 %v182, %v227
  %v248 = vmul.f32 %v183, %v227
  %v249 = vmul.f32 %v184, %v227
  %v250 = vmul.f32 %v185, %v227
  %v251 = vmul.f32 %v186, %v227
  %v252 = vmul.f32 %v187, %v227
  %v253 = vmul.f32 %v188, %v227
  %v254 = vmul.f32 %v189, %v227
  %v255 = vmul.f32 %v190, %v227
  %v256 = vmul.f32 %v191, %v227
  %v257 = vmul.f32 %v192, %v227
  %v258 = vmul.f32 %v193, %v227
  %v259 = vmul.f32 %v194, %v227
  %v260 = vmul.f32 %v195, %v227
  %v261 = vmul.f32 %v196, %v227
  %v262 = vmul.f32 %v197, %v227
  %v263 = vmul.f32 %v198, %v227
  %v264 = vmul.f32 %v199, %v227
  %v265 = vmul.f32 %v200, %v227
  %v266 = vmul.f32 %v201, %v227
  %v267 = vmul.f32 %v202, %v227
  %v268 = vmul.f32 %v203, %v227
  %v269 = vmul.f32 %v204, %v227
  %v270 = vmul.f32 %v205, %v227
  %v271 = vmul.f32 %v206, %v227
  %v272 = vmul.f32 %v207, %v227
  %v273 = vmul.f32 %v208, %v227
  %v274 = vmul.f32 %v209, %v227
  %v275 = vmul.f32 %v210, %v227
  %v276 = vmul.f32 %v211, %v227
  %v277 = vmul.f32 %v212, %v227
  %v278 = vmul.f32 %v213, %v227
  %v279 = vmul.f32 %v214, %v227
  %v280 = vmul.f32 %v215, %v227
  %v281 = vmul.f32 %v216, %v227
  %v282 = vmul.f32 %v217, %v227
  %v283 = vmul.f32 %v218, %v227
  %v284 = vmul.f32 %v219, %v227
  %v285 = vmul.f32 %v220, %v227
  %v286 = vmul.f32 %v221, %v227
  %v287 = vmul.f32 %v222, %v227
  %v288 = vmul.f32 %v223, %v227
  %v289 = vmul.f32 %v224, %v227
  %v290 = vmul.f32 %v225, %v227
  %v291 = vmul.f32 %v226, %v227
  %v292 = vld [vmem:[%s2] sm:$0x1]
  %v294 = vperm.slane %v292, 0
  %v296 = vmul.f32 %v228, %v294
  %v297 = vmul.f32 %v229, %v294
  %v298 = vmul.f32 %v230, %v294
  %v299 = vmul.f32 %v231, %v294
  %v300 = vmul.f32 %v232, %v294
  %v301 = vmul.f32 %v233, %v294
  %v302 = vmul.f32 %v234, %v294
  %v303 = vmul.f32 %v235, %v294
  %v304 = vmul.f32 %v236, %v294
  %v305 = vmul.f32 %v237, %v294
  %v306 = vmul.f32 %v238, %v294
  %v307 = vmul.f32 %v239, %v294
  %v308 = vmul.f32 %v240, %v294
  %v309 = vmul.f32 %v241, %v294
  %v310 = vmul.f32 %v242, %v294
  %v311 = vmul.f32 %v243, %v294
  %v312 = vmul.f32 %v244, %v294
  %v313 = vmul.f32 %v245, %v294
  %v314 = vmul.f32 %v246, %v294
  %v315 = vmul.f32 %v247, %v294
  %v316 = vmul.f32 %v248, %v294
  %v317 = vmul.f32 %v249, %v294
  %v318 = vmul.f32 %v250, %v294
  %v319 = vmul.f32 %v251, %v294
  %v320 = vmul.f32 %v252, %v294
  %v321 = vmul.f32 %v253, %v294
  %v322 = vmul.f32 %v254, %v294
  %v323 = vmul.f32 %v255, %v294
  %v324 = vmul.f32 %v256, %v294
  %v325 = vmul.f32 %v257, %v294
  %v326 = vmul.f32 %v258, %v294
  %v327 = vmul.f32 %v259, %v294
  %v328 = vmul.f32 %v260, %v294
  %v329 = vmul.f32 %v261, %v294
  %v330 = vmul.f32 %v262, %v294
  %v331 = vmul.f32 %v263, %v294
  %v332 = vmul.f32 %v264, %v294
  %v333 = vmul.f32 %v265, %v294
  %v334 = vmul.f32 %v266, %v294
  %v335 = vmul.f32 %v267, %v294
  %v336 = vmul.f32 %v268, %v294
  %v337 = vmul.f32 %v269, %v294
  %v338 = vmul.f32 %v270, %v294
  %v339 = vmul.f32 %v271, %v294
  %v340 = vmul.f32 %v272, %v294
  %v341 = vmul.f32 %v273, %v294
  %v342 = vmul.f32 %v274, %v294
  %v343 = vmul.f32 %v275, %v294
  %v344 = vmul.f32 %v276, %v294
  %v345 = vmul.f32 %v277, %v294
  %v346 = vmul.f32 %v278, %v294
  %v347 = vmul.f32 %v279, %v294
  %v348 = vmul.f32 %v280, %v294
  %v349 = vmul.f32 %v281, %v294
  %v350 = vmul.f32 %v282, %v294
  %v351 = vmul.f32 %v283, %v294
  %v352 = vmul.f32 %v284, %v294
  %v353 = vmul.f32 %v285, %v294
  %v354 = vmul.f32 %v286, %v294
  %v355 = vmul.f32 %v287, %v294
  %v356 = vmul.f32 %v288, %v294
  %v357 = vmul.f32 %v289, %v294
  %v358 = vmul.f32 %v290, %v294
  %v359 = vmul.f32 %v291, %v294
  %v360 = vld [vmem:[%s3] sm:$0x1]
  %v362 = vperm.slane %v360, 0
  %v364 = vadd.f32 %v296, %v362
  %v365 = vadd.f32 %v297, %v362
  %v366 = vadd.f32 %v298, %v362
  %v367 = vadd.f32 %v299, %v362
  %v368 = vadd.f32 %v300, %v362
  %v369 = vadd.f32 %v301, %v362
  %v370 = vadd.f32 %v302, %v362
  %v371 = vadd.f32 %v303, %v362
  %v372 = vadd.f32 %v304, %v362
  %v373 = vadd.f32 %v305, %v362
  %v374 = vadd.f32 %v306, %v362
  %v375 = vadd.f32 %v307, %v362
  %v376 = vadd.f32 %v308, %v362
  %v377 = vadd.f32 %v309, %v362
  %v378 = vadd.f32 %v310, %v362
  %v379 = vadd.f32 %v311, %v362
  %v380 = vadd.f32 %v312, %v362
  %v381 = vadd.f32 %v313, %v362
  %v382 = vadd.f32 %v314, %v362
  %v383 = vadd.f32 %v315, %v362
  %v384 = vadd.f32 %v316, %v362
  %v385 = vadd.f32 %v317, %v362
  %v386 = vadd.f32 %v318, %v362
  %v387 = vadd.f32 %v319, %v362
  %v388 = vadd.f32 %v320, %v362
  %v389 = vadd.f32 %v321, %v362
  %v390 = vadd.f32 %v322, %v362
  %v391 = vadd.f32 %v323, %v362
  %v392 = vadd.f32 %v324, %v362
  %v393 = vadd.f32 %v325, %v362
  %v394 = vadd.f32 %v326, %v362
  %v395 = vadd.f32 %v327, %v362
  %v396 = vadd.f32 %v328, %v362
  %v397 = vadd.f32 %v329, %v362
  %v398 = vadd.f32 %v330, %v362
  %v399 = vadd.f32 %v331, %v362
  %v400 = vadd.f32 %v332, %v362
  %v401 = vadd.f32 %v333, %v362
  %v402 = vadd.f32 %v334, %v362
  %v403 = vadd.f32 %v335, %v362
  %v404 = vadd.f32 %v336, %v362
  %v405 = vadd.f32 %v337, %v362
  %v406 = vadd.f32 %v338, %v362
  %v407 = vadd.f32 %v339, %v362
  %v408 = vadd.f32 %v340, %v362
  %v409 = vadd.f32 %v341, %v362
  %v410 = vadd.f32 %v342, %v362
  %v411 = vadd.f32 %v343, %v362
  %v412 = vadd.f32 %v344, %v362
  %v413 = vadd.f32 %v345, %v362
  %v414 = vadd.f32 %v346, %v362
  %v415 = vadd.f32 %v347, %v362
  %v416 = vadd.f32 %v348, %v362
  %v417 = vadd.f32 %v349, %v362
  %v418 = vadd.f32 %v350, %v362
  %v419 = vadd.f32 %v351, %v362
  %v420 = vadd.f32 %v352, %v362
  %v421 = vadd.f32 %v353, %v362
  %v422 = vadd.f32 %v354, %v362
  %v423 = vadd.f32 %v355, %v362
  %v424 = vadd.f32 %v356, %v362
  %v425 = vadd.f32 %v357, %v362
  %v426 = vadd.f32 %v358, %v362
  %v427 = vadd.f32 %v359, %v362
  %v428 = vpack.c.bf16 %v364, %v364
  %v429 = vpack.c.bf16 %v365, %v365
  %v430 = vpack.c.bf16 %v366, %v366
  %v431 = vpack.c.bf16 %v367, %v367
  %v432 = vpack.c.bf16 %v368, %v368
  %v433 = vpack.c.bf16 %v369, %v369
  %v434 = vpack.c.bf16 %v370, %v370
  %v435 = vpack.c.bf16 %v371, %v371
  %v436 = vpack.c.bf16 %v372, %v372
  %v437 = vpack.c.bf16 %v373, %v373
  %v438 = vpack.c.bf16 %v374, %v374
  %v439 = vpack.c.bf16 %v375, %v375
  %v440 = vpack.c.bf16 %v376, %v376
  %v441 = vpack.c.bf16 %v377, %v377
  %v442 = vpack.c.bf16 %v378, %v378
  %v443 = vpack.c.bf16 %v379, %v379
  %v444 = vpack.c.bf16 %v380, %v380
  %v445 = vpack.c.bf16 %v381, %v381
  %v446 = vpack.c.bf16 %v382, %v382
  %v447 = vpack.c.bf16 %v383, %v383
  %v448 = vpack.c.bf16 %v384, %v384
  %v449 = vpack.c.bf16 %v385, %v385
  %v450 = vpack.c.bf16 %v386, %v386
  %v451 = vpack.c.bf16 %v387, %v387
  %v452 = vpack.c.bf16 %v388, %v388
  %v453 = vpack.c.bf16 %v389, %v389
  %v454 = vpack.c.bf16 %v390, %v390
  %v455 = vpack.c.bf16 %v391, %v391
  %v456 = vpack.c.bf16 %v392, %v392
  %v457 = vpack.c.bf16 %v393, %v393
  %v458 = vpack.c.bf16 %v394, %v394
  %v459 = vpack.c.bf16 %v395, %v395
  %v460 = vpack.c.bf16 %v396, %v396
  %v461 = vpack.c.bf16 %v397, %v397
  %v462 = vpack.c.bf16 %v398, %v398
  %v463 = vpack.c.bf16 %v399, %v399
  %v464 = vpack.c.bf16 %v400, %v400
  %v465 = vpack.c.bf16 %v401, %v401
  %v466 = vpack.c.bf16 %v402, %v402
  %v467 = vpack.c.bf16 %v403, %v403
  %v468 = vpack.c.bf16 %v404, %v404
  %v469 = vpack.c.bf16 %v405, %v405
  %v470 = vpack.c.bf16 %v406, %v406
  %v471 = vpack.c.bf16 %v407, %v407
  %v472 = vpack.c.bf16 %v408, %v408
  %v473 = vpack.c.bf16 %v409, %v409
  %v474 = vpack.c.bf16 %v410, %v410
  %v475 = vpack.c.bf16 %v411, %v411
  %v476 = vpack.c.bf16 %v412, %v412
  %v477 = vpack.c.bf16 %v413, %v413
  %v478 = vpack.c.bf16 %v414, %v414
  %v479 = vpack.c.bf16 %v415, %v415
  %v480 = vpack.c.bf16 %v416, %v416
  %v481 = vpack.c.bf16 %v417, %v417
  %v482 = vpack.c.bf16 %v418, %v418
  %v483 = vpack.c.bf16 %v419, %v419
  %v484 = vpack.c.bf16 %v420, %v420
  %v485 = vpack.c.bf16 %v421, %v421
  %v486 = vpack.c.bf16 %v422, %v422
  %v487 = vpack.c.bf16 %v423, %v423
  %v488 = vpack.c.bf16 %v424, %v424
  %v489 = vpack.c.bf16 %v425, %v425
  %v490 = vpack.c.bf16 %v426, %v426
  %v491 = vpack.c.bf16 %v427, %v427
  %492 = vst [vmem:[%s4] sm:$0xf] %v428
  %493 = vst [vmem:[%s4 + $0x4] sm:$0xf] %v429
  %494 = vst [vmem:[%s4 + $0x8] sm:$0xf] %v430
  %495 = vst [vmem:[%s4 + $0xc] sm:$0xf] %v431
  %496 = vst [vmem:[%s4 + $0x10] sm:$0xf] %v432
  %497 = vst [vmem:[%s4 + $0x14] sm:$0xf] %v433
  %498 = vst [vmem:[%s4 + $0x18] sm:$0xf] %v434
  %499 = vst [vmem:[%s4 + $0x1c] sm:$0xf] %v435
  %500 = vst [vmem:[%s4 + $0x20] sm:$0xf] %v436
  %501 = vst [vmem:[%s4 + $0x24] sm:$0xf] %v437
  %502 = vst [vmem:[%s4 + $0x28] sm:$0xf] %v438
  %503 = vst [vmem:[%s4 + $0x2c] sm:$0xf] %v439
  %504 = vst [vmem:[%s4 + $0x30] sm:$0xf] %v440
  %505 = vst [vmem:[%s4 + $0x34] sm:$0xf] %v441
  %506 = vst [vmem:[%s4 + $0x38] sm:$0xf] %v442
  %507 = vst [vmem:[%s4 + $0x3c] sm:$0xf] %v443
  %508 = vst [vmem:[%s4 + $0x40] sm:$0xf] %v444
  %509 = vst [vmem:[%s4 + $0x44] sm:$0xf] %v445
  %510 = vst [vmem:[%s4 + $0x48] sm:$0xf] %v446
  %511 = vst [vmem:[%s4 + $0x4c] sm:$0xf] %v447
  %512 = vst [vmem:[%s4 + $0x50] sm:$0xf] %v448
  %513 = vst [vmem:[%s4 + $0x54] sm:$0xf] %v449
  %514 = vst [vmem:[%s4 + $0x58] sm:$0xf] %v450
  %515 = vst [vmem:[%s4 + $0x5c] sm:$0xf] %v451
  %516 = vst [vmem:[%s4 + $0x60] sm:$0xf] %v452
  %517 = vst [vmem:[%s4 + $0x64] sm:$0xf] %v453
  %518 = vst [vmem:[%s4 + $0x68] sm:$0xf] %v454
  %519 = vst [vmem:[%s4 + $0x6c] sm:$0xf] %v455
  %520 = vst [vmem:[%s4 + $0x70] sm:$0xf] %v456
  %521 = vst [vmem:[%s4 + $0x74] sm:$0xf] %v457
  %522 = vst [vmem:[%s4 + $0x78] sm:$0xf] %v458
  %523 = vst [vmem:[%s4 + $0x7c] sm:$0xf] %v459
  %524 = vst [vmem:[%s4 + $0x80] sm:$0xf] %v460
  %525 = vst [vmem:[%s4 + $0x84] sm:$0xf] %v461
  %526 = vst [vmem:[%s4 + $0x88] sm:$0xf] %v462
  %527 = vst [vmem:[%s4 + $0x8c] sm:$0xf] %v463
  %528 = vst [vmem:[%s4 + $0x90] sm:$0xf] %v464
  %529 = vst [vmem:[%s4 + $0x94] sm:$0xf] %v465
  %530 = vst [vmem:[%s4 + $0x98] sm:$0xf] %v466
  %531 = vst [vmem:[%s4 + $0x9c] sm:$0xf] %v467
  %532 = vst [vmem:[%s4 + $0xa0] sm:$0xf] %v468
  %533 = vst [vmem:[%s4 + $0xa4] sm:$0xf] %v469
  %534 = vst [vmem:[%s4 + $0xa8] sm:$0xf] %v470
  %535 = vst [vmem:[%s4 + $0xac] sm:$0xf] %v471
  %536 = vst [vmem:[%s4 + $0xb0] sm:$0xf] %v472
  %537 = vst [vmem:[%s4 + $0xb4] sm:$0xf] %v473
  %538 = vst [vmem:[%s4 + $0xb8] sm:$0xf] %v474
  %539 = vst [vmem:[%s4 + $0xbc] sm:$0xf] %v475
  %540 = vst [vmem:[%s4 + $0xc0] sm:$0xf] %v476
  %541 = vst [vmem:[%s4 + $0xc4] sm:$0xf] %v477
  %542 = vst [vmem:[%s4 + $0xc8] sm:$0xf] %v478
  %543 = vst [vmem:[%s4 + $0xcc] sm:$0xf] %v479
  %544 = vst [vmem:[%s4 + $0xd0] sm:$0xf] %v480
  %545 = vst [vmem:[%s4 + $0xd4] sm:$0xf] %v481
  %546 = vst [vmem:[%s4 + $0xd8] sm:$0xf] %v482
  %547 = vst [vmem:[%s4 + $0xdc] sm:$0xf] %v483
  %548 = vst [vmem:[%s4 + $0xe0] sm:$0xf] %v484
  %549 = vst [vmem:[%s4 + $0xe4] sm:$0xf] %v485
  %550 = vst [vmem:[%s4 + $0xe8] sm:$0xf] %v486
  %551 = vst [vmem:[%s4 + $0xec] sm:$0xf] %v487
  %552 = vst [vmem:[%s4 + $0xf0] sm:$0xf] %v488
  %553 = vst [vmem:[%s4 + $0xf4] sm:$0xf] %v489
  %554 = vst [vmem:[%s4 + $0xf8] sm:$0xf] %v490
  %555 = vst [vmem:[%s4 + $0xfc] sm:$0xf] %v491
  // Predicated region
  $region18: #{generator_forward.18} parent=0 // pred_check
    _
  $region19: #{generator_forward.18} parent=0 // pred_check_branch
    %557 = sbr.rel (0) target = $region21
  $region20: #{generator_forward.18} parent=0 // pred_region
    _
  $region21: #{generator_forward.18} parent=0 // pred_fallthru
    _
  // Predicated region
  $region22: #{generator_forward.18} parent=0 // pred_check
    _
  $region23: #{generator_forward.18} parent=0 // pred_check_branch
    %559 = sbr.rel (0) target = $region25
  $region24: #{generator_forward.18} parent=0 // pred_region
    _
  $region25: #{generator_forward.18} parent=0 // pred_fallthru
    _

// kernel: generator_forward.19
$region0: #{generator_forward.19}
  #allocation0 [shape = 'u32[]', space=smem, size = 0x4, offset = 0x4, fixed_abs, tag = 'smem constant byte address 0x4 - core index']
  #allocation1 [shape = 'u32[72,128]{1,0:T(1,128)}', space=vmem, size = 0x9000, scoped, tag = 'internal scratch']
  %s0 = inlined_call_operand.vmem [shape: bf16[4,512,512], index: 0, kind: input, shape index: {}]
  %s1 = inlined_call_operand.vmem [shape: bf16[4,512,8], index: 1, kind: input, shape index: {}]
  %s2 = inlined_call_operand.vmem [shape: f32[1,8], index: 2, kind: input, shape index: {}]
  %s3 = inlined_call_operand.vmem [shape: f32[4,512,8], index: 3, kind: output, shape index: {}]
  %s4 = sld [smem:[#allocation0]]
  $region45: #{generator_forward.19} parent=0
    _
  %s6 = ssub.s32 1, %s4
  %s7 = scalar_select 0, %s6, %s4
  loop: start=0, step=1, limit=6
  $region2: #{generator_forward.19} parent=0 // loop_pre_header
    _
  $region3: #{generator_forward.19} parent=0 // loop_header
    %s9 = sphi 0, %s13
    %p10 = scmp.ge.s32.totalorder %s9, 6
    %s16 = sphi 0, %s28
    %s17 = sphi 0, %s24
    %s18 = sphi 0, %s16
    %s19 = sphi 0, %s17
    %s20 = sphi 0, %s18
    %s21 = sphi 0, %s19
    %s33 = sphi 0, %s35
    %s36 = sphi 0, %s33
    %s37 = sphi 0, %s36
    %s53 = sphi 0, %s37
    %s59 = sphi 0, %s61
    %s62 = sphi 0, %s59
    %s63 = sphi 0, %s62
    %s79 = sphi 0, %s63
    %s83 = sphi 0, %s83
    %s85 = sphi 0, %s83
    %s86 = sphi 0, %s85
    %s100 = sphi 0, %s86
    %s108 = sphi 0, %s110
    %s111 = sphi 0, %s108
    %s112 = sphi 0, %s111
    %s128 = sphi 0, %s112
  $region4: #{generator_forward.19} parent=0 // loop_header_branch
    %12 = sbr.rel (%p10) target = $region8
  $region5: #{generator_forward.19} parent=0 // loop_body
    %s14 = ssub.s32 %s9, 1
    %s15 = ssub.s32 %s9, 2
    %s22 = sadd.s32 1, %s17
    %p23 = scmp.ge.s32.totalorder %s22, 1
    %s24 = scalar_select %p23, 0, %s22
    %s25 = sadd.s32 1, %s16
    %s26 = scalar_select %p23, %s25, %s16
    %p27 = scmp.ge.s32.totalorder %s26, 4
    %s28 = scalar_select %p27, 0, %s26
    %s29 = ssub.s32 %s16, %s28
    %s30 = ssub.s32 %s17, %s24
    %s31 = sor.u32 %s29, %s30
    %p32 = scmp.eq.s32.totalorder %s31, 0
    %s34 = sadd.s32 %s33, 1
    %s35 = scalar_select %p32, %s33, %s34
    %p38 = pneg %p32
    %p39 = scmp.eq.s32.totalorder %s9, 3
    %p40 = por %p38, %p39
    %p41 = scmp.ne.s32.totalorder %s33, %s36
    %p42 = scmp.eq.s32.totalorder %s9, 0
    %p43 = por %p41, %p42
    %p44 = scmp.ne.s32.totalorder %s33, %s36
    %p45 = scmp.eq.s32.totalorder %s14, 3
    %p46 = por %p44, %p45
    %p47 = scmp.ne.s32.totalorder %s36, %s37
    %p48 = scmp.eq.s32.totalorder %s14, 0
    %p49 = por %p47, %p48
    %p50 = scmp.ne.s32.totalorder %s36, %s37
    %p51 = scmp.eq.s32.totalorder %s15, 3
    %p52 = por %p50, %p51
    %p54 = scmp.ne.s32.totalorder %s37, %s53
    %p55 = scmp.eq.s32.totalorder %s15, 0
    %p56 = por %p54, %p55
    %s57 = ssub.s32 %s16, %s28
    %p58 = scmp.eq.s32.totalorder %s57, 0
    %s60 = sadd.s32 %s59, 1
    %s61 = scalar_select %p58, %s59, %s60
    %p64 = pneg %p58
    %p65 = scmp.eq.s32.totalorder %s9, 3
    %p66 = por %p64, %p65
    %p67 = scmp.ne.s32.totalorder %s59, %s62
    %p68 = scmp.eq.s32.totalorder %s9, 0
    %p69 = por %p67, %p68
    %p70 = scmp.ne.s32.totalorder %s59, %s62
    %p71 = scmp.eq.s32.totalorder %s14, 3
    %p72 = por %p70, %p71
    %p73 = scmp.ne.s32.totalorder %s62, %s63
    %p74 = scmp.eq.s32.totalorder %s14, 0
    %p75 = por %p73, %p74
    %p76 = scmp.ne.s32.totalorder %s62, %s63
    %p77 = scmp.eq.s32.totalorder %s15, 3
    %p78 = por %p76, %p77
    %p80 = scmp.ne.s32.totalorder %s63, %s79
    %p81 = scmp.eq.s32.totalorder %s15, 0
    %p82 = por %p80, %p81
    %s84 = sadd.s32 %s83, 1
    %p87 = scmp.eq.s32.totalorder %s9, 3
    %p88 = scmp.ne.s32.totalorder %s83, %s85
    %p89 = scmp.eq.s32.totalorder %s9, 0
    %p90 = por %p88, %p89
    %p91 = scmp.ne.s32.totalorder %s83, %s85
    %p92 = scmp.eq.s32.totalorder %s14, 3
    %p93 = por %p91, %p92
    %p94 = scmp.ne.s32.totalorder %s85, %s86
    %p95 = scmp.eq.s32.totalorder %s14, 0
    %p96 = por %p94, %p95
    %p97 = scmp.ne.s32.totalorder %s85, %s86
    %p98 = scmp.eq.s32.totalorder %s15, 3
    %p99 = por %p97, %p98
    %p101 = scmp.ne.s32.totalorder %s86, %s100
    %p102 = scmp.eq.s32.totalorder %s15, 0
    %p103 = por %p101, %p102
    %s104 = ssub.s32 %s16, %s28
    %s105 = ssub.s32 %s17, %s24
    %s106 = sor.u32 %s104, %s105
    %p107 = scmp.eq.s32.totalorder %s106, 0
    %s109 = sadd.s32 %s108, 1
    %s110 = scalar_select %p107, %s108, %s109
    %p113 = pneg %p107
    %p114 = scmp.eq.s32.totalorder %s9, 3
    %p115 = por %p113, %p114
    %p116 = scmp.ne.s32.totalorder %s108, %s111
    %p117 = scmp.eq.s32.totalorder %s9, 0
    %p118 = por %p116, %p117
    %p119 = scmp.ne.s32.totalorder %s108, %s111
    %p120 = scmp.eq.s32.totalorder %s14, 3
    %p121 = por %p119, %p120
    %p122 = scmp.ne.s32.totalorder %s111, %s112
    %p123 = scmp.eq.s32.totalorder %s14, 0
    %p124 = por %p122, %p123
    %p125 = scmp.ne.s32.totalorder %s111, %s112
    %p126 = scmp.eq.s32.totalorder %s15, 3
    %p127 = por %p125, %p126
    %p129 = scmp.ne.s32.totalorder %s112, %s128
    %p130 = scmp.eq.s32.totalorder %s15, 0
    %p131 = por %p129, %p130
    %p132 = scmp.le.s32.totalorder 1, %s9
    %p133 = scmp.lt.s32.totalorder %s9, 5
    %p134 = pnand %p132, %p133
    %p135 = pneg %p134
    // Predicated region
    $region9: #{generator_forward.19} parent=5 // pred_check
      _
    $region10: #{generator_forward.19} parent=5 // pred_check_branch
      %137 = sbr.rel (%p134) target = $region12
    $region11: #{generator_forward.19} parent=5 // pred_region
      %s138 = ssub.s32 %s9, 1
      // Predicated region
      $region13: #{generator_forward.19} parent=11 // pred_check
        %p139 = pneg %p96
      $region14: #{generator_forward.19} parent=11 // pred_check_branch
        %141 = sbr.rel (%p139) target = $region16
      $region15: #{generator_forward.19} parent=11 // pred_region
        _
      $region16: #{generator_forward.19} parent=11 // pred_fallthru
        _
    $region12: #{generator_forward.19} parent=5 // pred_fallthru
      _
    %p142 = scmp.lt.s32.totalorder %s9, 4
    // Predicated region
    $region17: #{generator_forward.19} parent=5 // pred_check
      %p143 = pneg %p142
    $region18: #{generator_forward.19} parent=5 // pred_check_branch
      %145 = sbr.rel (%p143) target = $region20
    $region19: #{generator_forward.19} parent=5 // pred_region
      // Predicated region
      $region21: #{generator_forward.19} parent=19 // pred_check
        %p146 = pneg %p43
      $region22: #{generator_forward.19} parent=19 // pred_check_branch
        %148 = sbr.rel (%p146) target = $region24
      $region23: #{generator_forward.19} parent=19 // pred_region
        %s149 = smul.u32 64, %s17
        %p150 = scmp.lt.s32.totalorder %s16, 3
        %s151 = scalar_select %p150, %s16, 3
        %p152 = scmp.lt.s32.totalorder %s149, 63
        %s153 = scalar_select %p152, %s149, 63
        %s154 = smul.addr %s153, 4
        %s155 = smul.addr %s151, 256
        %s156 = sadd.s32 %s154, %s155
        %s157 = smul.addr %s156, 4
        %s158 = scalar_lea.vmem %s0, %s157
        %s159 = smul.u32 64, %s17
      $region24: #{generator_forward.19} parent=19 // pred_fallthru
        _
      // Predicated region
      $region25: #{generator_forward.19} parent=19 // pred_check
        %p160 = pneg %p69
      $region26: #{generator_forward.19} parent=19 // pred_check_branch
        %162 = sbr.rel (%p160) target = $region28
      $region27: #{generator_forward.19} parent=19 // pred_region
        %p163 = scmp.lt.s32.totalorder %s16, 3
        %s164 = scalar_select %p163, %s16, 3
        %s165 = smul.addr %s164, 64
        %s166 = smul.addr %s165, 4
        %s167 = scalar_lea.vmem %s1, %s166
      $region28: #{generator_forward.19} parent=19 // pred_fallthru
        _
    $region20: #{generator_forward.19} parent=5 // pred_fallthru
      _
    %p168 = scmp.le.s32.totalorder 1, %s9
    %p169 = scmp.lt.s32.totalorder %s9, 5
    %p170 = pnand %p168, %p169
    %p171 = pneg %p170
    // Predicated region
    $region29: #{generator_forward.19} parent=5 // pred_check
      _
    $region30: #{generator_forward.19} parent=5 // pred_check_branch
      %173 = sbr.rel (%p170) target = $region32
    $region31: #{generator_forward.19} parent=5 // pred_region
      %s174 = ssub.s32 %s9, 1
      %s175 = smul.u32 64, %s19
      %p176 = scmp.lt.s32.totalorder %s18, 3
      %s177 = scalar_select %p176, %s18, 3
      %p178 = scmp.lt.s32.totalorder %s175, 63
      %s179 = scalar_select %p178, %s175, 63
      %s180 = smul.addr %s179, 4
      %s181 = smul.addr %s177, 256
      %s182 = sadd.s32 %s180, %s181
      %s183 = smul.addr %s182, 4
      %s184 = scalar_lea.vmem %s0, %s183
      %p185 = pneg %p49
      %p186 = pneg %p46
      %p187 = scmp.lt.s32.totalorder %s18, 3
      %s188 = scalar_select %p187, %s18, 3
      %s189 = smul.addr %s188, 64
      %s190 = smul.addr %s189, 4
      %s191 = scalar_lea.vmem %s1, %s190
      %p192 = pneg %p75
      %p193 = pneg %p72
      %p194 = pneg %p96
      %p195 = pneg %p93
      %p196 = pneg %p124
      %p197 = pneg %p121
      %s198 = smul.u32 64, %s19
      %p199 = scmp.lt.s32.totalorder %s18, 3
      %s200 = scalar_select %p199, %s18, 3
      %p201 = scmp.lt.s32.totalorder %s198, 63
      %s202 = scalar_select %p201, %s198, 63
      %s203 = smul.addr %s200, 64
      %s204 = sadd.s32 %s202, %s203
      %s205 = smul.addr %s204, 8
      %s206 = scalar_lea.vmem %s3, %s205
      %s207 = smul.u32 64, %s19
      %p208 = scmp.lt.s32.totalorder %s18, 3
      %s209 = scalar_select %p208, %s18, 3
      %p210 = scmp.lt.s32.totalorder %s207, 63
      %s211 = scalar_select %p210, %s207, 63
      %s212 = smul.addr %s211, 4
      %s213 = smul.addr %s209, 256
      %s214 = sadd.s32 %s212, %s213
      %s215 = smul.addr %s214, 4
      %s216 = scalar_lea.vmem %s0, %s215
      %s217 = smul.u32 64, %s19
      %p218 = scmp.lt.s32.totalorder %s18, 3
      %s219 = scalar_select %p218, %s18, 3
      %s220 = smul.addr %s219, 64
      %s221 = smul.addr %s220, 4
      %s222 = scalar_lea.vmem %s1, %s221
      %s223 = smul.u32 64, %s19
      %p224 = scmp.lt.s32.totalorder %s18, 3
      %s225 = scalar_select %p224, %s18, 3
      %p226 = scmp.lt.s32.totalorder %s223, 63
      %s227 = scalar_select %p226, %s223, 63
      %s228 = smul.addr %s225, 64
      %s229 = sadd.s32 %s227, %s228
      %s230 = smul.addr %s229, 8
      %s231 = scalar_lea.vmem %s3, %s230
      %s232 = smul.u32 64, %s19
      %v233 = vld [vmem:[%s216] sm:$0xff]
      %v234 = vld [vmem:[%s216 + $0x8] sm:$0xff]
      %v235 = vld [vmem:[%s216 + $0x10] sm:$0xff]
      %v236 = vld [vmem:[%s216 + $0x18] sm:$0xff]
      %v237 = vld [vmem:[%s216 + $0x20] sm:$0xff]
      %v238 = vld [vmem:[%s216 + $0x28] sm:$0xff]
      %v239 = vld [vmem:[%s216 + $0x30] sm:$0xff]
      %v240 = vld [vmem:[%s216 + $0x38] sm:$0xff]
      %v241 = vld [vmem:[%s216 + $0x40] sm:$0xff]
      %v242 = vld [vmem:[%s216 + $0x48] sm:$0xff]
      %v243 = vld [vmem:[%s216 + $0x50] sm:$0xff]
      %v244 = vld [vmem:[%s216 + $0x58] sm:$0xff]
      %v245 = vld [vmem:[%s216 + $0x60] sm:$0xff]
      %v246 = vld [vmem:[%s216 + $0x68] sm:$0xff]
      %v247 = vld [vmem:[%s216 + $0x70] sm:$0xff]
      %v248 = vld [vmem:[%s216 + $0x78] sm:$0xff]
      %v249 = vld [vmem:[%s216 + $0x80] sm:$0xff]
      %v250 = vld [vmem:[%s216 + $0x88] sm:$0xff]
      %v251 = vld [vmem:[%s216 + $0x90] sm:$0xff]
      %v252 = vld [vmem:[%s216 + $0x98] sm:$0xff]
      %v253 = vld [vmem:[%s216 + $0xa0] sm:$0xff]
      %v254 = vld [vmem:[%s216 + $0xa8] sm:$0xff]
      %v255 = vld [vmem:[%s216 + $0xb0] sm:$0xff]
      %v256 = vld [vmem:[%s216 + $0xb8] sm:$0xff]
      %v257 = vld [vmem:[%s216 + $0xc0] sm:$0xff]
      %v258 = vld [vmem:[%s216 + $0xc8] sm:$0xff]
      %v259 = vld [vmem:[%s216 + $0xd0] sm:$0xff]
      %v260 = vld [vmem:[%s216 + $0xd8] sm:$0xff]
      %v261 = vld [vmem:[%s216 + $0xe0] sm:$0xff]
      %v262 = vld [vmem:[%s216 + $0xe8] sm:$0xff]
      %v263 = vld [vmem:[%s216 + $0xf0] sm:$0xff]
      %v264 = vld [vmem:[%s216 + $0xf8] sm:$0xff]
      %v265 = vld [vmem:[%s216 + $0x100] sm:$0xff]
      %v266 = vld [vmem:[%s216 + $0x108] sm:$0xff]
      %v267 = vld [vmem:[%s216 + $0x110] sm:$0xff]
      %v268 = vld [vmem:[%s216 + $0x118] sm:$0xff]
      %v269 = vld [vmem:[%s216 + $0x120] sm:$0xff]
      %v270 = vld [vmem:[%s216 + $0x128] sm:$0xff]
      %v271 = vld [vmem:[%s216 + $0x130] sm:$0xff]
      %v272 = vld [vmem:[%s216 + $0x138] sm:$0xff]
      %v273 = vld [vmem:[%s216 + $0x140] sm:$0xff]
      %v274 = vld [vmem:[%s216 + $0x148] sm:$0xff]
      %v275 = vld [vmem:[%s216 + $0x150] sm:$0xff]
      %v276 = vld [vmem:[%s216 + $0x158] sm:$0xff]
      %v277 = vld [vmem:[%s216 + $0x160] sm:$0xff]
      %v278 = vld [vmem:[%s216 + $0x168] sm:$0xff]
      %v279 = vld [vmem:[%s216 + $0x170] sm:$0xff]
      %v280 = vld [vmem:[%s216 + $0x178] sm:$0xff]
      %v281 = vld [vmem:[%s216 + $0x180] sm:$0xff]
      %v282 = vld [vmem:[%s216 + $0x188] sm:$0xff]
      %v283 = vld [vmem:[%s216 + $0x190] sm:$0xff]
      %v284 = vld [vmem:[%s216 + $0x198] sm:$0xff]
      %v285 = vld [vmem:[%s216 + $0x1a0] sm:$0xff]
      %v286 = vld [vmem:[%s216 + $0x1a8] sm:$0xff]
      %v287 = vld [vmem:[%s216 + $0x1b0] sm:$0xff]
      %v288 = vld [vmem:[%s216 + $0x1b8] sm:$0xff]
      %v289 = vld [vmem:[%s216 + $0x1c0] sm:$0xff]
      %v290 = vld [vmem:[%s216 + $0x1c8] sm:$0xff]
      %v291 = vld [vmem:[%s216 + $0x1d0] sm:$0xff]
      %v292 = vld [vmem:[%s216 + $0x1d8] sm:$0xff]
      %v293 = vld [vmem:[%s216 + $0x1e0] sm:$0xff]
      %v294 = vld [vmem:[%s216 + $0x1e8] sm:$0xff]
      %v295 = vld [vmem:[%s216 + $0x1f0] sm:$0xff]
      %v296 = vld [vmem:[%s216 + $0x1f8] sm:$0xff]
      %v297 = vld [vmem:[%s216 + $0x200] sm:$0xff]
      %v298 = vld [vmem:[%s216 + $0x208] sm:$0xff]
      %v299 = vld [vmem:[%s216 + $0x210] sm:$0xff]
      %v300 = vld [vmem:[%s216 + $0x218] sm:$0xff]
      %v301 = vld [vmem:[%s216 + $0x220] sm:$0xff]
      %v302 = vld [vmem:[%s216 + $0x228] sm:$0xff]
      %v303 = vld [vmem:[%s216 + $0x230] sm:$0xff]
      %v304 = vld [vmem:[%s216 + $0x238] sm:$0xff]
      %v305 = vld [vmem:[%s216 + $0x240] sm:$0xff]
      %v306 = vld [vmem:[%s216 + $0x248] sm:$0xff]
      %v307 = vld [vmem:[%s216 + $0x250] sm:$0xff]
      %v308 = vld [vmem:[%s216 + $0x258] sm:$0xff]
      %v309 = vld [vmem:[%s216 + $0x260] sm:$0xff]
      %v310 = vld [vmem:[%s216 + $0x268] sm:$0xff]
      %v311 = vld [vmem:[%s216 + $0x270] sm:$0xff]
      %v312 = vld [vmem:[%s216 + $0x278] sm:$0xff]
      %v313 = vld [vmem:[%s216 + $0x280] sm:$0xff]
      %v314 = vld [vmem:[%s216 + $0x288] sm:$0xff]
      %v315 = vld [vmem:[%s216 + $0x290] sm:$0xff]
      %v316 = vld [vmem:[%s216 + $0x298] sm:$0xff]
      %v317 = vld [vmem:[%s216 + $0x2a0] sm:$0xff]
      %v318 = vld [vmem:[%s216 + $0x2a8] sm:$0xff]
      %v319 = vld [vmem:[%s216 + $0x2b0] sm:$0xff]
      %v320 = vld [vmem:[%s216 + $0x2b8] sm:$0xff]
      %v321 = vld [vmem:[%s216 + $0x2c0] sm:$0xff]
      %v322 = vld [vmem:[%s216 + $0x2c8] sm:$0xff]
      %v323 = vld [vmem:[%s216 + $0x2d0] sm:$0xff]
      %v324 = vld [vmem:[%s216 + $0x2d8] sm:$0xff]
      %v325 = vld [vmem:[%s216 + $0x2e0] sm:$0xff]
      %v326 = vld [vmem:[%s216 + $0x2e8] sm:$0xff]
      %v327 = vld [vmem:[%s216 + $0x2f0] sm:$0xff]
      %v328 = vld [vmem:[%s216 + $0x2f8] sm:$0xff]
      %v329 = vld [vmem:[%s216 + $0x300] sm:$0xff]
      %v330 = vld [vmem:[%s216 + $0x308] sm:$0xff]
      %v331 = vld [vmem:[%s216 + $0x310] sm:$0xff]
      %v332 = vld [vmem:[%s216 + $0x318] sm:$0xff]
      %v333 = vld [vmem:[%s216 + $0x320] sm:$0xff]
      %v334 = vld [vmem:[%s216 + $0x328] sm:$0xff]
      %v335 = vld [vmem:[%s216 + $0x330] sm:$0xff]
      %v336 = vld [vmem:[%s216 + $0x338] sm:$0xff]
      %v337 = vld [vmem:[%s216 + $0x340] sm:$0xff]
      %v338 = vld [vmem:[%s216 + $0x348] sm:$0xff]
      %v339 = vld [vmem:[%s216 + $0x350] sm:$0xff]
      %v340 = vld [vmem:[%s216 + $0x358] sm:$0xff]
      %v341 = vld [vmem:[%s216 + $0x360] sm:$0xff]
      %v342 = vld [vmem:[%s216 + $0x368] sm:$0xff]
      %v343 = vld [vmem:[%s216 + $0x370] sm:$0xff]
      %v344 = vld [vmem:[%s216 + $0x378] sm:$0xff]
      %v345 = vld [vmem:[%s216 + $0x380] sm:$0xff]
      %v346 = vld [vmem:[%s216 + $0x388] sm:$0xff]
      %v347 = vld [vmem:[%s216 + $0x390] sm:$0xff]
      %v348 = vld [vmem:[%s216 + $0x398] sm:$0xff]
      %v349 = vld [vmem:[%s216 + $0x3a0] sm:$0xff]
      %v350 = vld [vmem:[%s216 + $0x3a8] sm:$0xff]
      %v351 = vld [vmem:[%s216 + $0x3b0] sm:$0xff]
      %v352 = vld [vmem:[%s216 + $0x3b8] sm:$0xff]
      %v353 = vld [vmem:[%s216 + $0x3c0] sm:$0xff]
      %v354 = vld [vmem:[%s216 + $0x3c8] sm:$0xff]
      %v355 = vld [vmem:[%s216 + $0x3d0] sm:$0xff]
      %v356 = vld [vmem:[%s216 + $0x3d8] sm:$0xff]
      %v357 = vld [vmem:[%s216 + $0x3e0] sm:$0xff]
      %v358 = vld [vmem:[%s216 + $0x3e8] sm:$0xff]
      %v359 = vld [vmem:[%s216 + $0x3f0] sm:$0xff]
      %v360 = vld [vmem:[%s216 + $0x3f8] sm:$0xff]
      %v361 = vld [vmem:[%s222] sm:$0xf]
      %v362 = vld [vmem:[%s222 + $0x4] sm:$0xf]
      %v363 = vld [vmem:[%s222 + $0x8] sm:$0xf]
      %v364 = vld [vmem:[%s222 + $0xc] sm:$0xf]
      %v365 = vld [vmem:[%s222 + $0x10] sm:$0xf]
      %v366 = vld [vmem:[%s222 + $0x14] sm:$0xf]
      %v367 = vld [vmem:[%s222 + $0x18] sm:$0xf]
      %v368 = vld [vmem:[%s222 + $0x1c] sm:$0xf]
      %v369 = vld [vmem:[%s222 + $0x20] sm:$0xf]
      %v370 = vld [vmem:[%s222 + $0x24] sm:$0xf]
      %v371 = vld [vmem:[%s222 + $0x28] sm:$0xf]
      %v372 = vld [vmem:[%s222 + $0x2c] sm:$0xf]
      %v373 = vld [vmem:[%s222 + $0x30] sm:$0xf]
      %v374 = vld [vmem:[%s222 + $0x34] sm:$0xf]
      %v375 = vld [vmem:[%s222 + $0x38] sm:$0xf]
      %v376 = vld [vmem:[%s222 + $0x3c] sm:$0xf]
      %v377 = vld [vmem:[%s222 + $0x40] sm:$0xf]
      %v378 = vld [vmem:[%s222 + $0x44] sm:$0xf]
      %v379 = vld [vmem:[%s222 + $0x48] sm:$0xf]
      %v380 = vld [vmem:[%s222 + $0x4c] sm:$0xf]
      %v381 = vld [vmem:[%s222 + $0x50] sm:$0xf]
      %v382 = vld [vmem:[%s222 + $0x54] sm:$0xf]
      %v383 = vld [vmem:[%s222 + $0x58] sm:$0xf]
      %v384 = vld [vmem:[%s222 + $0x5c] sm:$0xf]
      %v385 = vld [vmem:[%s222 + $0x60] sm:$0xf]
      %v386 = vld [vmem:[%s222 + $0x64] sm:$0xf]
      %v387 = vld [vmem:[%s222 + $0x68] sm:$0xf]
      %v388 = vld [vmem:[%s222 + $0x6c] sm:$0xf]
      %v389 = vld [vmem:[%s222 + $0x70] sm:$0xf]
      %v390 = vld [vmem:[%s222 + $0x74] sm:$0xf]
      %v391 = vld [vmem:[%s222 + $0x78] sm:$0xf]
      %v392 = vld [vmem:[%s222 + $0x7c] sm:$0xf]
      %v393 = vld [vmem:[%s222 + $0x80] sm:$0xf]
      %v394 = vld [vmem:[%s222 + $0x84] sm:$0xf]
      %v395 = vld [vmem:[%s222 + $0x88] sm:$0xf]
      %v396 = vld [vmem:[%s222 + $0x8c] sm:$0xf]
      %v397 = vld [vmem:[%s222 + $0x90] sm:$0xf]
      %v398 = vld [vmem:[%s222 + $0x94] sm:$0xf]
      %v399 = vld [vmem:[%s222 + $0x98] sm:$0xf]
      %v400 = vld [vmem:[%s222 + $0x9c] sm:$0xf]
      %v401 = vld [vmem:[%s222 + $0xa0] sm:$0xf]
      %v402 = vld [vmem:[%s222 + $0xa4] sm:$0xf]
      %v403 = vld [vmem:[%s222 + $0xa8] sm:$0xf]
      %v404 = vld [vmem:[%s222 + $0xac] sm:$0xf]
      %v405 = vld [vmem:[%s222 + $0xb0] sm:$0xf]
      %v406 = vld [vmem:[%s222 + $0xb4] sm:$0xf]
      %v407 = vld [vmem:[%s222 + $0xb8] sm:$0xf]
      %v408 = vld [vmem:[%s222 + $0xbc] sm:$0xf]
      %v409 = vld [vmem:[%s222 + $0xc0] sm:$0xf]
      %v410 = vld [vmem:[%s222 + $0xc4] sm:$0xf]
      %v411 = vld [vmem:[%s222 + $0xc8] sm:$0xf]
      %v412 = vld [vmem:[%s222 + $0xcc] sm:$0xf]
      %v413 = vld [vmem:[%s222 + $0xd0] sm:$0xf]
      %v414 = vld [vmem:[%s222 + $0xd4] sm:$0xf]
      %v415 = vld [vmem:[%s222 + $0xd8] sm:$0xf]
      %v416 = vld [vmem:[%s222 + $0xdc] sm:$0xf]
      %v417 = vld [vmem:[%s222 + $0xe0] sm:$0xf]
      %v418 = vld [vmem:[%s222 + $0xe4] sm:$0xf]
      %v419 = vld [vmem:[%s222 + $0xe8] sm:$0xf]
      %v420 = vld [vmem:[%s222 + $0xec] sm:$0xf]
      %v421 = vld [vmem:[%s222 + $0xf0] sm:$0xf]
      %v422 = vld [vmem:[%s222 + $0xf4] sm:$0xf]
      %v423 = vld [vmem:[%s222 + $0xf8] sm:$0xf]
      %v424 = vld [vmem:[%s222 + $0xfc] sm:$0xf]
      %v425 = vld [vmem:[%s2] sm:$0x1]
      %v427 = vperm.slane %v425, 0
      %v557 = vunpack.c.l.b16 %v233
      %v558 = vunpack.c.h.b16 %v233
      %v559 = vunpack.c.l.b16 %v234
      %v560 = vunpack.c.h.b16 %v234
      %v561 = vunpack.c.l.b16 %v235
      %v562 = vunpack.c.h.b16 %v235
      %v563 = vunpack.c.l.b16 %v236
      %v564 = vunpack.c.h.b16 %v236
      %v565 = vunpack.c.l.b16 %v237
      %v566 = vunpack.c.h.b16 %v237
      %v567 = vunpack.c.l.b16 %v238
      %v568 = vunpack.c.h.b16 %v238
      %v569 = vunpack.c.l.b16 %v239
      %v570 = vunpack.c.h.b16 %v239
      %v571 = vunpack.c.l.b16 %v240
      %v572 = vunpack.c.h.b16 %v240
      %v573 = vunpack.c.l.b16 %v241
      %v574 = vunpack.c.h.b16 %v241
      %v575 = vunpack.c.l.b16 %v242
      %v576 = vunpack.c.h.b16 %v242
      %v577 = vunpack.c.l.b16 %v243
      %v578 = vunpack.c.h.b16 %v243
      %v579 = vunpack.c.l.b16 %v244
      %v580 = vunpack.c.h.b16 %v244
      %v581 = vunpack.c.l.b16 %v245
      %v582 = vunpack.c.h.b16 %v245
      %v583 = vunpack.c.l.b16 %v246
      %v584 = vunpack.c.h.b16 %v246
      %v585 = vunpack.c.l.b16 %v247
      %v586 = vunpack.c.h.b16 %v247
      %v587 = vunpack.c.l.b16 %v248
      %v588 = vunpack.c.h.b16 %v248
      %v589 = vunpack.c.l.b16 %v249
      %v590 = vunpack.c.h.b16 %v249
      %v591 = vunpack.c.l.b16 %v250
      %v592 = vunpack.c.h.b16 %v250
      %v593 = vunpack.c.l.b16 %v251
      %v594 = vunpack.c.h.b16 %v251
      %v595 = vunpack.c.l.b16 %v252
      %v596 = vunpack.c.h.b16 %v252
      %v597 = vunpack.c.l.b16 %v253
      %v598 = vunpack.c.h.b16 %v253
      %v599 = vunpack.c.l.b16 %v254
      %v600 = vunpack.c.h.b16 %v254
      %v601 = vunpack.c.l.b16 %v255
      %v602 = vunpack.c.h.b16 %v255
      %v603 = vunpack.c.l.b16 %v256
      %v604 = vunpack.c.h.b16 %v256
      %v605 = vunpack.c.l.b16 %v257
      %v606 = vunpack.c.h.b16 %v257
      %v607 = vunpack.c.l.b16 %v258
      %v608 = vunpack.c.h.b16 %v258
      %v609 = vunpack.c.l.b16 %v259
      %v610 = vunpack.c.h.b16 %v259
      %v611 = vunpack.c.l.b16 %v260
      %v612 = vunpack.c.h.b16 %v260
      %v613 = vunpack.c.l.b16 %v261
      %v614 = vunpack.c.h.b16 %v261
      %v615 = vunpack.c.l.b16 %v262
      %v616 = vunpack.c.h.b16 %v262
      %v617 = vunpack.c.l.b16 %v263
      %v618 = vunpack.c.h.b16 %v263
      %v619 = vunpack.c.l.b16 %v264
      %v620 = vunpack.c.h.b16 %v264
      %v621 = vunpack.c.l.b16 %v265
      %v622 = vunpack.c.h.b16 %v265
      %v623 = vunpack.c.l.b16 %v266
      %v624 = vunpack.c.h.b16 %v266
      %v625 = vunpack.c.l.b16 %v267
      %v626 = vunpack.c.h.b16 %v267
      %v627 = vunpack.c.l.b16 %v268
      %v628 = vunpack.c.h.b16 %v268
      %v629 = vunpack.c.l.b16 %v269
      %v630 = vunpack.c.h.b16 %v269
      %v631 = vunpack.c.l.b16 %v270
      %v632 = vunpack.c.h.b16 %v270
      %v633 = vunpack.c.l.b16 %v271
      %v634 = vunpack.c.h.b16 %v271
      %v635 = vunpack.c.l.b16 %v272
      %v636 = vunpack.c.h.b16 %v272
      %v637 = vunpack.c.l.b16 %v273
      %v638 = vunpack.c.h.b16 %v273
      %v639 = vunpack.c.l.b16 %v274
      %v640 = vunpack.c.h.b16 %v274
      %v641 = vunpack.c.l.b16 %v275
      %v642 = vunpack.c.h.b16 %v275
      %v643 = vunpack.c.l.b16 %v276
      %v644 = vunpack.c.h.b16 %v276
      %v645 = vunpack.c.l.b16 %v277
      %v646 = vunpack.c.h.b16 %v277
      %v647 = vunpack.c.l.b16 %v278
      %v648 = vunpack.c.h.b16 %v278
      %v649 = vunpack.c.l.b16 %v279
      %v650 = vunpack.c.h.b16 %v279
      %v651 = vunpack.c.l.b16 %v280
      %v652 = vunpack.c.h.b16 %v280
      %v653 = vunpack.c.l.b16 %v281
      %v654 = vunpack.c.h.b16 %v281
      %v655 = vunpack.c.l.b16 %v282
      %v656 = vunpack.c.h.b16 %v282
      %v657 = vunpack.c.l.b16 %v283
      %v658 = vunpack.c.h.b16 %v283
      %v659 = vunpack.c.l.b16 %v284
      %v660 = vunpack.c.h.b16 %v284
      %v661 = vunpack.c.l.b16 %v285
      %v662 = vunpack.c.h.b16 %v285
      %v663 = vunpack.c.l.b16 %v286
      %v664 = vunpack.c.h.b16 %v286
      %v665 = vunpack.c.l.b16 %v287
      %v666 = vunpack.c.h.b16 %v287
      %v667 = vunpack.c.l.b16 %v288
      %v668 = vunpack.c.h.b16 %v288
      %v669 = vunpack.c.l.b16 %v289
      %v670 = vunpack.c.h.b16 %v289
      %v671 = vunpack.c.l.b16 %v290
      %v672 = vunpack.c.h.b16 %v290
      %v673 = vunpack.c.l.b16 %v291
      %v674 = vunpack.c.h.b16 %v291
      %v675 = vunpack.c.l.b16 %v292
      %v676 = vunpack.c.h.b16 %v292
      %v677 = vunpack.c.l.b16 %v293
      %v678 = vunpack.c.h.b16 %v293
      %v679 = vunpack.c.l.b16 %v294
      %v680 = vunpack.c.h.b16 %v294
      %v681 = vunpack.c.l.b16 %v295
      %v682 = vunpack.c.h.b16 %v295
      %v683 = vunpack.c.l.b16 %v296
      %v684 = vunpack.c.h.b16 %v296
      %v685 = vunpack.c.l.b16 %v297
      %v686 = vunpack.c.h.b16 %v297
      %v687 = vunpack.c.l.b16 %v298
      %v688 = vunpack.c.h.b16 %v298
      %v689 = vunpack.c.l.b16 %v299
      %v690 = vunpack.c.h.b16 %v299
      %v691 = vunpack.c.l.b16 %v300
      %v692 = vunpack.c.h.b16 %v300
      %v693 = vunpack.c.l.b16 %v301
      %v694 = vunpack.c.h.b16 %v301
      %v695 = vunpack.c.l.b16 %v302
      %v696 = vunpack.c.h.b16 %v302
      %v697 = vunpack.c.l.b16 %v303
      %v698 = vunpack.c.h.b16 %v303
      %v699 = vunpack.c.l.b16 %v304
      %v700 = vunpack.c.h.b16 %v304
      %v701 = vunpack.c.l.b16 %v305
      %v702 = vunpack.c.h.b16 %v305
      %v703 = vunpack.c.l.b16 %v306
      %v704 = vunpack.c.h.b16 %v306
      %v705 = vunpack.c.l.b16 %v307
      %v706 = vunpack.c.h.b16 %v307
      %v707 = vunpack.c.l.b16 %v308
      %v708 = vunpack.c.h.b16 %v308
      %v709 = vunpack.c.l.b16 %v309
      %v710 = vunpack.c.h.b16 %v309
      %v711 = vunpack.c.l.b16 %v310
      %v712 = vunpack.c.h.b16 %v310
      %v713 = vunpack.c.l.b16 %v311
      %v714 = vunpack.c.h.b16 %v311
      %v715 = vunpack.c.l.b16 %v312
      %v716 = vunpack.c.h.b16 %v312
      %v717 = vunpack.c.l.b16 %v313
      %v718 = vunpack.c.h.b16 %v313
      %v719 = vunpack.c.l.b16 %v314
      %v720 = vunpack.c.h.b16 %v314
      %v721 = vunpack.c.l.b16 %v315
      %v722 = vunpack.c.h.b16 %v315
      %v723 = vunpack.c.l.b16 %v316
      %v724 = vunpack.c.h.b16 %v316
      %v725 = vunpack.c.l.b16 %v317
      %v726 = vunpack.c.h.b16 %v317
      %v727 = vunpack.c.l.b16 %v318
      %v728 = vunpack.c.h.b16 %v318
      %v729 = vunpack.c.l.b16 %v319
      %v730 = vunpack.c.h.b16 %v319
      %v731 = vunpack.c.l.b16 %v320
      %v732 = vunpack.c.h.b16 %v320
      %v733 = vunpack.c.l.b16 %v321
      %v734 = vunpack.c.h.b16 %v321
      %v735 = vunpack.c.l.b16 %v322
      %v736 = vunpack.c.h.b16 %v322
      %v737 = vunpack.c.l.b16 %v323
      %v738 = vunpack.c.h.b16 %v323
      %v739 = vunpack.c.l.b16 %v324
      %v740 = vunpack.c.h.b16 %v324
      %v741 = vunpack.c.l.b16 %v325
      %v742 = vunpack.c.h.b16 %v325
      %v743 = vunpack.c.l.b16 %v326
      %v744 = vunpack.c.h.b16 %v326
      %v745 = vunpack.c.l.b16 %v327
      %v746 = vunpack.c.h.b16 %v327
      %v747 = vunpack.c.l.b16 %v328
      %v748 = vunpack.c.h.b16 %v328
      %v749 = vunpack.c.l.b16 %v329
      %v750 = vunpack.c.h.b16 %v329
      %v751 = vunpack.c.l.b16 %v330
      %v752 = vunpack.c.h.b16 %v330
      %v753 = vunpack.c.l.b16 %v331
      %v754 = vunpack.c.h.b16 %v331
      %v755 = vunpack.c.l.b16 %v332
      %v756 = vunpack.c.h.b16 %v332
      %v757 = vunpack.c.l.b16 %v333
      %v758 = vunpack.c.h.b16 %v333
      %v759 = vunpack.c.l.b16 %v334
      %v760 = vunpack.c.h.b16 %v334
      %v761 = vunpack.c.l.b16 %v335
      %v762 = vunpack.c.h.b16 %v335
      %v763 = vunpack.c.l.b16 %v336
      %v764 = vunpack.c.h.b16 %v336
      %v765 = vunpack.c.l.b16 %v337
      %v766 = vunpack.c.h.b16 %v337
      %v767 = vunpack.c.l.b16 %v338
      %v768 = vunpack.c.h.b16 %v338
      %v769 = vunpack.c.l.b16 %v339
      %v770 = vunpack.c.h.b16 %v339
      %v771 = vunpack.c.l.b16 %v340
      %v772 = vunpack.c.h.b16 %v340
      %v773 = vunpack.c.l.b16 %v341
      %v774 = vunpack.c.h.b16 %v341
      %v775 = vunpack.c.l.b16 %v342
      %v776 = vunpack.c.h.b16 %v342
      %v777 = vunpack.c.l.b16 %v343
      %v778 = vunpack.c.h.b16 %v343
      %v779 = vunpack.c.l.b16 %v344
      %v780 = vunpack.c.h.b16 %v344
      %v781 = vunpack.c.l.b16 %v345
      %v782 = vunpack.c.h.b16 %v345
      %v783 = vunpack.c.l.b16 %v346
      %v784 = vunpack.c.h.b16 %v346
      %v785 = vunpack.c.l.b16 %v347
      %v786 = vunpack.c.h.b16 %v347
      %v787 = vunpack.c.l.b16 %v348
      %v788 = vunpack.c.h.b16 %v348
      %v789 = vunpack.c.l.b16 %v349
      %v790 = vunpack.c.h.b16 %v349
      %v791 = vunpack.c.l.b16 %v350
      %v792 = vunpack.c.h.b16 %v350
      %v793 = vunpack.c.l.b16 %v351
      %v794 = vunpack.c.h.b16 %v351
      %v795 = vunpack.c.l.b16 %v352
      %v796 = vunpack.c.h.b16 %v352
      %v797 = vunpack.c.l.b16 %v353
      %v798 = vunpack.c.h.b16 %v353
      %v799 = vunpack.c.l.b16 %v354
      %v800 = vunpack.c.h.b16 %v354
      %v801 = vunpack.c.l.b16 %v355
      %v802 = vunpack.c.h.b16 %v355
      %v803 = vunpack.c.l.b16 %v356
      %v804 = vunpack.c.h.b16 %v356
      %v805 = vunpack.c.l.b16 %v357
      %v806 = vunpack.c.h.b16 %v357
      %v807 = vunpack.c.l.b16 %v358
      %v808 = vunpack.c.h.b16 %v358
      %v809 = vunpack.c.l.b16 %v359
      %v810 = vunpack.c.h.b16 %v359
      %v811 = vunpack.c.l.b16 %v360
      %v812 = vunpack.c.h.b16 %v360
      %v813 = vpack.c.b16 %v561, %v557
      %v814 = vpack.c.b16 %v562, %v558
      %v815 = vpack.c.b16 %v563, %v559
      %v816 = vpack.c.b16 %v564, %v560
      %v817 = vpack.c.b16 %v569, %v565
      %v818 = vpack.c.b16 %v570, %v566
      %v819 = vpack.c.b16 %v571, %v567
      %v820 = vpack.c.b16 %v572, %v568
      %v821 = vpack.c.b16 %v577, %v573
      %v822 = vpack.c.b16 %v578, %v574
      %v823 = vpack.c.b16 %v579, %v575
      %v824 = vpack.c.b16 %v580, %v576
      %v825 = vpack.c.b16 %v585, %v581
      %v826 = vpack.c.b16 %v586, %v582
      %v827 = vpack.c.b16 %v587, %v583
      %v828 = vpack.c.b16 %v588, %v584
      %v829 = vpack.c.b16 %v593, %v589
      %v830 = vpack.c.b16 %v594, %v590
      %v831 = vpack.c.b16 %v595, %v591
      %v832 = vpack.c.b16 %v596, %v592
      %v833 = vpack.c.b16 %v601, %v597
      %v834 = vpack.c.b16 %v602, %v598
      %v835 = vpack.c.b16 %v603, %v599
      %v836 = vpack.c.b16 %v604, %v600
      %v837 = vpack.c.b16 %v609, %v605
      %v838 = vpack.c.b16 %v610, %v606
      %v839 = vpack.c.b16 %v611, %v607
      %v840 = vpack.c.b16 %v612, %v608
      %v841 = vpack.c.b16 %v617, %v613
      %v842 = vpack.c.b16 %v618, %v614
      %v843 = vpack.c.b16 %v619, %v615
      %v844 = vpack.c.b16 %v620, %v616
      %v845 = vpack.c.b16 %v625, %v621
      %v846 = vpack.c.b16 %v626, %v622
      %v847 = vpack.c.b16 %v627, %v623
      %v848 = vpack.c.b16 %v628, %v624
      %v849 = vpack.c.b16 %v633, %v629
      %v850 = vpack.c.b16 %v634, %v630
      %v851 = vpack.c.b16 %v635, %v631
      %v852 = vpack.c.b16 %v636, %v632
      %v853 = vpack.c.b16 %v641, %v637
      %v854 = vpack.c.b16 %v642, %v638
      %v855 = vpack.c.b16 %v643, %v639
      %v856 = vpack.c.b16 %v644, %v640
      %v857 = vpack.c.b16 %v649, %v645
      %v858 = vpack.c.b16 %v650, %v646
      %v859 = vpack.c.b16 %v651, %v647
      %v860 = vpack.c.b16 %v652, %v648
      %v861 = vpack.c.b16 %v657, %v653
      %v862 = vpack.c.b16 %v658, %v654
      %v863 = vpack.c.b16 %v659, %v655
      %v864 = vpack.c.b16 %v660, %v656
      %v865 = vpack.c.b16 %v665, %v661
      %v866 = vpack.c.b16 %v666, %v662
      %v867 = vpack.c.b16 %v667, %v663
      %v868 = vpack.c.b16 %v668, %v664
      %v869 = vpack.c.b16 %v673, %v669
      %v870 = vpack.c.b16 %v674, %v670
      %v871 = vpack.c.b16 %v675, %v671
      %v872 = vpack.c.b16 %v676, %v672
      %v873 = vpack.c.b16 %v681, %v677
      %v874 = vpack.c.b16 %v682, %v678
      %v875 = vpack.c.b16 %v683, %v679
      %v876 = vpack.c.b16 %v684, %v680
      %v877 = vpack.c.b16 %v689, %v685
      %v878 = vpack.c.b16 %v690, %v686
      %v879 = vpack.c.b16 %v691, %v687
      %v880 = vpack.c.b16 %v692, %v688
      %v881 = vpack.c.b16 %v697, %v693
      %v882 = vpack.c.b16 %v698, %v694
      %v883 = vpack.c.b16 %v699, %v695
      %v884 = vpack.c.b16 %v700, %v696
      %v885 = vpack.c.b16 %v705, %v701
      %v886 = vpack.c.b16 %v706, %v702
      %v887 = vpack.c.b16 %v707, %v703
      %v888 = vpack.c.b16 %v708, %v704
      %v889 = vpack.c.b16 %v713, %v709
      %v890 = vpack.c.b16 %v714, %v710
      %v891 = vpack.c.b16 %v715, %v711
      %v892 = vpack.c.b16 %v716, %v712
      %v893 = vpack.c.b16 %v721, %v717
      %v894 = vpack.c.b16 %v722, %v718
      %v895 = vpack.c.b16 %v723, %v719
      %v896 = vpack.c.b16 %v724, %v720
      %v897 = vpack.c.b16 %v729, %v725
      %v898 = vpack.c.b16 %v730, %v726
      %v899 = vpack.c.b16 %v731, %v727
      %v900 = vpack.c.b16 %v732, %v728
      %v901 = vpack.c.b16 %v737, %v733
      %v902 = vpack.c.b16 %v738, %v734
      %v903 = vpack.c.b16 %v739, %v735
      %v904 = vpack.c.b16 %v740, %v736
      %v905 = vpack.c.b16 %v745, %v741
      %v906 = vpack.c.b16 %v746, %v742
      %v907 = vpack.c.b16 %v747, %v743
      %v908 = vpack.c.b16 %v748, %v744
      %v909 = vpack.c.b16 %v753, %v749
      %v910 = vpack.c.b16 %v754, %v750
      %v911 = vpack.c.b16 %v755, %v751
      %v912 = vpack.c.b16 %v756, %v752
      %v913 = vpack.c.b16 %v761, %v757
      %v914 = vpack.c.b16 %v762, %v758
      %v915 = vpack.c.b16 %v763, %v759
      %v916 = vpack.c.b16 %v764, %v760
      %v917 = vpack.c.b16 %v769, %v765
      %v918 = vpack.c.b16 %v770, %v766
      %v919 = vpack.c.b16 %v771, %v767
      %v920 = vpack.c.b16 %v772, %v768
      %v921 = vpack.c.b16 %v777, %v773
      %v922 = vpack.c.b16 %v778, %v774
      %v923 = vpack.c.b16 %v779, %v775
      %v924 = vpack.c.b16 %v780, %v776
      %v925 = vpack.c.b16 %v785, %v781
      %v926 = vpack.c.b16 %v786, %v782
      %v927 = vpack.c.b16 %v787, %v783
      %v928 = vpack.c.b16 %v788, %v784
      %v929 = vpack.c.b16 %v793, %v789
      %v930 = vpack.c.b16 %v794, %v790
      %v931 = vpack.c.b16 %v795, %v791
      %v932 = vpack.c.b16 %v796, %v792
      %v933 = vpack.c.b16 %v801, %v797
      %v934 = vpack.c.b16 %v802, %v798
      %v935 = vpack.c.b16 %v803, %v799
      %v936 = vpack.c.b16 %v804, %v800
      %v937 = vpack.c.b16 %v809, %v805
      %v938 = vpack.c.b16 %v810, %v806
      %v939 = vpack.c.b16 %v811, %v807
      %v940 = vpack.c.b16 %v812, %v808
      %v1133 = vunpack.c.l.b16 %v361
      %v1134 = vunpack.c.l.b16 %v362
      %v1135 = vunpack.c.l.b16 %v363
      %v1136 = vunpack.c.l.b16 %v364
      %v1137 = vunpack.c.l.b16 %v365
      %v1138 = vunpack.c.l.b16 %v366
      %v1139 = vunpack.c.l.b16 %v367
      %v1140 = vunpack.c.l.b16 %v368
      %v1141 = vunpack.c.l.b16 %v369
      %v1142 = vunpack.c.l.b16 %v370
      %v1143 = vunpack.c.l.b16 %v371
      %v1144 = vunpack.c.l.b16 %v372
      %v1145 = vunpack.c.l.b16 %v373
      %v1146 = vunpack.c.l.b16 %v374
      %v1147 = vunpack.c.l.b16 %v375
      %v1148 = vunpack.c.l.b16 %v376
      %v1149 = vunpack.c.l.b16 %v377
      %v1150 = vunpack.c.l.b16 %v378
      %v1151 = vunpack.c.l.b16 %v379
      %v1152 = vunpack.c.l.b16 %v380
      %v1153 = vunpack.c.l.b16 %v381
      %v1154 = vunpack.c.l.b16 %v382
      %v1155 = vunpack.c.l.b16 %v383
      %v1156 = vunpack.c.l.b16 %v384
      %v1157 = vunpack.c.l.b16 %v385
      %v1158 = vunpack.c.l.b16 %v386
      %v1159 = vunpack.c.l.b16 %v387
      %v1160 = vunpack.c.l.b16 %v388
      %v1161 = vunpack.c.l.b16 %v389
      %v1162 = vunpack.c.l.b16 %v390
      %v1163 = vunpack.c.l.b16 %v391
      %v1164 = vunpack.c.l.b16 %v392
      %v1165 = vunpack.c.l.b16 %v393
      %v1166 = vunpack.c.l.b16 %v394
      %v1167 = vunpack.c.l.b16 %v395
      %v1168 = vunpack.c.l.b16 %v396
      %v1169 = vunpack.c.l.b16 %v397
      %v1170 = vunpack.c.l.b16 %v398
      %v1171 = vunpack.c.l.b16 %v399
      %v1172 = vunpack.c.l.b16 %v400
      %v1173 = vunpack.c.l.b16 %v401
      %v1174 = vunpack.c.l.b16 %v402
      %v1175 = vunpack.c.l.b16 %v403
      %v1176 = vunpack.c.l.b16 %v404
      %v1177 = vunpack.c.l.b16 %v405
      %v1178 = vunpack.c.l.b16 %v406
      %v1179 = vunpack.c.l.b16 %v407
      %v1180 = vunpack.c.l.b16 %v408
      %v1181 = vunpack.c.l.b16 %v409
      %v1182 = vunpack.c.l.b16 %v410
      %v1183 = vunpack.c.l.b16 %v411
      %v1184 = vunpack.c.l.b16 %v412
      %v1185 = vunpack.c.l.b16 %v413
      %v1186 = vunpack.c.l.b16 %v414
      %v1187 = vunpack.c.l.b16 %v415
      %v1188 = vunpack.c.l.b16 %v416
      %v1189 = vunpack.c.l.b16 %v417
      %v1190 = vunpack.c.l.b16 %v418
      %v1191 = vunpack.c.l.b16 %v419
      %v1192 = vunpack.c.l.b16 %v420
      %v1193 = vunpack.c.l.b16 %v421
      %v1194 = vunpack.c.l.b16 %v422
      %v1195 = vunpack.c.l.b16 %v423
      %v1196 = vunpack.c.l.b16 %v424
      %v1197 = vpack.c.b16 %v1134, %v1133
      %v1198 = vpack.c.b16 %v1136, %v1135
      %v1199 = vpack.c.b16 %v1138, %v1137
      %v1200 = vpack.c.b16 %v1140, %v1139
      %v1201 = vpack.c.b16 %v1142, %v1141
      %v1202 = vpack.c.b16 %v1144, %v1143
      %v1203 = vpack.c.b16 %v1146, %v1145
      %v1204 = vpack.c.b16 %v1148, %v1147
      %v1205 = vpack.c.b16 %v1150, %v1149
      %v1206 = vpack.c.b16 %v1152, %v1151
      %v1207 = vpack.c.b16 %v1154, %v1153
      %v1208 = vpack.c.b16 %v1156, %v1155
      %v1209 = vpack.c.b16 %v1158, %v1157
      %v1210 = vpack.c.b16 %v1160, %v1159
      %v1211 = vpack.c.b16 %v1162, %v1161
      %v1212 = vpack.c.b16 %v1164, %v1163
      %v1213 = vpack.c.b16 %v1166, %v1165
      %v1214 = vpack.c.b16 %v1168, %v1167
      %v1215 = vpack.c.b16 %v1170, %v1169
      %v1216 = vpack.c.b16 %v1172, %v1171
      %v1217 = vpack.c.b16 %v1174, %v1173
      %v1218 = vpack.c.b16 %v1176, %v1175
      %v1219 = vpack.c.b16 %v1178, %v1177
      %v1220 = vpack.c.b16 %v1180, %v1179
      %v1221 = vpack.c.b16 %v1182, %v1181
      %v1222 = vpack.c.b16 %v1184, %v1183
      %v1223 = vpack.c.b16 %v1186, %v1185
      %v1224 = vpack.c.b16 %v1188, %v1187
      %v1225 = vpack.c.b16 %v1190, %v1189
      %v1226 = vpack.c.b16 %v1192, %v1191
      %v1227 = vpack.c.b16 %v1194, %v1193
      %v1228 = vpack.c.b16 %v1196, %v1195
      %1261 = vmatpush.bf16.msra.mxu0 %v1204
      %1262 = vmatpush.bf16.msra.mxu0 %v1203
      %1263 = vmatpush.bf16.msra.mxu0 %v1202
      %1264 = vmatpush.bf16.msra.mxu0 %v1201
      %1265 = vmatpush.bf16.msra.mxu0 %v1200
      %1266 = vmatpush.bf16.msra.mxu0 %v1199
      %1267 = vmatpush.bf16.msra.mxu0 %v1198
      %1268 = vmatpush.bf16.msra.mxu0 %v1197
      %1269 = vmatmul.bf16.gmra.mxu0 %v813
      %v1270 = vpop.f32.mrf.mxu0
      %v1271 = vadd.f32 %v427, %v1270
      %v1272 = vpop.f32.mrf.mxu0
      %v1273 = vadd.f32 %v427, %v1272
      %1274 = vmatmul.bf16.gmra.mxu0 %v817
      %v1275 = vpop.f32.mrf.mxu0
      %v1276 = vadd.f32 %v427, %v1275
      %v1277 = vpop.f32.mrf.mxu0
      %v1278 = vadd.f32 %v427, %v1277
      %1279 = vmatmul.bf16.gmra.mxu0 %v821
      %v1280 = vpop.f32.mrf.mxu0
      %v1281 = vadd.f32 %v427, %v1280
      %v1282 = vpop.f32.mrf.mxu0
      %v1283 = vadd.f32 %v427, %v1282
      %1284 = vmatmul.bf16.gmra.mxu0 %v825
      %v1285 = vpop.f32.mrf.mxu0
      %v1286 = vadd.f32 %v427, %v1285
      %v1287 = vpop.f32.mrf.mxu0
      %v1288 = vadd.f32 %v427, %v1287
      %1289 = vmatmul.bf16.gmra.mxu0 %v829
      %v1290 = vpop.f32.mrf.mxu0
      %v1291 = vadd.f32 %v427, %v1290
      %v1292 = vpop.f32.mrf.mxu0
      %v1293 = vadd.f32 %v427, %v1292
      %1294 = vmatmul.bf16.gmra.mxu0 %v833
      %v1295 = vpop.f32.mrf.mxu0
      %v1296 = vadd.f32 %v427, %v1295
      %v1297 = vpop.f32.mrf.mxu0
      %v1298 = vadd.f32 %v427, %v1297
      %1299 = vmatmul.bf16.gmra.mxu0 %v837
      %v1300 = vpop.f32.mrf.mxu0
      %v1301 = vadd.f32 %v427, %v1300
      %v1302 = vpop.f32.mrf.mxu0
      %v1303 = vadd.f32 %v427, %v1302
      %1304 = vmatmul.bf16.gmra.mxu0 %v841
      %v1305 = vpop.f32.mrf.mxu0
      %v1306 = vadd.f32 %v427, %v1305
      %v1307 = vpop.f32.mrf.mxu0
      %v1308 = vadd.f32 %v427, %v1307
      %1309 = vmatmul.bf16.gmra.mxu0 %v845
      %v1310 = vpop.f32.mrf.mxu0
      %v1311 = vadd.f32 %v427, %v1310
      %v1312 = vpop.f32.mrf.mxu0
      %v1313 = vadd.f32 %v427, %v1312
      %1314 = vmatmul.bf16.gmra.mxu0 %v849
      %v1315 = vpop.f32.mrf.mxu0
      %v1316 = vadd.f32 %v427, %v1315
      %v1317 = vpop.f32.mrf.mxu0
      %v1318 = vadd.f32 %v427, %v1317
      %1319 = vmatmul.bf16.gmra.mxu0 %v853
      %v1320 = vpop.f32.mrf.mxu0
      %v1321 = vadd.f32 %v427, %v1320
      %v1322 = vpop.f32.mrf.mxu0
      %v1323 = vadd.f32 %v427, %v1322
      %1324 = vmatmul.bf16.gmra.mxu0 %v857
      %v1325 = vpop.f32.mrf.mxu0
      %v1326 = vadd.f32 %v427, %v1325
      %v1327 = vpop.f32.mrf.mxu0
      %v1328 = vadd.f32 %v427, %v1327
      %1329 = vmatmul.bf16.gmra.mxu0 %v861
      %v1330 = vpop.f32.mrf.mxu0
      %v1331 = vadd.f32 %v427, %v1330
      %v1332 = vpop.f32.mrf.mxu0
      %v1333 = vadd.f32 %v427, %v1332
      %1334 = vmatmul.bf16.gmra.mxu0 %v865
      %v1335 = vpop.f32.mrf.mxu0
      %v1336 = vadd.f32 %v427, %v1335
      %v1337 = vpop.f32.mrf.mxu0
      %v1338 = vadd.f32 %v427, %v1337
      %1339 = vmatmul.bf16.gmra.mxu0 %v869
      %v1340 = vpop.f32.mrf.mxu0
      %v1341 = vadd.f32 %v427, %v1340
      %v1342 = vpop.f32.mrf.mxu0
      %v1343 = vadd.f32 %v427, %v1342
      %1344 = vmatmul.bf16.gmra.mxu0 %v873
      %v1345 = vpop.f32.mrf.mxu0
      %v1346 = vadd.f32 %v427, %v1345
      %v1347 = vpop.f32.mrf.mxu0
      %v1348 = vadd.f32 %v427, %v1347
      %1349 = vmatmul.bf16.gmra.mxu0 %v877
      %v1350 = vpop.f32.mrf.mxu0
      %v1351 = vadd.f32 %v427, %v1350
      %v1352 = vpop.f32.mrf.mxu0
      %v1353 = vadd.f32 %v427, %v1352
      %1354 = vmatmul.bf16.gmra.mxu0 %v881
      %v1355 = vpop.f32.mrf.mxu0
      %v1356 = vadd.f32 %v427, %v1355
      %v1357 = vpop.f32.mrf.mxu0
      %v1358 = vadd.f32 %v427, %v1357
      %1359 = vmatmul.bf16.gmra.mxu0 %v885
      %v1360 = vpop.f32.mrf.mxu0
      %v1361 = vadd.f32 %v427, %v1360
      %v1362 = vpop.f32.mrf.mxu0
      %v1363 = vadd.f32 %v427, %v1362
      %1364 = vmatmul.bf16.gmra.mxu0 %v889
      %v1365 = vpop.f32.mrf.mxu0
      %v1366 = vadd.f32 %v427, %v1365
      %v1367 = vpop.f32.mrf.mxu0
      %v1368 = vadd.f32 %v427, %v1367
      %1369 = vmatmul.bf16.gmra.mxu0 %v893
      %v1370 = vpop.f32.mrf.mxu0
      %v1371 = vadd.f32 %v427, %v1370
      %v1372 = vpop.f32.mrf.mxu0
      %v1373 = vadd.f32 %v427, %v1372
      %1374 = vmatmul.bf16.gmra.mxu0 %v897
      %v1375 = vpop.f32.mrf.mxu0
      %v1376 = vadd.f32 %v427, %v1375
      %v1377 = vpop.f32.mrf.mxu0
      %v1378 = vadd.f32 %v427, %v1377
      %1379 = vmatmul.bf16.gmra.mxu0 %v901
      %v1380 = vpop.f32.mrf.mxu0
      %v1381 = vadd.f32 %v427, %v1380
      %v1382 = vpop.f32.mrf.mxu0
      %v1383 = vadd.f32 %v427, %v1382
      %1384 = vmatmul.bf16.gmra.mxu0 %v905
      %v1385 = vpop.f32.mrf.mxu0
      %v1386 = vadd.f32 %v427, %v1385
      %v1387 = vpop.f32.mrf.mxu0
      %v1388 = vadd.f32 %v427, %v1387
      %1389 = vmatmul.bf16.gmra.mxu0 %v909
      %v1390 = vpop.f32.mrf.mxu0
      %v1391 = vadd.f32 %v427, %v1390
      %v1392 = vpop.f32.mrf.mxu0
      %v1393 = vadd.f32 %v427, %v1392
      %1394 = vmatmul.bf16.gmra.mxu0 %v913
      %v1395 = vpop.f32.mrf.mxu0
      %v1396 = vadd.f32 %v427, %v1395
      %v1397 = vpop.f32.mrf.mxu0
      %v1398 = vadd.f32 %v427, %v1397
      %1399 = vmatmul.bf16.gmra.mxu0 %v917
      %v1400 = vpop.f32.mrf.mxu0
      %v1401 = vadd.f32 %v427, %v1400
      %v1402 = vpop.f32.mrf.mxu0
      %v1403 = vadd.f32 %v427, %v1402
      %1404 = vmatmul.bf16.gmra.mxu0 %v921
      %v1405 = vpop.f32.mrf.mxu0
      %v1406 = vadd.f32 %v427, %v1405
      %v1407 = vpop.f32.mrf.mxu0
      %v1408 = vadd.f32 %v427, %v1407
      %1409 = vmatmul.bf16.gmra.mxu0 %v925
      %v1410 = vpop.f32.mrf.mxu0
      %v1411 = vadd.f32 %v427, %v1410
      %v1412 = vpop.f32.mrf.mxu0
      %v1413 = vadd.f32 %v427, %v1412
      %1414 = vmatmul.bf16.gmra.mxu0 %v929
      %v1415 = vpop.f32.mrf.mxu0
      %v1416 = vadd.f32 %v427, %v1415
      %v1417 = vpop.f32.mrf.mxu0
      %v1418 = vadd.f32 %v427, %v1417
      %1419 = vmatmul.bf16.gmra.mxu0 %v933
      %v1420 = vpop.f32.mrf.mxu0
      %v1421 = vadd.f32 %v427, %v1420
      %v1422 = vpop.f32.mrf.mxu0
      %v1423 = vadd.f32 %v427, %v1422
      %1424 = vmatmul.bf16.gmra.mxu0 %v937
      %v1425 = vpop.f32.mrf.mxu0
      %v1426 = vadd.f32 %v427, %v1425
      %v1427 = vpop.f32.mrf.mxu0
      %v1428 = vadd.f32 %v427, %v1427
      %1429 = vdwg.mxu0
      %1430 = vmatpush.bf16.msra.mxu0 %v1212
      %1431 = vmatpush.bf16.msra.mxu0 %v1211
      %1432 = vmatpush.bf16.msra.mxu0 %v1210
      %1433 = vmatpush.bf16.msra.mxu0 %v1209
      %1434 = vmatpush.bf16.msra.mxu0 %v1208
      %1435 = vmatpush.bf16.msra.mxu0 %v1207
      %1436 = vmatpush.bf16.msra.mxu0 %v1206
      %1437 = vmatpush.bf16.msra.mxu0 %v1205
      %1438 = vmatmul.bf16.gmra.mxu0 %v814
      %v1439 = vpop.f32.mrf.mxu0
      %v1440 = vadd.f32 %v1271, %v1439
      %v1441 = vpop.f32.mrf.mxu0
      %v1442 = vadd.f32 %v1273, %v1441
      %1443 = vmatmul.bf16.gmra.mxu0 %v818
      %v1444 = vpop.f32.mrf.mxu0
      %v1445 = vadd.f32 %v1276, %v1444
      %v1446 = vpop.f32.mrf.mxu0
      %v1447 = vadd.f32 %v1278, %v1446
      %1448 = vmatmul.bf16.gmra.mxu0 %v822
      %v1449 = vpop.f32.mrf.mxu0
      %v1450 = vadd.f32 %v1281, %v1449
      %v1451 = vpop.f32.mrf.mxu0
      %v1452 = vadd.f32 %v1283, %v1451
      %1453 = vmatmul.bf16.gmra.mxu0 %v826
      %v1454 = vpop.f32.mrf.mxu0
      %v1455 = vadd.f32 %v1286, %v1454
      %v1456 = vpop.f32.mrf.mxu0
      %v1457 = vadd.f32 %v1288, %v1456
      %1458 = vmatmul.bf16.gmra.mxu0 %v830
      %v1459 = vpop.f32.mrf.mxu0
      %v1460 = vadd.f32 %v1291, %v1459
      %v1461 = vpop.f32.mrf.mxu0
      %v1462 = vadd.f32 %v1293, %v1461
      %1463 = vmatmul.bf16.gmra.mxu0 %v834
      %v1464 = vpop.f32.mrf.mxu0
      %v1465 = vadd.f32 %v1296, %v1464
      %v1466 = vpop.f32.mrf.mxu0
      %v1467 = vadd.f32 %v1298, %v1466
      %1468 = vmatmul.bf16.gmra.mxu0 %v838
      %v1469 = vpop.f32.mrf.mxu0
      %v1470 = vadd.f32 %v1301, %v1469
      %v1471 = vpop.f32.mrf.mxu0
      %v1472 = vadd.f32 %v1303, %v1471
      %1473 = vmatmul.bf16.gmra.mxu0 %v842
      %v1474 = vpop.f32.mrf.mxu0
      %v1475 = vadd.f32 %v1306, %v1474
      %v1476 = vpop.f32.mrf.mxu0
      %v1477 = vadd.f32 %v1308, %v1476
      %1478 = vmatmul.bf16.gmra.mxu0 %v846
      %v1479 = vpop.f32.mrf.mxu0
      %v1480 = vadd.f32 %v1311, %v1479
      %v1481 = vpop.f32.mrf.mxu0
      %v1482 = vadd.f32 %v1313, %v1481
      %1483 = vmatmul.bf16.gmra.mxu0 %v850
      %v1484 = vpop.f32.mrf.mxu0
      %v1485 = vadd.f32 %v1316, %v1484
      %v1486 = vpop.f32.mrf.mxu0
      %v1487 = vadd.f32 %v1318, %v1486
      %1488 = vmatmul.bf16.gmra.mxu0 %v854
      %v1489 = vpop.f32.mrf.mxu0
      %v1490 = vadd.f32 %v1321, %v1489
      %v1491 = vpop.f32.mrf.mxu0
      %v1492 = vadd.f32 %v1323, %v1491
      %1493 = vmatmul.bf16.gmra.mxu0 %v858
      %v1494 = vpop.f32.mrf.mxu0
      %v1495 = vadd.f32 %v1326, %v1494
      %v1496 = vpop.f32.mrf.mxu0
      %v1497 = vadd.f32 %v1328, %v1496
      %1498 = vmatmul.bf16.gmra.mxu0 %v862
      %v1499 = vpop.f32.mrf.mxu0
      %v1500 = vadd.f32 %v1331, %v1499
      %v1501 = vpop.f32.mrf.mxu0
      %v1502 = vadd.f32 %v1333, %v1501
      %1503 = vmatmul.bf16.gmra.mxu0 %v866
      %v1504 = vpop.f32.mrf.mxu0
      %v1505 = vadd.f32 %v1336, %v1504
      %v1506 = vpop.f32.mrf.mxu0
      %v1507 = vadd.f32 %v1338, %v1506
      %1508 = vmatmul.bf16.gmra.mxu0 %v870
      %v1509 = vpop.f32.mrf.mxu0
      %v1510 = vadd.f32 %v1341, %v1509
      %v1511 = vpop.f32.mrf.mxu0
      %v1512 = vadd.f32 %v1343, %v1511
      %1513 = vmatmul.bf16.gmra.mxu0 %v874
      %v1514 = vpop.f32.mrf.mxu0
      %v1515 = vadd.f32 %v1346, %v1514
      %v1516 = vpop.f32.mrf.mxu0
      %v1517 = vadd.f32 %v1348, %v1516
      %1518 = vmatmul.bf16.gmra.mxu0 %v878
      %v1519 = vpop.f32.mrf.mxu0
      %v1520 = vadd.f32 %v1351, %v1519
      %v1521 = vpop.f32.mrf.mxu0
      %v1522 = vadd.f32 %v1353, %v1521
      %1523 = vmatmul.bf16.gmra.mxu0 %v882
      %v1524 = vpop.f32.mrf.mxu0
      %v1525 = vadd.f32 %v1356, %v1524
      %v1526 = vpop.f32.mrf.mxu0
      %v1527 = vadd.f32 %v1358, %v1526
      %1528 = vmatmul.bf16.gmra.mxu0 %v886
      %v1529 = vpop.f32.mrf.mxu0
      %v1530 = vadd.f32 %v1361, %v1529
      %v1531 = vpop.f32.mrf.mxu0
      %v1532 = vadd.f32 %v1363, %v1531
      %1533 = vmatmul.bf16.gmra.mxu0 %v890
      %v1534 = vpop.f32.mrf.mxu0
      %v1535 = vadd.f32 %v1366, %v1534
      %v1536 = vpop.f32.mrf.mxu0
      %v1537 = vadd.f32 %v1368, %v1536
      %1538 = vmatmul.bf16.gmra.mxu0 %v894
      %v1539 = vpop.f32.mrf.mxu0
      %v1540 = vadd.f32 %v1371, %v1539
      %v1541 = vpop.f32.mrf.mxu0
      %v1542 = vadd.f32 %v1373, %v1541
      %1543 = vmatmul.bf16.gmra.mxu0 %v898
      %v1544 = vpop.f32.mrf.mxu0
      %v1545 = vadd.f32 %v1376, %v1544
      %v1546 = vpop.f32.mrf.mxu0
      %v1547 = vadd.f32 %v1378, %v1546
      %1548 = vmatmul.bf16.gmra.mxu0 %v902
      %v1549 = vpop.f32.mrf.mxu0
      %v1550 = vadd.f32 %v1381, %v1549
      %v1551 = vpop.f32.mrf.mxu0
      %v1552 = vadd.f32 %v1383, %v1551
      %1553 = vmatmul.bf16.gmra.mxu0 %v906
      %v1554 = vpop.f32.mrf.mxu0
      %v1555 = vadd.f32 %v1386, %v1554
      %v1556 = vpop.f32.mrf.mxu0
      %v1557 = vadd.f32 %v1388, %v1556
      %1558 = vmatmul.bf16.gmra.mxu0 %v910
      %v1559 = vpop.f32.mrf.mxu0
      %v1560 = vadd.f32 %v1391, %v1559
      %v1561 = vpop.f32.mrf.mxu0
      %v1562 = vadd.f32 %v1393, %v1561
      %1563 = vmatmul.bf16.gmra.mxu0 %v914
      %v1564 = vpop.f32.mrf.mxu0
      %v1565 = vadd.f32 %v1396, %v1564
      %v1566 = vpop.f32.mrf.mxu0
      %v1567 = vadd.f32 %v1398, %v1566
      %1568 = vmatmul.bf16.gmra.mxu0 %v918
      %v1569 = vpop.f32.mrf.mxu0
      %v1570 = vadd.f32 %v1401, %v1569
      %v1571 = vpop.f32.mrf.mxu0
      %v1572 = vadd.f32 %v1403, %v1571
      %1573 = vmatmul.bf16.gmra.mxu0 %v922
      %v1574 = vpop.f32.mrf.mxu0
      %v1575 = vadd.f32 %v1406, %v1574
      %v1576 = vpop.f32.mrf.mxu0
      %v1577 = vadd.f32 %v1408, %v1576
      %1578 = vmatmul.bf16.gmra.mxu0 %v926
      %v1579 = vpop.f32.mrf.mxu0
      %v1580 = vadd.f32 %v1411, %v1579
      %v1581 = vpop.f32.mrf.mxu0
      %v1582 = vadd.f32 %v1413, %v1581
      %1583 = vmatmul.bf16.gmra.mxu0 %v930
      %v1584 = vpop.f32.mrf.mxu0
      %v1585 = vadd.f32 %v1416, %v1584
      %v1586 = vpop.f32.mrf.mxu0
      %v1587 = vadd.f32 %v1418, %v1586
      %1588 = vmatmul.bf16.gmra.mxu0 %v934
      %v1589 = vpop.f32.mrf.mxu0
      %v1590 = vadd.f32 %v1421, %v1589
      %v1591 = vpop.f32.mrf.mxu0
      %v1592 = vadd.f32 %v1423, %v1591
      %1593 = vmatmul.bf16.gmra.mxu0 %v938
      %v1594 = vpop.f32.mrf.mxu0
      %v1595 = vadd.f32 %v1426, %v1594
      %v1596 = vpop.f32.mrf.mxu0
      %v1597 = vadd.f32 %v1428, %v1596
      %1598 = vdwg.mxu0
      %1599 = vmatpush.bf16.msra.mxu0 %v1220
      %1600 = vmatpush.bf16.msra.mxu0 %v1219
      %1601 = vmatpush.bf16.msra.mxu0 %v1218
      %1602 = vmatpush.bf16.msra.mxu0 %v1217
      %1603 = vmatpush.bf16.msra.mxu0 %v1216
      %1604 = vmatpush.bf16.msra.mxu0 %v1215
      %1605 = vmatpush.bf16.msra.mxu0 %v1214
      %1606 = vmatpush.bf16.msra.mxu0 %v1213
      %1607 = vmatmul.bf16.gmra.mxu0 %v815
      %v1608 = vpop.f32.mrf.mxu0
      %v1609 = vadd.f32 %v1440, %v1608
      %v1610 = vpop.f32.mrf.mxu0
      %v1611 = vadd.f32 %v1442, %v1610
      %1612 = vmatmul.bf16.gmra.mxu0 %v819
      %v1613 = vpop.f32.mrf.mxu0
      %v1614 = vadd.f32 %v1445, %v1613
      %v1615 = vpop.f32.mrf.mxu0
      %v1616 = vadd.f32 %v1447, %v1615
      %1617 = vmatmul.bf16.gmra.mxu0 %v823
      %v1618 = vpop.f32.mrf.mxu0
      %v1619 = vadd.f32 %v1450, %v1618
      %v1620 = vpop.f32.mrf.mxu0
      %v1621 = vadd.f32 %v1452, %v1620
      %1622 = vmatmul.bf16.gmra.mxu0 %v827
      %v1623 = vpop.f32.mrf.mxu0
      %v1624 = vadd.f32 %v1455, %v1623
      %v1625 = vpop.f32.mrf.mxu0
      %v1626 = vadd.f32 %v1457, %v1625
      %1627 = vmatmul.bf16.gmra.mxu0 %v831
      %v1628 = vpop.f32.mrf.mxu0
      %v1629 = vadd.f32 %v1460, %v1628
      %v1630 = vpop.f32.mrf.mxu0
      %v1631 = vadd.f32 %v1462, %v1630
      %1632 = vmatmul.bf16.gmra.mxu0 %v835
      %v1633 = vpop.f32.mrf.mxu0
      %v1634 = vadd.f32 %v1465, %v1633
      %v1635 = vpop.f32.mrf.mxu0
      %v1636 = vadd.f32 %v1467, %v1635
      %1637 = vmatmul.bf16.gmra.mxu0 %v839
      %v1638 = vpop.f32.mrf.mxu0
      %v1639 = vadd.f32 %v1470, %v1638
      %v1640 = vpop.f32.mrf.mxu0
      %v1641 = vadd.f32 %v1472, %v1640
      %1642 = vmatmul.bf16.gmra.mxu0 %v843
      %v1643 = vpop.f32.mrf.mxu0
      %v1644 = vadd.f32 %v1475, %v1643
      %v1645 = vpop.f32.mrf.mxu0
      %v1646 = vadd.f32 %v1477, %v1645
      %1647 = vmatmul.bf16.gmra.mxu0 %v847
      %v1648 = vpop.f32.mrf.mxu0
      %v1649 = vadd.f32 %v1480, %v1648
      %v1650 = vpop.f32.mrf.mxu0
      %v1651 = vadd.f32 %v1482, %v1650
      %1652 = vmatmul.bf16.gmra.mxu0 %v851
      %v1653 = vpop.f32.mrf.mxu0
      %v1654 = vadd.f32 %v1485, %v1653
      %v1655 = vpop.f32.mrf.mxu0
      %v1656 = vadd.f32 %v1487, %v1655
      %1657 = vmatmul.bf16.gmra.mxu0 %v855
      %v1658 = vpop.f32.mrf.mxu0
      %v1659 = vadd.f32 %v1490, %v1658
      %v1660 = vpop.f32.mrf.mxu0
      %v1661 = vadd.f32 %v1492, %v1660
      %1662 = vmatmul.bf16.gmra.mxu0 %v859
      %v1663 = vpop.f32.mrf.mxu0
      %v1664 = vadd.f32 %v1495, %v1663
      %v1665 = vpop.f32.mrf.mxu0
      %v1666 = vadd.f32 %v1497, %v1665
      %1667 = vmatmul.bf16.gmra.mxu0 %v863
      %v1668 = vpop.f32.mrf.mxu0
      %v1669 = vadd.f32 %v1500, %v1668
      %v1670 = vpop.f32.mrf.mxu0
      %v1671 = vadd.f32 %v1502, %v1670
      %1672 = vmatmul.bf16.gmra.mxu0 %v867
      %v1673 = vpop.f32.mrf.mxu0
      %v1674 = vadd.f32 %v1505, %v1673
      %v1675 = vpop.f32.mrf.mxu0
      %v1676 = vadd.f32 %v1507, %v1675
      %1677 = vmatmul.bf16.gmra.mxu0 %v871
      %v1678 = vpop.f32.mrf.mxu0
      %v1679 = vadd.f32 %v1510, %v1678
      %v1680 = vpop.f32.mrf.mxu0
      %v1681 = vadd.f32 %v1512, %v1680
      %1682 = vmatmul.bf16.gmra.mxu0 %v875
      %v1683 = vpop.f32.mrf.mxu0
      %v1684 = vadd.f32 %v1515, %v1683
      %v1685 = vpop.f32.mrf.mxu0
      %v1686 = vadd.f32 %v1517, %v1685
      %1687 = vmatmul.bf16.gmra.mxu0 %v879
      %v1688 = vpop.f32.mrf.mxu0
      %v1689 = vadd.f32 %v1520, %v1688
      %v1690 = vpop.f32.mrf.mxu0
      %v1691 = vadd.f32 %v1522, %v1690
      %1692 = vmatmul.bf16.gmra.mxu0 %v883
      %v1693 = vpop.f32.mrf.mxu0
      %v1694 = vadd.f32 %v1525, %v1693
      %v1695 = vpop.f32.mrf.mxu0
      %v1696 = vadd.f32 %v1527, %v1695
      %1697 = vmatmul.bf16.gmra.mxu0 %v887
      %v1698 = vpop.f32.mrf.mxu0
      %v1699 = vadd.f32 %v1530, %v1698
      %v1700 = vpop.f32.mrf.mxu0
      %v1701 = vadd.f32 %v1532, %v1700
      %1702 = vmatmul.bf16.gmra.mxu0 %v891
      %v1703 = vpop.f32.mrf.mxu0
      %v1704 = vadd.f32 %v1535, %v1703
      %v1705 = vpop.f32.mrf.mxu0
      %v1706 = vadd.f32 %v1537, %v1705
      %1707 = vmatmul.bf16.gmra.mxu0 %v895
      %v1708 = vpop.f32.mrf.mxu0
      %v1709 = vadd.f32 %v1540, %v1708
      %v1710 = vpop.f32.mrf.mxu0
      %v1711 = vadd.f32 %v1542, %v1710
      %1712 = vmatmul.bf16.gmra.mxu0 %v899
      %v1713 = vpop.f32.mrf.mxu0
      %v1714 = vadd.f32 %v1545, %v1713
      %v1715 = vpop.f32.mrf.mxu0
      %v1716 = vadd.f32 %v1547, %v1715
      %1717 = vmatmul.bf16.gmra.mxu0 %v903
      %v1718 = vpop.f32.mrf.mxu0
      %v1719 = vadd.f32 %v1550, %v1718
      %v1720 = vpop.f32.mrf.mxu0
      %v1721 = vadd.f32 %v1552, %v1720
      %1722 = vmatmul.bf16.gmra.mxu0 %v907
      %v1723 = vpop.f32.mrf.mxu0
      %v1724 = vadd.f32 %v1555, %v1723
      %v1725 = vpop.f32.mrf.mxu0
      %v1726 = vadd.f32 %v1557, %v1725
      %1727 = vmatmul.bf16.gmra.mxu0 %v911
      %v1728 = vpop.f32.mrf.mxu0
      %v1729 = vadd.f32 %v1560, %v1728
      %v1730 = vpop.f32.mrf.mxu0
      %v1731 = vadd.f32 %v1562, %v1730
      %1732 = vmatmul.bf16.gmra.mxu0 %v915
      %v1733 = vpop.f32.mrf.mxu0
      %v1734 = vadd.f32 %v1565, %v1733
      %v1735 = vpop.f32.mrf.mxu0
      %v1736 = vadd.f32 %v1567, %v1735
      %1737 = vmatmul.bf16.gmra.mxu0 %v919
      %v1738 = vpop.f32.mrf.mxu0
      %v1739 = vadd.f32 %v1570, %v1738
      %v1740 = vpop.f32.mrf.mxu0
      %v1741 = vadd.f32 %v1572, %v1740
      %1742 = vmatmul.bf16.gmra.mxu0 %v923
      %v1743 = vpop.f32.mrf.mxu0
      %v1744 = vadd.f32 %v1575, %v1743
      %v1745 = vpop.f32.mrf.mxu0
      %v1746 = vadd.f32 %v1577, %v1745
      %1747 = vmatmul.bf16.gmra.mxu0 %v927
      %v1748 = vpop.f32.mrf.mxu0
      %v1749 = vadd.f32 %v1580, %v1748
      %v1750 = vpop.f32.mrf.mxu0
      %v1751 = vadd.f32 %v1582, %v1750
      %1752 = vmatmul.bf16.gmra.mxu0 %v931
      %v1753 = vpop.f32.mrf.mxu0
      %v1754 = vadd.f32 %v1585, %v1753
      %v1755 = vpop.f32.mrf.mxu0
      %v1756 = vadd.f32 %v1587, %v1755
      %1757 = vmatmul.bf16.gmra.mxu0 %v935
      %v1758 = vpop.f32.mrf.mxu0
      %v1759 = vadd.f32 %v1590, %v1758
      %v1760 = vpop.f32.mrf.mxu0
      %v1761 = vadd.f32 %v1592, %v1760
      %1762 = vmatmul.bf16.gmra.mxu0 %v939
      %v1763 = vpop.f32.mrf.mxu0
      %v1764 = vadd.f32 %v1595, %v1763
      %v1765 = vpop.f32.mrf.mxu0
      %v1766 = vadd.f32 %v1597, %v1765
      %1767 = vdwg.mxu0
      %1768 = vmatpush.bf16.msra.mxu0 %v1228
      %1769 = vmatpush.bf16.msra.mxu0 %v1227
      %1770 = vmatpush.bf16.msra.mxu0 %v1226
      %1771 = vmatpush.bf16.msra.mxu0 %v1225
      %1772 = vmatpush.bf16.msra.mxu0 %v1224
      %1773 = vmatpush.bf16.msra.mxu0 %v1223
      %1774 = vmatpush.bf16.msra.mxu0 %v1222
      %1775 = vmatpush.bf16.msra.mxu0 %v1221
      %1776 = vmatmul.bf16.gmra.mxu0 %v816
      %v1777 = vpop.f32.mrf.mxu0
      %v1778 = vadd.f32 %v1609, %v1777
      %v1779 = vpop.f32.mrf.mxu0
      %v1780 = vadd.f32 %v1611, %v1779
      %1781 = vmatmul.bf16.gmra.mxu0 %v820
      %v1782 = vpop.f32.mrf.mxu0
      %v1783 = vadd.f32 %v1614, %v1782
      %v1784 = vpop.f32.mrf.mxu0
      %v1785 = vadd.f32 %v1616, %v1784
      %1786 = vmatmul.bf16.gmra.mxu0 %v824
      %v1787 = vpop.f32.mrf.mxu0
      %v1788 = vadd.f32 %v1619, %v1787
      %v1789 = vpop.f32.mrf.mxu0
      %v1790 = vadd.f32 %v1621, %v1789
      %1791 = vmatmul.bf16.gmra.mxu0 %v828
      %v1792 = vpop.f32.mrf.mxu0
      %v1793 = vadd.f32 %v1624, %v1792
      %v1794 = vpop.f32.mrf.mxu0
      %v1795 = vadd.f32 %v1626, %v1794
      %1796 = vmatmul.bf16.gmra.mxu0 %v832
      %v1797 = vpop.f32.mrf.mxu0
      %v1798 = vadd.f32 %v1629, %v1797
      %v1799 = vpop.f32.mrf.mxu0
      %v1800 = vadd.f32 %v1631, %v1799
      %1801 = vmatmul.bf16.gmra.mxu0 %v836
      %v1802 = vpop.f32.mrf.mxu0
      %v1803 = vadd.f32 %v1634, %v1802
      %v1804 = vpop.f32.mrf.mxu0
      %v1805 = vadd.f32 %v1636, %v1804
      %1806 = vmatmul.bf16.gmra.mxu0 %v840
      %v1807 = vpop.f32.mrf.mxu0
      %v1808 = vadd.f32 %v1639, %v1807
      %v1809 = vpop.f32.mrf.mxu0
      %v1810 = vadd.f32 %v1641, %v1809
      %1811 = vmatmul.bf16.gmra.mxu0 %v844
      %v1812 = vpop.f32.mrf.mxu0
      %v1813 = vadd.f32 %v1644, %v1812
      %v1814 = vpop.f32.mrf.mxu0
      %v1815 = vadd.f32 %v1646, %v1814
      %1816 = vmatmul.bf16.gmra.mxu0 %v848
      %v1817 = vpop.f32.mrf.mxu0
      %v1818 = vadd.f32 %v1649, %v1817
      %v1819 = vpop.f32.mrf.mxu0
      %v1820 = vadd.f32 %v1651, %v1819
      %1821 = vmatmul.bf16.gmra.mxu0 %v852
      %v1822 = vpop.f32.mrf.mxu0
      %v1823 = vadd.f32 %v1654, %v1822
      %v1824 = vpop.f32.mrf.mxu0
      %v1825 = vadd.f32 %v1656, %v1824
      %1826 = vmatmul.bf16.gmra.mxu0 %v856
      %v1827 = vpop.f32.mrf.mxu0
      %v1828 = vadd.f32 %v1659, %v1827
      %v1829 = vpop.f32.mrf.mxu0
      %v1830 = vadd.f32 %v1661, %v1829
      %1831 = vmatmul.bf16.gmra.mxu0 %v860
      %v1832 = vpop.f32.mrf.mxu0
      %v1833 = vadd.f32 %v1664, %v1832
      %v1834 = vpop.f32.mrf.mxu0
      %v1835 = vadd.f32 %v1666, %v1834
      %1836 = vmatmul.bf16.gmra.mxu0 %v864
      %v1837 = vpop.f32.mrf.mxu0
      %v1838 = vadd.f32 %v1669, %v1837
      %v1839 = vpop.f32.mrf.mxu0
      %v1840 = vadd.f32 %v1671, %v1839
      %1841 = vmatmul.bf16.gmra.mxu0 %v868
      %v1842 = vpop.f32.mrf.mxu0
      %v1843 = vadd.f32 %v1674, %v1842
      %v1844 = vpop.f32.mrf.mxu0
      %v1845 = vadd.f32 %v1676, %v1844
      %1846 = vmatmul.bf16.gmra.mxu0 %v872
      %v1847 = vpop.f32.mrf.mxu0
      %v1848 = vadd.f32 %v1679, %v1847
      %v1849 = vpop.f32.mrf.mxu0
      %v1850 = vadd.f32 %v1681, %v1849
      %1851 = vmatmul.bf16.gmra.mxu0 %v876
      %v1852 = vpop.f32.mrf.mxu0
      %v1853 = vadd.f32 %v1684, %v1852
      %v1854 = vpop.f32.mrf.mxu0
      %v1855 = vadd.f32 %v1686, %v1854
      %1856 = vmatmul.bf16.gmra.mxu0 %v880
      %v1857 = vpop.f32.mrf.mxu0
      %v1858 = vadd.f32 %v1689, %v1857
      %v1859 = vpop.f32.mrf.mxu0
      %v1860 = vadd.f32 %v1691, %v1859
      %1861 = vmatmul.bf16.gmra.mxu0 %v884
      %v1862 = vpop.f32.mrf.mxu0
      %v1863 = vadd.f32 %v1694, %v1862
      %v1864 = vpop.f32.mrf.mxu0
      %v1865 = vadd.f32 %v1696, %v1864
      %1866 = vmatmul.bf16.gmra.mxu0 %v888
      %v1867 = vpop.f32.mrf.mxu0
      %v1868 = vadd.f32 %v1699, %v1867
      %v1869 = vpop.f32.mrf.mxu0
      %v1870 = vadd.f32 %v1701, %v1869
      %1871 = vmatmul.bf16.gmra.mxu0 %v892
      %v1872 = vpop.f32.mrf.mxu0
      %v1873 = vadd.f32 %v1704, %v1872
      %v1874 = vpop.f32.mrf.mxu0
      %v1875 = vadd.f32 %v1706, %v1874
      %1876 = vmatmul.bf16.gmra.mxu0 %v896
      %v1877 = vpop.f32.mrf.mxu0
      %v1878 = vadd.f32 %v1709, %v1877
      %v1879 = vpop.f32.mrf.mxu0
      %v1880 = vadd.f32 %v1711, %v1879
      %1881 = vmatmul.bf16.gmra.mxu0 %v900
      %v1882 = vpop.f32.mrf.mxu0
      %v1883 = vadd.f32 %v1714, %v1882
      %v1884 = vpop.f32.mrf.mxu0
      %v1885 = vadd.f32 %v1716, %v1884
      %1886 = vmatmul.bf16.gmra.mxu0 %v904
      %v1887 = vpop.f32.mrf.mxu0
      %v1888 = vadd.f32 %v1719, %v1887
      %v1889 = vpop.f32.mrf.mxu0
      %v1890 = vadd.f32 %v1721, %v1889
      %1891 = vmatmul.bf16.gmra.mxu0 %v908
      %v1892 = vpop.f32.mrf.mxu0
      %v1893 = vadd.f32 %v1724, %v1892
      %v1894 = vpop.f32.mrf.mxu0
      %v1895 = vadd.f32 %v1726, %v1894
      %1896 = vmatmul.bf16.gmra.mxu0 %v912
      %v1897 = vpop.f32.mrf.mxu0
      %v1898 = vadd.f32 %v1729, %v1897
      %v1899 = vpop.f32.mrf.mxu0
      %v1900 = vadd.f32 %v1731, %v1899
      %1901 = vmatmul.bf16.gmra.mxu0 %v916
      %v1902 = vpop.f32.mrf.mxu0
      %v1903 = vadd.f32 %v1734, %v1902
      %v1904 = vpop.f32.mrf.mxu0
      %v1905 = vadd.f32 %v1736, %v1904
      %1906 = vmatmul.bf16.gmra.mxu0 %v920
      %v1907 = vpop.f32.mrf.mxu0
      %v1908 = vadd.f32 %v1739, %v1907
      %v1909 = vpop.f32.mrf.mxu0
      %v1910 = vadd.f32 %v1741, %v1909
      %1911 = vmatmul.bf16.gmra.mxu0 %v924
      %v1912 = vpop.f32.mrf.mxu0
      %v1913 = vadd.f32 %v1744, %v1912
      %v1914 = vpop.f32.mrf.mxu0
      %v1915 = vadd.f32 %v1746, %v1914
      %1916 = vmatmul.bf16.gmra.mxu0 %v928
      %v1917 = vpop.f32.mrf.mxu0
      %v1918 = vadd.f32 %v1749, %v1917
      %v1919 = vpop.f32.mrf.mxu0
      %v1920 = vadd.f32 %v1751, %v1919
      %1921 = vmatmul.bf16.gmra.mxu0 %v932
      %v1922 = vpop.f32.mrf.mxu0
      %v1923 = vadd.f32 %v1754, %v1922
      %v1924 = vpop.f32.mrf.mxu0
      %v1925 = vadd.f32 %v1756, %v1924
      %1926 = vmatmul.bf16.gmra.mxu0 %v936
      %v1927 = vpop.f32.mrf.mxu0
      %v1928 = vadd.f32 %v1759, %v1927
      %v1929 = vpop.f32.mrf.mxu0
      %v1930 = vadd.f32 %v1761, %v1929
      %1931 = vmatmul.bf16.gmra.mxu0 %v940
      %v1932 = vpop.f32.mrf.mxu0
      %v1933 = vadd.f32 %v1764, %v1932
      %v1934 = vpop.f32.mrf.mxu0
      %v1935 = vadd.f32 %v1766, %v1934
      %1936 = vdwg.mxu0
      %v1937 = vtanh.pop %v1778
      %v1938 = vtanh.pop %v1780
      %v1939 = vtanh.pop %v1783
      %v1940 = vtanh.pop %v1785
      %v1941 = vtanh.pop %v1788
      %v1942 = vtanh.pop %v1790
      %v1943 = vtanh.pop %v1793
      %v1944 = vtanh.pop %v1795
      %v1945 = vtanh.pop %v1798
      %v1946 = vtanh.pop %v1800
      %v1947 = vtanh.pop %v1803
      %v1948 = vtanh.pop %v1805
      %v1949 = vtanh.pop %v1808
      %v1950 = vtanh.pop %v1810
      %v1951 = vtanh.pop %v1813
      %v1952 = vtanh.pop %v1815
      %v1953 = vtanh.pop %v1818
      %v1954 = vtanh.pop %v1820
      %v1955 = vtanh.pop %v1823
      %v1956 = vtanh.pop %v1825
      %v1957 = vtanh.pop %v1828
      %v1958 = vtanh.pop %v1830
      %v1959 = vtanh.pop %v1833
      %v1960 = vtanh.pop %v1835
      %v1961 = vtanh.pop %v1838
      %v1962 = vtanh.pop %v1840
      %v1963 = vtanh.pop %v1843
      %v1964 = vtanh.pop %v1845
      %v1965 = vtanh.pop %v1848
      %v1966 = vtanh.pop %v1850
      %v1967 = vtanh.pop %v1853
      %v1968 = vtanh.pop %v1855
      %v1969 = vtanh.pop %v1858
      %v1970 = vtanh.pop %v1860
      %v1971 = vtanh.pop %v1863
      %v1972 = vtanh.pop %v1865
      %v1973 = vtanh.pop %v1868
      %v1974 = vtanh.pop %v1870
      %v1975 = vtanh.pop %v1873
      %v1976 = vtanh.pop %v1875
      %v1977 = vtanh.pop %v1878
      %v1978 = vtanh.pop %v1880
      %v1979 = vtanh.pop %v1883
      %v1980 = vtanh.pop %v1885
      %v1981 = vtanh.pop %v1888
      %v1982 = vtanh.pop %v1890
      %v1983 = vtanh.pop %v1893
      %v1984 = vtanh.pop %v1895
      %v1985 = vtanh.pop %v1898
      %v1986 = vtanh.pop %v1900
      %v1987 = vtanh.pop %v1903
      %v1988 = vtanh.pop %v1905
      %v1989 = vtanh.pop %v1908
      %v1990 = vtanh.pop %v1910
      %v1991 = vtanh.pop %v1913
      %v1992 = vtanh.pop %v1915
      %v1993 = vtanh.pop %v1918
      %v1994 = vtanh.pop %v1920
      %v1995 = vtanh.pop %v1923
      %v1996 = vtanh.pop %v1925
      %v1997 = vtanh.pop %v1928
      %v1998 = vtanh.pop %v1930
      %v1999 = vtanh.pop %v1933
      %v2000 = vtanh.pop %v1935
      %vm2001 = vcmask 64512
      %2002 = vst.msk [vmem:[%s231] sm:$0xff] %vm2001, %v1937
      %2003 = vst.msk [vmem:[%s231 + $0x8] sm:$0xff] %vm2001, %v1938
      %2004 = vst.msk [vmem:[%s231 + $0x10] sm:$0xff] %vm2001, %v1939
      %2005 = vst.msk [vmem:[%s231 + $0x18] sm:$0xff] %vm2001, %v1940
      %2006 = vst.msk [vmem:[%s231 + $0x20] sm:$0xff] %vm2001, %v1941
      %2007 = vst.msk [vmem:[%s231 + $0x28] sm:$0xff] %vm2001, %v1942
      %2008 = vst.msk [vmem:[%s231 + $0x30] sm:$0xff] %vm2001, %v1943
      %2009 = vst.msk [vmem:[%s231 + $0x38] sm:$0xff] %vm2001, %v1944
      %2010 = vst.msk [vmem:[%s231 + $0x40] sm:$0xff] %vm2001, %v1945
      %2011 = vst.msk [vmem:[%s231 + $0x48] sm:$0xff] %vm2001, %v1946
      %2012 = vst.msk [vmem:[%s231 + $0x50] sm:$0xff] %vm2001, %v1947
      %2013 = vst.msk [vmem:[%s231 + $0x58] sm:$0xff] %vm2001, %v1948
      %2014 = vst.msk [vmem:[%s231 + $0x60] sm:$0xff] %vm2001, %v1949
      %2015 = vst.msk [vmem:[%s231 + $0x68] sm:$0xff] %vm2001, %v1950
      %2016 = vst.msk [vmem:[%s231 + $0x70] sm:$0xff] %vm2001, %v1951
      %2017 = vst.msk [vmem:[%s231 + $0x78] sm:$0xff] %vm2001, %v1952
      %2018 = vst.msk [vmem:[%s231 + $0x80] sm:$0xff] %vm2001, %v1953
      %2019 = vst.msk [vmem:[%s231 + $0x88] sm:$0xff] %vm2001, %v1954
      %2020 = vst.msk [vmem:[%s231 + $0x90] sm:$0xff] %vm2001, %v1955
      %2021 = vst.msk [vmem:[%s231 + $0x98] sm:$0xff] %vm2001, %v1956
      %2022 = vst.msk [vmem:[%s231 + $0xa0] sm:$0xff] %vm2001, %v1957
      %2023 = vst.msk [vmem:[%s231 + $0xa8] sm:$0xff] %vm2001, %v1958
      %2024 = vst.msk [vmem:[%s231 + $0xb0] sm:$0xff] %vm2001, %v1959
      %2025 = vst.msk [vmem:[%s231 + $0xb8] sm:$0xff] %vm2001, %v1960
      %2026 = vst.msk [vmem:[%s231 + $0xc0] sm:$0xff] %vm2001, %v1961
      %2027 = vst.msk [vmem:[%s231 + $0xc8] sm:$0xff] %vm2001, %v1962
      %2028 = vst.msk [vmem:[%s231 + $0xd0] sm:$0xff] %vm2001, %v1963
      %2029 = vst.msk [vmem:[%s231 + $0xd8] sm:$0xff] %vm2001, %v1964
      %2030 = vst.msk [vmem:[%s231 + $0xe0] sm:$0xff] %vm2001, %v1965
      %2031 = vst.msk [vmem:[%s231 + $0xe8] sm:$0xff] %vm2001, %v1966
      %2032 = vst.msk [vmem:[%s231 + $0xf0] sm:$0xff] %vm2001, %v1967
      %2033 = vst.msk [vmem:[%s231 + $0xf8] sm:$0xff] %vm2001, %v1968
      %2034 = vst.msk [vmem:[%s231 + $0x100] sm:$0xff] %vm2001, %v1969
      %2035 = vst.msk [vmem:[%s231 + $0x108] sm:$0xff] %vm2001, %v1970
      %2036 = vst.msk [vmem:[%s231 + $0x110] sm:$0xff] %vm2001, %v1971
      %2037 = vst.msk [vmem:[%s231 + $0x118] sm:$0xff] %vm2001, %v1972
      %2038 = vst.msk [vmem:[%s231 + $0x120] sm:$0xff] %vm2001, %v1973
      %2039 = vst.msk [vmem:[%s231 + $0x128] sm:$0xff] %vm2001, %v1974
      %2040 = vst.msk [vmem:[%s231 + $0x130] sm:$0xff] %vm2001, %v1975
      %2041 = vst.msk [vmem:[%s231 + $0x138] sm:$0xff] %vm2001, %v1976
      %2042 = vst.msk [vmem:[%s231 + $0x140] sm:$0xff] %vm2001, %v1977
      %2043 = vst.msk [vmem:[%s231 + $0x148] sm:$0xff] %vm2001, %v1978
      %2044 = vst.msk [vmem:[%s231 + $0x150] sm:$0xff] %vm2001, %v1979
      %2045 = vst.msk [vmem:[%s231 + $0x158] sm:$0xff] %vm2001, %v1980
      %2046 = vst.msk [vmem:[%s231 + $0x160] sm:$0xff] %vm2001, %v1981
      %2047 = vst.msk [vmem:[%s231 + $0x168] sm:$0xff] %vm2001, %v1982
      %2048 = vst.msk [vmem:[%s231 + $0x170] sm:$0xff] %vm2001, %v1983
      %2049 = vst.msk [vmem:[%s231 + $0x178] sm:$0xff] %vm2001, %v1984
      %2050 = vst.msk [vmem:[%s231 + $0x180] sm:$0xff] %vm2001, %v1985
      %2051 = vst.msk [vmem:[%s231 + $0x188] sm:$0xff] %vm2001, %v1986
      %2052 = vst.msk [vmem:[%s231 + $0x190] sm:$0xff] %vm2001, %v1987
      %2053 = vst.msk [vmem:[%s231 + $0x198] sm:$0xff] %vm2001, %v1988
      %2054 = vst.msk [vmem:[%s231 + $0x1a0] sm:$0xff] %vm2001, %v1989
      %2055 = vst.msk [vmem:[%s231 + $0x1a8] sm:$0xff] %vm2001, %v1990
      %2056 = vst.msk [vmem:[%s231 + $0x1b0] sm:$0xff] %vm2001, %v1991
      %2057 = vst.msk [vmem:[%s231 + $0x1b8] sm:$0xff] %vm2001, %v1992
      %2058 = vst.msk [vmem:[%s231 + $0x1c0] sm:$0xff] %vm2001, %v1993
      %2059 = vst.msk [vmem:[%s231 + $0x1c8] sm:$0xff] %vm2001, %v1994
      %2060 = vst.msk [vmem:[%s231 + $0x1d0] sm:$0xff] %vm2001, %v1995
      %2061 = vst.msk [vmem:[%s231 + $0x1d8] sm:$0xff] %vm2001, %v1996
      %2062 = vst.msk [vmem:[%s231 + $0x1e0] sm:$0xff] %vm2001, %v1997
      %2063 = vst.msk [vmem:[%s231 + $0x1e8] sm:$0xff] %vm2001, %v1998
      %2064 = vst.msk [vmem:[%s231 + $0x1f0] sm:$0xff] %vm2001, %v1999
      %2065 = vst.msk [vmem:[%s231 + $0x1f8] sm:$0xff] %vm2001, %v2000
      %s2066 = smul.u32 64, %s19
      %p2067 = scmp.lt.s32.totalorder %s18, 3
      %s2068 = scalar_select %p2067, %s18, 3
      %p2069 = scmp.lt.s32.totalorder %s2066, 63
      %s2070 = scalar_select %p2069, %s2066, 63
      %s2071 = smul.addr %s2068, 64
      %s2072 = sadd.s32 %s2070, %s2071
      %s2073 = smul.addr %s2072, 8
      %s2074 = scalar_lea.vmem %s3, %s2073
      // Predicated region
      $region33: #{generator_forward.19} parent=31 // pred_check
        %p2075 = pneg %p121
      $region34: #{generator_forward.19} parent=31 // pred_check_branch
        %2077 = sbr.rel (%p2075) target = $region36
      $region35: #{generator_forward.19} parent=31 // pred_region
        %s2078 = smul.u32 64, %s19
      $region36: #{generator_forward.19} parent=31 // pred_fallthru
        _
    $region32: #{generator_forward.19} parent=5 // pred_fallthru
      _
    %p2079 = scmp.le.s32.totalorder 2, %s9
    // Predicated region
    $region37: #{generator_forward.19} parent=5 // pred_check
      %p2080 = pneg %p2079
    $region38: #{generator_forward.19} parent=5 // pred_check_branch
      %2082 = sbr.rel (%p2080) target = $region40
    $region39: #{generator_forward.19} parent=5 // pred_region
      %s2083 = ssub.s32 %s9, 2
      // Predicated region
      $region41: #{generator_forward.19} parent=39 // pred_check
        %p2084 = pneg %p127
      $region42: #{generator_forward.19} parent=39 // pred_check_branch
        %2086 = sbr.rel (%p2084) target = $region44
      $region43: #{generator_forward.19} parent=39 // pred_region
        %s2087 = smul.u32 64, %s21
        %p2088 = scmp.lt.s32.totalorder %s20, 3
        %s2089 = scalar_select %p2088, %s20, 3
        %p2090 = scmp.lt.s32.totalorder %s2087, 63
        %s2091 = scalar_select %p2090, %s2087, 63
        %s2092 = smul.addr %s2089, 64
        %s2093 = sadd.s32 %s2091, %s2092
        %s2094 = smul.addr %s2093, 8
        %s2095 = scalar_lea.vmem %s3, %s2094
      $region44: #{generator_forward.19} parent=39 // pred_fallthru
        _
    $region40: #{generator_forward.19} parent=5 // pred_fallthru
      _
  $region6: #{generator_forward.19} parent=0 // loop_footer
    %s13 = sadd.s32 1, %s9
  $region7: #{generator_forward.19} parent=0 // loop_footer_branch
    %8 = sbr.rel target = $region3
  $region8: #{generator_forward.19} parent=0 // loop_exit
    _

</llo_original>
